<compile_context>
chip_gen: v7x
topology: tpu7x:2x2x1
jax: 0.10.0
libtpu: 0.0.40
codegen_flags: <defaults>
</compile_context>

<pallas_src>
import functools
import jax
import jax.numpy as jnp
from jax.experimental import pallas as pl
from jax.experimental.pallas import tpu as pltpu


CFG = dict(
    vocab_size=100,
    max_position=16,
    hidden_size=32,
    num_layers=2,
    num_heads=2,
    intermediate_size=64,
    target_size=3,
    initializer_range=0.02,
    ln_eps=1e-12,
)

OUT_PAD = 128   # lane-dense padded width of the fc output


# -----------------------------------------------------------------------------
# Fused whole-model Pallas kernel (one grid step == one batch element)
# -----------------------------------------------------------------------------

def _model_kernel(emb_ref, mask_ref, pos_ref, emb_g_ref, emb_b_ref,
                  qkv_w_ref, qkv_b_ref, o_w_ref, o_b_ref,
                  ln1_g_ref, ln1_b_ref, ff1_w_ref, ff1_b_ref,
                  ff2_w_ref, ff2_b_ref, ln2_g_ref, ln2_b_ref,
                  fc_w_ref, fc_b_ref, out_ref,
                  *, num_layers, num_heads, ln_eps):
    S, H = emb_ref.shape[1], emb_ref.shape[2]
    Dh = H // num_heads
    scale = 1.0 / (Dh ** 0.5)

    def layer_norm(x, g, b):
        mean = jnp.mean(x, axis=-1, keepdims=True)
        var = jnp.mean((x - mean) ** 2, axis=-1, keepdims=True)
        return (x - mean) * jax.lax.rsqrt(var + ln_eps) * g + b

    # Mask-derived quantities computed ONCE (not per layer).
    mask_row = mask_ref[0].astype(jnp.float32)                # (1, S)
    mask_bias = (1.0 - mask_row) * (-1e9)                     # additive attn bias
    inv_sum_mask = 1.0 / jnp.maximum(jnp.sum(mask_row), 1e-9)  # MeanPooling clamp

    # word-embedding (gathered outside) + positional embedding + LayerNorm.
    x = layer_norm(emb_ref[0].astype(jnp.float32) + pos_ref[...],
                   emb_g_ref[...], emb_b_ref[...])            # (S, H)

    for l in range(num_layers):
        # ---- self-attention: fused QKV projection, per-head 2-D matmuls ----
        qkv = jnp.dot(x, qkv_w_ref[l],
                      preferred_element_type=jnp.float32) + qkv_b_ref[l]  # (S, 3H)
        o_w = o_w_ref[l]                                      # (H, H)
        attn_out = jnp.zeros((S, H), jnp.float32) + o_b_ref[l]
        for h in range(num_heads):
            lo = h * Dh
            q_h = qkv[:, lo:lo + Dh]                          # (S, Dh)
            k_h = qkv[:, H + lo:H + lo + Dh]
            v_h = qkv[:, 2 * H + lo:2 * H + lo + Dh]
            s = jax.lax.dot_general(
                q_h, k_h, (((1,), (1,)), ((), ())),
                preferred_element_type=jnp.float32) * scale   # (S, S)
            s = s + mask_bias                                 # (1,S) broadcast
            s = s - jnp.max(s, axis=-1, keepdims=True)
            p = jnp.exp(s)
            p = p * pl.reciprocal(jnp.sum(p, axis=-1, keepdims=True),
                                  approx=True)
            ctx_h = jnp.dot(p, v_h, preferred_element_type=jnp.float32)   # (S, Dh)
            # concat-over-heads + output projection folded into per-head
            # partial matmuls against the matching rows of o_w.
            attn_out = attn_out + jnp.dot(
                ctx_h, o_w[lo:lo + Dh, :], preferred_element_type=jnp.float32)

        # residual + LN1 (fused)
        x1 = layer_norm(x + attn_out, ln1_g_ref[l], ln1_b_ref[l])

        # ---- feed-forward ----
        ff = jnp.dot(x1, ff1_w_ref[l],
                     preferred_element_type=jnp.float32) + ff1_b_ref[l]
        # TODO(synk): HF BERT uses exact erf GELU; tanh approximation used here.
        ff = jax.nn.gelu(ff, approximate=True)
        ff = jnp.dot(ff, ff2_w_ref[l],
                     preferred_element_type=jnp.float32) + ff2_b_ref[l]

        # residual + LN2 (fused)
        x = layer_norm(x1 + ff, ln2_g_ref[l], ln2_b_ref[l])

    # ---- MeanPooling(last_hidden_state, attention_mask) as an MXU matmul ----
    pooled = jnp.dot(mask_row, x,
                     preferred_element_type=jnp.float32) * inv_sum_mask   # (1, H)

    # ---- fc head (lane-dense, padded to OUT_PAD columns) ----
    # sum(fc(dropout_i(pooled)) for i in 1..5)/5 == fc(pooled) at inference.
    logits = jnp.dot(pooled, fc_w_ref[...],
                     preferred_element_type=jnp.float32) + fc_b_ref[...]
    out_ref[0] = logits.astype(out_ref.dtype)


def _bcast_spec(shape):
    zeros = (0,) * len(shape)
    return pl.BlockSpec(shape, lambda b, z=zeros: z)


# -----------------------------------------------------------------------------
# Parameters + forward wrapper
# -----------------------------------------------------------------------------

def init_params(key, cfg):
    std = cfg["initializer_range"]
    H, I, V, P, T, L = (cfg["hidden_size"], cfg["intermediate_size"],
                        cfg["vocab_size"], cfg["max_position"],
                        cfg["target_size"], cfg["num_layers"])
    ks = iter(jax.random.split(key, 16))

    def normal(k, shape):
        return jax.random.normal(k, shape, jnp.float32) * std

    fc_w = normal(next(ks), (H, T))
    fc_b = jnp.zeros((T,), jnp.float32)
    fc_w_pad = jnp.zeros((H, OUT_PAD), jnp.float32).at[:, :T].set(fc_w)
    fc_b_pad = jnp.zeros((1, OUT_PAD), jnp.float32).at[0, :T].set(fc_b)

    return dict(
        word_emb=normal(next(ks), (V, H)),
        pos_emb=normal(next(ks), (P, H)),
        emb_ln_g=jnp.ones((1, H), jnp.float32),
        emb_ln_b=jnp.zeros((1, H), jnp.float32),
        qkv_w=normal(next(ks), (L, H, 3 * H)),
        qkv_b=jnp.zeros((L, 1, 3 * H), jnp.float32),
        o_w=normal(next(ks), (L, H, H)),
        o_b=jnp.zeros((L, 1, H), jnp.float32),
        ln1_g=jnp.ones((L, 1, H), jnp.float32),
        ln1_b=jnp.zeros((L, 1, H), jnp.float32),
        ff1_w=normal(next(ks), (L, H, I)),
        ff1_b=jnp.zeros((L, 1, I), jnp.float32),
        ff2_w=normal(next(ks), (L, I, H)),
        ff2_b=jnp.zeros((L, 1, H), jnp.float32),
        ln2_g=jnp.ones((L, 1, H), jnp.float32),
        ln2_b=jnp.zeros((L, 1, H), jnp.float32),
        fc_w_pad=fc_w_pad,
        fc_b_pad=fc_b_pad,
    )


def custom_model_forward(params, input_ids, attention_mask, cfg):
    B, S = input_ids.shape
    H = cfg["hidden_size"]
    I = cfg["intermediate_size"]
    L = cfg["num_layers"]
    T = cfg["target_size"]

    # Embedding row-gather stays as XLA glue (data-dependent gather); the
    # positional add, mask cast and everything downstream run inside the
    # single fused Pallas kernel.
    emb = jnp.take(params["word_emb"], input_ids, axis=0)      # (B, S, H)
    pos = params["pos_emb"][:S]                                # (S, H)
    mask = attention_mask.astype(jnp.int32).reshape(B, 1, S)   # (B, 1, S)

    kernel = functools.partial(
        _model_kernel, num_layers=L, num_heads=cfg["num_heads"],
        ln_eps=cfg["ln_eps"])

    out_pad = pl.pallas_call(
        kernel,
        out_shape=jax.ShapeDtypeStruct((B, 1, OUT_PAD), jnp.float32),
        grid=(B,),
        in_specs=[
            pl.BlockSpec((1, S, H), lambda b: (b, 0, 0)),      # emb
            pl.BlockSpec((1, 1, S), lambda b: (b, 0, 0)),      # mask (int32)
            _bcast_spec((S, H)),                               # pos_emb
            _bcast_spec((1, H)),                               # emb_ln_g
            _bcast_spec((1, H)),                               # emb_ln_b
            _bcast_spec((L, H, 3 * H)),                        # qkv_w
            _bcast_spec((L, 1, 3 * H)),                        # qkv_b
            _bcast_spec((L, H, H)),                            # o_w
            _bcast_spec((L, 1, H)),                            # o_b
            _bcast_spec((L, 1, H)),                            # ln1_g
            _bcast_spec((L, 1, H)),                            # ln1_b
            _bcast_spec((L, H, I)),                            # ff1_w
            _bcast_spec((L, 1, I)),                            # ff1_b
            _bcast_spec((L, I, H)),                            # ff2_w
            _bcast_spec((L, 1, H)),                            # ff2_b
            _bcast_spec((L, 1, H)),                            # ln2_g
            _bcast_spec((L, 1, H)),                            # ln2_b
            _bcast_spec((H, OUT_PAD)),                         # fc_w (padded)
            _bcast_spec((1, OUT_PAD)),                         # fc_b (padded)
        ],
        out_specs=pl.BlockSpec((1, 1, OUT_PAD), lambda b: (b, 0, 0)),
        compiler_params=pltpu.CompilerParams(
            dimension_semantics=("parallel",)),
    )(emb, mask, pos,
      params["emb_ln_g"], params["emb_ln_b"],
      params["qkv_w"], params["qkv_b"], params["o_w"], params["o_b"],
      params["ln1_g"], params["ln1_b"], params["ff1_w"], params["ff1_b"],
      params["ff2_w"], params["ff2_b"], params["ln2_g"], params["ln2_b"],
      params["fc_w_pad"], params["fc_b_pad"])

    return out_pad.reshape(B, OUT_PAD)[:, :T]


# -----------------------------------------------------------------------------
# Main
# -----------------------------------------------------------------------------

if __name__ == "__main__":
    B, S = 2, 8
    key = jax.random.PRNGKey(0)
    k_param, k_ids = jax.random.split(key)

    params = init_params(k_param, CFG)
    input_ids = jax.random.randint(k_ids, (B, S), 0, CFG["vocab_size"], jnp.int32)
    # Deterministic ragged attention mask (second sequence padded after 5 tokens).
    attention_mask = jnp.array(
        [[1, 1, 1, 1, 1, 1, 1, 1],
         [1, 1, 1, 1, 1, 0, 0, 0]], dtype=jnp.int32)

    fwd = jax.jit(functools.partial(custom_model_forward, cfg=CFG))
    out = fwd(params, input_ids, attention_mask)
    jax.block_until_ready(out)

    assert out.shape == (B, CFG["target_size"])
    assert bool(jnp.all(jnp.isfinite(out)))
    print("KERNEL_OK")
</pallas_src>

<mosaic_0001>
module attributes {stable_mosaic.version = 11 : i64} {
  func.func @_model_kernel(%arg0: i32, %arg1: memref<1x8x32xf32, #tpu.memory_space<vmem>>, %arg2: memref<1x1x8xi32, #tpu.memory_space<vmem>>, %arg3: memref<8x32xf32, #tpu.memory_space<vmem>>, %arg4: memref<1x32xf32, #tpu.memory_space<vmem>>, %arg5: memref<1x32xf32, #tpu.memory_space<vmem>>, %arg6: memref<2x32x96xf32, #tpu.memory_space<vmem>>, %arg7: memref<2x1x96xf32, #tpu.memory_space<vmem>>, %arg8: memref<2x32x32xf32, #tpu.memory_space<vmem>>, %arg9: memref<2x1x32xf32, #tpu.memory_space<vmem>>, %arg10: memref<2x1x32xf32, #tpu.memory_space<vmem>>, %arg11: memref<2x1x32xf32, #tpu.memory_space<vmem>>, %arg12: memref<2x32x64xf32, #tpu.memory_space<vmem>>, %arg13: memref<2x1x64xf32, #tpu.memory_space<vmem>>, %arg14: memref<2x64x32xf32, #tpu.memory_space<vmem>>, %arg15: memref<2x1x32xf32, #tpu.memory_space<vmem>>, %arg16: memref<2x1x32xf32, #tpu.memory_space<vmem>>, %arg17: memref<2x1x32xf32, #tpu.memory_space<vmem>>, %arg18: memref<32x128xf32, #tpu.memory_space<vmem>>, %arg19: memref<1x128xf32, #tpu.memory_space<vmem>>, %arg20: memref<1x1x128xf32, #tpu.memory_space<vmem>>) attributes {dimension_semantics = [#tpu.dimension_semantics<parallel>], iteration_bounds = array<i64: 2>, scalar_prefetch = 0 : i64, scratch_operands = 0 : i64, tpu.core_type = #tpu.core_type<tc>, window_params = [{transform_indices = @transform_0, window_bounds = array<i64: 1, 8, 32>}, {transform_indices = @transform_1, window_bounds = array<i64: 1, 1, 8>}, {pipeline_mode = #tpu.pipeline_mode<synchronous>, transform_indices = @transform_2, window_bounds = array<i64: 8, 32>}, {pipeline_mode = #tpu.pipeline_mode<synchronous>, transform_indices = @transform_3, window_bounds = array<i64: 1, 32>}, {pipeline_mode = #tpu.pipeline_mode<synchronous>, transform_indices = @transform_4, window_bounds = array<i64: 1, 32>}, {pipeline_mode = #tpu.pipeline_mode<synchronous>, transform_indices = @transform_5, window_bounds = array<i64: 2, 32, 96>}, {pipeline_mode = #tpu.pipeline_mode<synchronous>, transform_indices = @transform_6, window_bounds = array<i64: 2, 1, 96>}, {pipeline_mode = #tpu.pipeline_mode<synchronous>, transform_indices = @transform_7, window_bounds = array<i64: 2, 32, 32>}, {pipeline_mode = #tpu.pipeline_mode<synchronous>, transform_indices = @transform_8, window_bounds = array<i64: 2, 1, 32>}, {pipeline_mode = #tpu.pipeline_mode<synchronous>, transform_indices = @transform_9, window_bounds = array<i64: 2, 1, 32>}, {pipeline_mode = #tpu.pipeline_mode<synchronous>, transform_indices = @transform_10, window_bounds = array<i64: 2, 1, 32>}, {pipeline_mode = #tpu.pipeline_mode<synchronous>, transform_indices = @transform_11, window_bounds = array<i64: 2, 32, 64>}, {pipeline_mode = #tpu.pipeline_mode<synchronous>, transform_indices = @transform_12, window_bounds = array<i64: 2, 1, 64>}, {pipeline_mode = #tpu.pipeline_mode<synchronous>, transform_indices = @transform_13, window_bounds = array<i64: 2, 64, 32>}, {pipeline_mode = #tpu.pipeline_mode<synchronous>, transform_indices = @transform_14, window_bounds = array<i64: 2, 1, 32>}, {pipeline_mode = #tpu.pipeline_mode<synchronous>, transform_indices = @transform_15, window_bounds = array<i64: 2, 1, 32>}, {pipeline_mode = #tpu.pipeline_mode<synchronous>, transform_indices = @transform_16, window_bounds = array<i64: 2, 1, 32>}, {pipeline_mode = #tpu.pipeline_mode<synchronous>, transform_indices = @transform_17, window_bounds = array<i64: 32, 128>}, {pipeline_mode = #tpu.pipeline_mode<synchronous>, transform_indices = @transform_18, window_bounds = array<i64: 1, 128>}, {transform_indices = @transform_19, window_bounds = array<i64: 1, 1, 128>}]} {
    %c0 = arith.constant 0 : index
    %c0_0 = arith.constant 0 : index
    %c0_1 = arith.constant 0 : index
    %0 = vector.load %arg2[%c0, %c0_0, %c0_1] : memref<1x1x8xi32, #tpu.memory_space<vmem>>, vector<1x1x8xi32>
    %1 = vector.shape_cast %0 : vector<1x1x8xi32> to vector<1x8xi32>
    %2 = arith.sitofp %1 : vector<1x8xi32> to vector<1x8xf32>
    %cst = arith.constant 1.000000e+00 : f32
    %3 = vector.broadcast %cst : f32 to vector<1x8xf32>
    %4 = arith.subf %3, %2 : vector<1x8xf32>
    %cst_2 = arith.constant -1.000000e+09 : f32
    %5 = vector.broadcast %cst_2 : f32 to vector<1x8xf32>
    %6 = arith.mulf %4, %5 : vector<1x8xf32>
    %7 = vector.shape_cast %2 : vector<1x8xf32> to vector<1x1x8xf32>
    %cst_3 = arith.constant dense<0.000000e+00> : vector<1xf32>
    %8 = vector.multi_reduction <add>, %7, %cst_3 [1, 2] : vector<1x1x8xf32> to vector<1xf32>
    %9 = vector.shape_cast %8 : vector<1xf32> to vector<1x1x1xf32>
    %10 = vector.extract %9[0, 0, 0] : f32 from vector<1x1x1xf32>
    %cst_4 = arith.constant 9.99999971E-10 : f32
    %11 = arith.maximumf %10, %cst_4 : f32
    %cst_5 = arith.constant 1.000000e+00 : f32
    %12 = arith.divf %cst_5, %11 : f32
    %c0_6 = arith.constant 0 : index
    %c0_7 = arith.constant 0 : index
    %c0_8 = arith.constant 0 : index
    %13 = vector.load %arg1[%c0_6, %c0_7, %c0_8] : memref<1x8x32xf32, #tpu.memory_space<vmem>>, vector<1x8x32xf32>
    %14 = vector.shape_cast %13 : vector<1x8x32xf32> to vector<8x32xf32>
    %c0_9 = arith.constant 0 : index
    %c0_10 = arith.constant 0 : index
    %15 = vector.load %arg3[%c0_9, %c0_10] : memref<8x32xf32, #tpu.memory_space<vmem>>, vector<8x32xf32>
    %16 = arith.addf %14, %15 : vector<8x32xf32>
    %c0_11 = arith.constant 0 : index
    %c0_12 = arith.constant 0 : index
    %17 = vector.load %arg4[%c0_11, %c0_12] : memref<1x32xf32, #tpu.memory_space<vmem>>, vector<1x32xf32>
    %c0_13 = arith.constant 0 : index
    %c0_14 = arith.constant 0 : index
    %18 = vector.load %arg5[%c0_13, %c0_14] : memref<1x32xf32, #tpu.memory_space<vmem>>, vector<1x32xf32>
    %cst_15 = arith.constant dense<0.000000e+00> : vector<8xf32>
    %19 = vector.multi_reduction <add>, %16, %cst_15 [1] : vector<8x32xf32> to vector<8xf32>
    %20 = vector.shape_cast %19 : vector<8xf32> to vector<8x1xf32>
    %cst_16 = arith.constant 3.200000e+01 : f32
    %21 = vector.broadcast %cst_16 : f32 to vector<8x1xf32>
    %22 = arith.divf %20, %21 : vector<8x1xf32>
    %23 = vector.broadcast %22 : vector<8x1xf32> to vector<8x32xf32>
    %24 = arith.subf %16, %23 : vector<8x32xf32>
    %25 = arith.mulf %24, %24 : vector<8x32xf32>
    %cst_17 = arith.constant dense<0.000000e+00> : vector<8xf32>
    %26 = vector.multi_reduction <add>, %25, %cst_17 [1] : vector<8x32xf32> to vector<8xf32>
    %27 = vector.shape_cast %26 : vector<8xf32> to vector<8x1xf32>
    %cst_18 = arith.constant 3.200000e+01 : f32
    %28 = vector.broadcast %cst_18 : f32 to vector<8x1xf32>
    %29 = arith.divf %27, %28 : vector<8x1xf32>
    %30 = vector.broadcast %22 : vector<8x1xf32> to vector<8x32xf32>
    %31 = arith.subf %16, %30 : vector<8x32xf32>
    %cst_19 = arith.constant 9.99999996E-13 : f32
    %32 = vector.broadcast %cst_19 : f32 to vector<8x1xf32>
    %33 = arith.addf %29, %32 : vector<8x1xf32>
    %34 = math.rsqrt %33 : vector<8x1xf32>
    %35 = vector.broadcast %34 : vector<8x1xf32> to vector<8x32xf32>
    %36 = arith.mulf %31, %35 : vector<8x32xf32>
    %37 = vector.broadcast %17 : vector<1x32xf32> to vector<8x32xf32>
    %38 = arith.mulf %36, %37 : vector<8x32xf32>
    %39 = vector.broadcast %18 : vector<1x32xf32> to vector<8x32xf32>
    %40 = arith.addf %38, %39 : vector<8x32xf32>
    %c0_20 = arith.constant 0 : index
    %c0_21 = arith.constant 0 : index
    %c0_22 = arith.constant 0 : index
    %41 = vector.load %arg6[%c0_20, %c0_21, %c0_22] : memref<2x32x96xf32, #tpu.memory_space<vmem>>, vector<1x32x96xf32>
    %42 = vector.shape_cast %41 : vector<1x32x96xf32> to vector<32x96xf32>
    %cst_23 = arith.constant dense<0.000000e+00> : vector<8x96xf32>
    %43 = tpu.matmul %40, %42, %cst_23 {dimension_numbers = #tpu.dot_dimension_numbers<[1], [0], [0], [1], [0, 0, 1, 1], [], []>} : vector<8x32xf32>, vector<32x96xf32>, vector<8x96xf32> -> vector<8x96xf32>
    %c0_24 = arith.constant 0 : index
    %c0_25 = arith.constant 0 : index
    %c0_26 = arith.constant 0 : index
    %44 = vector.load %arg7[%c0_24, %c0_25, %c0_26] : memref<2x1x96xf32, #tpu.memory_space<vmem>>, vector<1x1x96xf32>
    %45 = vector.shape_cast %44 : vector<1x1x96xf32> to vector<1x96xf32>
    %46 = vector.broadcast %45 : vector<1x96xf32> to vector<8x96xf32>
    %47 = arith.addf %43, %46 : vector<8x96xf32>
    %c0_27 = arith.constant 0 : index
    %c0_28 = arith.constant 0 : index
    %c0_29 = arith.constant 0 : index
    %48 = vector.load %arg8[%c0_27, %c0_28, %c0_29] : memref<2x32x32xf32, #tpu.memory_space<vmem>>, vector<1x32x32xf32>
    %49 = vector.shape_cast %48 : vector<1x32x32xf32> to vector<32x32xf32>
    %cst_30 = arith.constant 0.000000e+00 : f32
    %50 = vector.broadcast %cst_30 : f32 to vector<8x32xf32>
    %c0_31 = arith.constant 0 : index
    %c0_32 = arith.constant 0 : index
    %c0_33 = arith.constant 0 : index
    %51 = vector.load %arg9[%c0_31, %c0_32, %c0_33] : memref<2x1x32xf32, #tpu.memory_space<vmem>>, vector<1x1x32xf32>
    %52 = vector.shape_cast %51 : vector<1x1x32xf32> to vector<1x32xf32>
    %53 = vector.broadcast %52 : vector<1x32xf32> to vector<8x32xf32>
    %54 = arith.addf %50, %53 : vector<8x32xf32>
    %55 = vector.extract_strided_slice %47 {offsets = [0, 0], sizes = [8, 16], strides = [1, 1]} : vector<8x96xf32> to vector<8x16xf32>
    %56 = vector.extract_strided_slice %47 {offsets = [0, 32], sizes = [8, 16], strides = [1, 1]} : vector<8x96xf32> to vector<8x16xf32>
    %57 = vector.extract_strided_slice %47 {offsets = [0, 64], sizes = [8, 16], strides = [1, 1]} : vector<8x96xf32> to vector<8x16xf32>
    %cst_34 = arith.constant dense<0.000000e+00> : vector<8x8xf32>
    %58 = tpu.matmul %55, %56, %cst_34 {dimension_numbers = #tpu.dot_dimension_numbers<[1], [1], [0], [0], [0, 0, 1, 0], [], []>} : vector<8x16xf32>, vector<8x16xf32>, vector<8x8xf32> -> vector<8x8xf32>
    %cst_35 = arith.constant 2.500000e-01 : f32
    %59 = vector.broadcast %cst_35 : f32 to vector<8x8xf32>
    %60 = arith.mulf %58, %59 : vector<8x8xf32>
    %61 = vector.broadcast %6 : vector<1x8xf32> to vector<8x8xf32>
    %62 = arith.addf %60, %61 : vector<8x8xf32>
    %cst_36 = arith.constant dense<0xFF800000> : vector<8xf32>
    %63 = vector.multi_reduction <maximumf>, %62, %cst_36 [1] : vector<8x8xf32> to vector<8xf32>
    %64 = vector.shape_cast %63 : vector<8xf32> to vector<8x1xf32>
    %65 = vector.broadcast %64 : vector<8x1xf32> to vector<8x8xf32>
    %66 = arith.subf %62, %65 : vector<8x8xf32>
    %67 = math.exp %66 : vector<8x8xf32>
    %cst_37 = arith.constant dense<0.000000e+00> : vector<8xf32>
    %68 = vector.multi_reduction <add>, %67, %cst_37 [1] : vector<8x8xf32> to vector<8xf32>
    %69 = vector.shape_cast %68 : vector<8xf32> to vector<8x1xf32>
    %70 = tpu.reciprocal %69 {approx = true} : vector<8x1xf32> -> vector<8x1xf32>
    %71 = vector.broadcast %70 : vector<8x1xf32> to vector<8x8xf32>
    %72 = arith.mulf %67, %71 : vector<8x8xf32>
    %cst_38 = arith.constant dense<0.000000e+00> : vector<8x16xf32>
    %73 = tpu.matmul %72, %57, %cst_38 {dimension_numbers = #tpu.dot_dimension_numbers<[1], [0], [0], [1], [0, 0, 1, 1], [], []>} : vector<8x8xf32>, vector<8x16xf32>, vector<8x16xf32> -> vector<8x16xf32>
    %74 = vector.extract_strided_slice %49 {offsets = [0, 0], sizes = [16, 32], strides = [1, 1]} : vector<32x32xf32> to vector<16x32xf32>
    %cst_39 = arith.constant dense<0.000000e+00> : vector<8x32xf32>
    %75 = tpu.matmul %73, %74, %cst_39 {dimension_numbers = #tpu.dot_dimension_numbers<[1], [0], [0], [1], [0, 0, 1, 1], [], []>} : vector<8x16xf32>, vector<16x32xf32>, vector<8x32xf32> -> vector<8x32xf32>
    %76 = arith.addf %54, %75 : vector<8x32xf32>
    %77 = vector.extract_strided_slice %47 {offsets = [0, 16], sizes = [8, 16], strides = [1, 1]} : vector<8x96xf32> to vector<8x16xf32>
    %78 = vector.extract_strided_slice %47 {offsets = [0, 48], sizes = [8, 16], strides = [1, 1]} : vector<8x96xf32> to vector<8x16xf32>
    %79 = vector.extract_strided_slice %47 {offsets = [0, 80], sizes = [8, 16], strides = [1, 1]} : vector<8x96xf32> to vector<8x16xf32>
    %cst_40 = arith.constant dense<0.000000e+00> : vector<8x8xf32>
    %80 = tpu.matmul %77, %78, %cst_40 {dimension_numbers = #tpu.dot_dimension_numbers<[1], [1], [0], [0], [0, 0, 1, 0], [], []>} : vector<8x16xf32>, vector<8x16xf32>, vector<8x8xf32> -> vector<8x8xf32>
    %cst_41 = arith.constant 2.500000e-01 : f32
    %81 = vector.broadcast %cst_41 : f32 to vector<8x8xf32>
    %82 = arith.mulf %80, %81 : vector<8x8xf32>
    %83 = vector.broadcast %6 : vector<1x8xf32> to vector<8x8xf32>
    %84 = arith.addf %82, %83 : vector<8x8xf32>
    %cst_42 = arith.constant dense<0xFF800000> : vector<8xf32>
    %85 = vector.multi_reduction <maximumf>, %84, %cst_42 [1] : vector<8x8xf32> to vector<8xf32>
    %86 = vector.shape_cast %85 : vector<8xf32> to vector<8x1xf32>
    %87 = vector.broadcast %86 : vector<8x1xf32> to vector<8x8xf32>
    %88 = arith.subf %84, %87 : vector<8x8xf32>
    %89 = math.exp %88 : vector<8x8xf32>
    %cst_43 = arith.constant dense<0.000000e+00> : vector<8xf32>
    %90 = vector.multi_reduction <add>, %89, %cst_43 [1] : vector<8x8xf32> to vector<8xf32>
    %91 = vector.shape_cast %90 : vector<8xf32> to vector<8x1xf32>
    %92 = tpu.reciprocal %91 {approx = true} : vector<8x1xf32> -> vector<8x1xf32>
    %93 = vector.broadcast %92 : vector<8x1xf32> to vector<8x8xf32>
    %94 = arith.mulf %89, %93 : vector<8x8xf32>
    %cst_44 = arith.constant dense<0.000000e+00> : vector<8x16xf32>
    %95 = tpu.matmul %94, %79, %cst_44 {dimension_numbers = #tpu.dot_dimension_numbers<[1], [0], [0], [1], [0, 0, 1, 1], [], []>} : vector<8x8xf32>, vector<8x16xf32>, vector<8x16xf32> -> vector<8x16xf32>
    %96 = vector.extract_strided_slice %49 {offsets = [16, 0], sizes = [16, 32], strides = [1, 1]} : vector<32x32xf32> to vector<16x32xf32>
    %cst_45 = arith.constant dense<0.000000e+00> : vector<8x32xf32>
    %97 = tpu.matmul %95, %96, %cst_45 {dimension_numbers = #tpu.dot_dimension_numbers<[1], [0], [0], [1], [0, 0, 1, 1], [], []>} : vector<8x16xf32>, vector<16x32xf32>, vector<8x32xf32> -> vector<8x32xf32>
    %98 = arith.addf %76, %97 : vector<8x32xf32>
    %99 = arith.addf %40, %98 : vector<8x32xf32>
    %c0_46 = arith.constant 0 : index
    %c0_47 = arith.constant 0 : index
    %c0_48 = arith.constant 0 : index
    %100 = vector.load %arg10[%c0_46, %c0_47, %c0_48] : memref<2x1x32xf32, #tpu.memory_space<vmem>>, vector<1x1x32xf32>
    %101 = vector.shape_cast %100 : vector<1x1x32xf32> to vector<1x32xf32>
    %c0_49 = arith.constant 0 : index
    %c0_50 = arith.constant 0 : index
    %c0_51 = arith.constant 0 : index
    %102 = vector.load %arg11[%c0_49, %c0_50, %c0_51] : memref<2x1x32xf32, #tpu.memory_space<vmem>>, vector<1x1x32xf32>
    %103 = vector.shape_cast %102 : vector<1x1x32xf32> to vector<1x32xf32>
    %cst_52 = arith.constant dense<0.000000e+00> : vector<8xf32>
    %104 = vector.multi_reduction <add>, %99, %cst_52 [1] : vector<8x32xf32> to vector<8xf32>
    %105 = vector.shape_cast %104 : vector<8xf32> to vector<8x1xf32>
    %cst_53 = arith.constant 3.200000e+01 : f32
    %106 = vector.broadcast %cst_53 : f32 to vector<8x1xf32>
    %107 = arith.divf %105, %106 : vector<8x1xf32>
    %108 = vector.broadcast %107 : vector<8x1xf32> to vector<8x32xf32>
    %109 = arith.subf %99, %108 : vector<8x32xf32>
    %110 = arith.mulf %109, %109 : vector<8x32xf32>
    %cst_54 = arith.constant dense<0.000000e+00> : vector<8xf32>
    %111 = vector.multi_reduction <add>, %110, %cst_54 [1] : vector<8x32xf32> to vector<8xf32>
    %112 = vector.shape_cast %111 : vector<8xf32> to vector<8x1xf32>
    %cst_55 = arith.constant 3.200000e+01 : f32
    %113 = vector.broadcast %cst_55 : f32 to vector<8x1xf32>
    %114 = arith.divf %112, %113 : vector<8x1xf32>
    %115 = vector.broadcast %107 : vector<8x1xf32> to vector<8x32xf32>
    %116 = arith.subf %99, %115 : vector<8x32xf32>
    %cst_56 = arith.constant 9.99999996E-13 : f32
    %117 = vector.broadcast %cst_56 : f32 to vector<8x1xf32>
    %118 = arith.addf %114, %117 : vector<8x1xf32>
    %119 = math.rsqrt %118 : vector<8x1xf32>
    %120 = vector.broadcast %119 : vector<8x1xf32> to vector<8x32xf32>
    %121 = arith.mulf %116, %120 : vector<8x32xf32>
    %122 = vector.broadcast %101 : vector<1x32xf32> to vector<8x32xf32>
    %123 = arith.mulf %121, %122 : vector<8x32xf32>
    %124 = vector.broadcast %103 : vector<1x32xf32> to vector<8x32xf32>
    %125 = arith.addf %123, %124 : vector<8x32xf32>
    %c0_57 = arith.constant 0 : index
    %c0_58 = arith.constant 0 : index
    %c0_59 = arith.constant 0 : index
    %126 = vector.load %arg12[%c0_57, %c0_58, %c0_59] : memref<2x32x64xf32, #tpu.memory_space<vmem>>, vector<1x32x64xf32>
    %127 = vector.shape_cast %126 : vector<1x32x64xf32> to vector<32x64xf32>
    %cst_60 = arith.constant dense<0.000000e+00> : vector<8x64xf32>
    %128 = tpu.matmul %125, %127, %cst_60 {dimension_numbers = #tpu.dot_dimension_numbers<[1], [0], [0], [1], [0, 0, 1, 1], [], []>} : vector<8x32xf32>, vector<32x64xf32>, vector<8x64xf32> -> vector<8x64xf32>
    %c0_61 = arith.constant 0 : index
    %c0_62 = arith.constant 0 : index
    %c0_63 = arith.constant 0 : index
    %129 = vector.load %arg13[%c0_61, %c0_62, %c0_63] : memref<2x1x64xf32, #tpu.memory_space<vmem>>, vector<1x1x64xf32>
    %130 = vector.shape_cast %129 : vector<1x1x64xf32> to vector<1x64xf32>
    %131 = vector.broadcast %130 : vector<1x64xf32> to vector<8x64xf32>
    %132 = arith.addf %128, %131 : vector<8x64xf32>
    %133 = arith.mulf %132, %132 : vector<8x64xf32>
    %134 = arith.mulf %132, %133 : vector<8x64xf32>
    %cst_64 = arith.constant 4.471500e-02 : f32
    %135 = vector.broadcast %cst_64 : f32 to vector<8x64xf32>
    %136 = arith.mulf %135, %134 : vector<8x64xf32>
    %137 = arith.addf %132, %136 : vector<8x64xf32>
    %cst_65 = arith.constant 0.797884583 : f32
    %138 = vector.broadcast %cst_65 : f32 to vector<8x64xf32>
    %139 = arith.mulf %138, %137 : vector<8x64xf32>
    %140 = math.tanh %139 : vector<8x64xf32>
    %cst_66 = arith.constant 1.000000e+00 : f32
    %141 = vector.broadcast %cst_66 : f32 to vector<8x64xf32>
    %142 = arith.addf %141, %140 : vector<8x64xf32>
    %cst_67 = arith.constant 5.000000e-01 : f32
    %143 = vector.broadcast %cst_67 : f32 to vector<8x64xf32>
    %144 = arith.mulf %143, %142 : vector<8x64xf32>
    %145 = arith.mulf %132, %144 : vector<8x64xf32>
    %c0_68 = arith.constant 0 : index
    %c0_69 = arith.constant 0 : index
    %c0_70 = arith.constant 0 : index
    %146 = vector.load %arg14[%c0_68, %c0_69, %c0_70] : memref<2x64x32xf32, #tpu.memory_space<vmem>>, vector<1x64x32xf32>
    %147 = vector.shape_cast %146 : vector<1x64x32xf32> to vector<64x32xf32>
    %cst_71 = arith.constant dense<0.000000e+00> : vector<8x32xf32>
    %148 = tpu.matmul %145, %147, %cst_71 {dimension_numbers = #tpu.dot_dimension_numbers<[1], [0], [0], [1], [0, 0, 1, 1], [], []>} : vector<8x64xf32>, vector<64x32xf32>, vector<8x32xf32> -> vector<8x32xf32>
    %c0_72 = arith.constant 0 : index
    %c0_73 = arith.constant 0 : index
    %c0_74 = arith.constant 0 : index
    %149 = vector.load %arg15[%c0_72, %c0_73, %c0_74] : memref<2x1x32xf32, #tpu.memory_space<vmem>>, vector<1x1x32xf32>
    %150 = vector.shape_cast %149 : vector<1x1x32xf32> to vector<1x32xf32>
    %151 = vector.broadcast %150 : vector<1x32xf32> to vector<8x32xf32>
    %152 = arith.addf %148, %151 : vector<8x32xf32>
    %153 = arith.addf %125, %152 : vector<8x32xf32>
    %c0_75 = arith.constant 0 : index
    %c0_76 = arith.constant 0 : index
    %c0_77 = arith.constant 0 : index
    %154 = vector.load %arg16[%c0_75, %c0_76, %c0_77] : memref<2x1x32xf32, #tpu.memory_space<vmem>>, vector<1x1x32xf32>
    %155 = vector.shape_cast %154 : vector<1x1x32xf32> to vector<1x32xf32>
    %c0_78 = arith.constant 0 : index
    %c0_79 = arith.constant 0 : index
    %c0_80 = arith.constant 0 : index
    %156 = vector.load %arg17[%c0_78, %c0_79, %c0_80] : memref<2x1x32xf32, #tpu.memory_space<vmem>>, vector<1x1x32xf32>
    %157 = vector.shape_cast %156 : vector<1x1x32xf32> to vector<1x32xf32>
    %cst_81 = arith.constant dense<0.000000e+00> : vector<8xf32>
    %158 = vector.multi_reduction <add>, %153, %cst_81 [1] : vector<8x32xf32> to vector<8xf32>
    %159 = vector.shape_cast %158 : vector<8xf32> to vector<8x1xf32>
    %cst_82 = arith.constant 3.200000e+01 : f32
    %160 = vector.broadcast %cst_82 : f32 to vector<8x1xf32>
    %161 = arith.divf %159, %160 : vector<8x1xf32>
    %162 = vector.broadcast %161 : vector<8x1xf32> to vector<8x32xf32>
    %163 = arith.subf %153, %162 : vector<8x32xf32>
    %164 = arith.mulf %163, %163 : vector<8x32xf32>
    %cst_83 = arith.constant dense<0.000000e+00> : vector<8xf32>
    %165 = vector.multi_reduction <add>, %164, %cst_83 [1] : vector<8x32xf32> to vector<8xf32>
    %166 = vector.shape_cast %165 : vector<8xf32> to vector<8x1xf32>
    %cst_84 = arith.constant 3.200000e+01 : f32
    %167 = vector.broadcast %cst_84 : f32 to vector<8x1xf32>
    %168 = arith.divf %166, %167 : vector<8x1xf32>
    %169 = vector.broadcast %161 : vector<8x1xf32> to vector<8x32xf32>
    %170 = arith.subf %153, %169 : vector<8x32xf32>
    %cst_85 = arith.constant 9.99999996E-13 : f32
    %171 = vector.broadcast %cst_85 : f32 to vector<8x1xf32>
    %172 = arith.addf %168, %171 : vector<8x1xf32>
    %173 = math.rsqrt %172 : vector<8x1xf32>
    %174 = vector.broadcast %173 : vector<8x1xf32> to vector<8x32xf32>
    %175 = arith.mulf %170, %174 : vector<8x32xf32>
    %176 = vector.broadcast %155 : vector<1x32xf32> to vector<8x32xf32>
    %177 = arith.mulf %175, %176 : vector<8x32xf32>
    %178 = vector.broadcast %157 : vector<1x32xf32> to vector<8x32xf32>
    %179 = arith.addf %177, %178 : vector<8x32xf32>
    %c1 = arith.constant 1 : index
    %c0_86 = arith.constant 0 : index
    %c0_87 = arith.constant 0 : index
    %180 = vector.load %arg6[%c1, %c0_86, %c0_87] : memref<2x32x96xf32, #tpu.memory_space<vmem>>, vector<1x32x96xf32>
    %181 = vector.shape_cast %180 : vector<1x32x96xf32> to vector<32x96xf32>
    %cst_88 = arith.constant dense<0.000000e+00> : vector<8x96xf32>
    %182 = tpu.matmul %179, %181, %cst_88 {dimension_numbers = #tpu.dot_dimension_numbers<[1], [0], [0], [1], [0, 0, 1, 1], [], []>} : vector<8x32xf32>, vector<32x96xf32>, vector<8x96xf32> -> vector<8x96xf32>
    %c1_89 = arith.constant 1 : index
    %c0_90 = arith.constant 0 : index
    %c0_91 = arith.constant 0 : index
    %183 = vector.load %arg7[%c1_89, %c0_90, %c0_91] : memref<2x1x96xf32, #tpu.memory_space<vmem>>, vector<1x1x96xf32>
    %184 = vector.shape_cast %183 : vector<1x1x96xf32> to vector<1x96xf32>
    %185 = vector.broadcast %184 : vector<1x96xf32> to vector<8x96xf32>
    %186 = arith.addf %182, %185 : vector<8x96xf32>
    %c1_92 = arith.constant 1 : index
    %c0_93 = arith.constant 0 : index
    %c0_94 = arith.constant 0 : index
    %187 = vector.load %arg8[%c1_92, %c0_93, %c0_94] : memref<2x32x32xf32, #tpu.memory_space<vmem>>, vector<1x32x32xf32>
    %188 = vector.shape_cast %187 : vector<1x32x32xf32> to vector<32x32xf32>
    %cst_95 = arith.constant 0.000000e+00 : f32
    %189 = vector.broadcast %cst_95 : f32 to vector<8x32xf32>
    %c1_96 = arith.constant 1 : index
    %c0_97 = arith.constant 0 : index
    %c0_98 = arith.constant 0 : index
    %190 = vector.load %arg9[%c1_96, %c0_97, %c0_98] : memref<2x1x32xf32, #tpu.memory_space<vmem>>, vector<1x1x32xf32>
    %191 = vector.shape_cast %190 : vector<1x1x32xf32> to vector<1x32xf32>
    %192 = vector.broadcast %191 : vector<1x32xf32> to vector<8x32xf32>
    %193 = arith.addf %189, %192 : vector<8x32xf32>
    %194 = vector.extract_strided_slice %186 {offsets = [0, 0], sizes = [8, 16], strides = [1, 1]} : vector<8x96xf32> to vector<8x16xf32>
    %195 = vector.extract_strided_slice %186 {offsets = [0, 32], sizes = [8, 16], strides = [1, 1]} : vector<8x96xf32> to vector<8x16xf32>
    %196 = vector.extract_strided_slice %186 {offsets = [0, 64], sizes = [8, 16], strides = [1, 1]} : vector<8x96xf32> to vector<8x16xf32>
    %cst_99 = arith.constant dense<0.000000e+00> : vector<8x8xf32>
    %197 = tpu.matmul %194, %195, %cst_99 {dimension_numbers = #tpu.dot_dimension_numbers<[1], [1], [0], [0], [0, 0, 1, 0], [], []>} : vector<8x16xf32>, vector<8x16xf32>, vector<8x8xf32> -> vector<8x8xf32>
    %cst_100 = arith.constant 2.500000e-01 : f32
    %198 = vector.broadcast %cst_100 : f32 to vector<8x8xf32>
    %199 = arith.mulf %197, %198 : vector<8x8xf32>
    %200 = vector.broadcast %6 : vector<1x8xf32> to vector<8x8xf32>
    %201 = arith.addf %199, %200 : vector<8x8xf32>
    %cst_101 = arith.constant dense<0xFF800000> : vector<8xf32>
    %202 = vector.multi_reduction <maximumf>, %201, %cst_101 [1] : vector<8x8xf32> to vector<8xf32>
    %203 = vector.shape_cast %202 : vector<8xf32> to vector<8x1xf32>
    %204 = vector.broadcast %203 : vector<8x1xf32> to vector<8x8xf32>
    %205 = arith.subf %201, %204 : vector<8x8xf32>
    %206 = math.exp %205 : vector<8x8xf32>
    %cst_102 = arith.constant dense<0.000000e+00> : vector<8xf32>
    %207 = vector.multi_reduction <add>, %206, %cst_102 [1] : vector<8x8xf32> to vector<8xf32>
    %208 = vector.shape_cast %207 : vector<8xf32> to vector<8x1xf32>
    %209 = tpu.reciprocal %208 {approx = true} : vector<8x1xf32> -> vector<8x1xf32>
    %210 = vector.broadcast %209 : vector<8x1xf32> to vector<8x8xf32>
    %211 = arith.mulf %206, %210 : vector<8x8xf32>
    %cst_103 = arith.constant dense<0.000000e+00> : vector<8x16xf32>
    %212 = tpu.matmul %211, %196, %cst_103 {dimension_numbers = #tpu.dot_dimension_numbers<[1], [0], [0], [1], [0, 0, 1, 1], [], []>} : vector<8x8xf32>, vector<8x16xf32>, vector<8x16xf32> -> vector<8x16xf32>
    %213 = vector.extract_strided_slice %188 {offsets = [0, 0], sizes = [16, 32], strides = [1, 1]} : vector<32x32xf32> to vector<16x32xf32>
    %cst_104 = arith.constant dense<0.000000e+00> : vector<8x32xf32>
    %214 = tpu.matmul %212, %213, %cst_104 {dimension_numbers = #tpu.dot_dimension_numbers<[1], [0], [0], [1], [0, 0, 1, 1], [], []>} : vector<8x16xf32>, vector<16x32xf32>, vector<8x32xf32> -> vector<8x32xf32>
    %215 = arith.addf %193, %214 : vector<8x32xf32>
    %216 = vector.extract_strided_slice %186 {offsets = [0, 16], sizes = [8, 16], strides = [1, 1]} : vector<8x96xf32> to vector<8x16xf32>
    %217 = vector.extract_strided_slice %186 {offsets = [0, 48], sizes = [8, 16], strides = [1, 1]} : vector<8x96xf32> to vector<8x16xf32>
    %218 = vector.extract_strided_slice %186 {offsets = [0, 80], sizes = [8, 16], strides = [1, 1]} : vector<8x96xf32> to vector<8x16xf32>
    %cst_105 = arith.constant dense<0.000000e+00> : vector<8x8xf32>
    %219 = tpu.matmul %216, %217, %cst_105 {dimension_numbers = #tpu.dot_dimension_numbers<[1], [1], [0], [0], [0, 0, 1, 0], [], []>} : vector<8x16xf32>, vector<8x16xf32>, vector<8x8xf32> -> vector<8x8xf32>
    %cst_106 = arith.constant 2.500000e-01 : f32
    %220 = vector.broadcast %cst_106 : f32 to vector<8x8xf32>
    %221 = arith.mulf %219, %220 : vector<8x8xf32>
    %222 = vector.broadcast %6 : vector<1x8xf32> to vector<8x8xf32>
    %223 = arith.addf %221, %222 : vector<8x8xf32>
    %cst_107 = arith.constant dense<0xFF800000> : vector<8xf32>
    %224 = vector.multi_reduction <maximumf>, %223, %cst_107 [1] : vector<8x8xf32> to vector<8xf32>
    %225 = vector.shape_cast %224 : vector<8xf32> to vector<8x1xf32>
    %226 = vector.broadcast %225 : vector<8x1xf32> to vector<8x8xf32>
    %227 = arith.subf %223, %226 : vector<8x8xf32>
    %228 = math.exp %227 : vector<8x8xf32>
    %cst_108 = arith.constant dense<0.000000e+00> : vector<8xf32>
    %229 = vector.multi_reduction <add>, %228, %cst_108 [1] : vector<8x8xf32> to vector<8xf32>
    %230 = vector.shape_cast %229 : vector<8xf32> to vector<8x1xf32>
    %231 = tpu.reciprocal %230 {approx = true} : vector<8x1xf32> -> vector<8x1xf32>
    %232 = vector.broadcast %231 : vector<8x1xf32> to vector<8x8xf32>
    %233 = arith.mulf %228, %232 : vector<8x8xf32>
    %cst_109 = arith.constant dense<0.000000e+00> : vector<8x16xf32>
    %234 = tpu.matmul %233, %218, %cst_109 {dimension_numbers = #tpu.dot_dimension_numbers<[1], [0], [0], [1], [0, 0, 1, 1], [], []>} : vector<8x8xf32>, vector<8x16xf32>, vector<8x16xf32> -> vector<8x16xf32>
    %235 = vector.extract_strided_slice %188 {offsets = [16, 0], sizes = [16, 32], strides = [1, 1]} : vector<32x32xf32> to vector<16x32xf32>
    %cst_110 = arith.constant dense<0.000000e+00> : vector<8x32xf32>
    %236 = tpu.matmul %234, %235, %cst_110 {dimension_numbers = #tpu.dot_dimension_numbers<[1], [0], [0], [1], [0, 0, 1, 1], [], []>} : vector<8x16xf32>, vector<16x32xf32>, vector<8x32xf32> -> vector<8x32xf32>
    %237 = arith.addf %215, %236 : vector<8x32xf32>
    %238 = arith.addf %179, %237 : vector<8x32xf32>
    %c1_111 = arith.constant 1 : index
    %c0_112 = arith.constant 0 : index
    %c0_113 = arith.constant 0 : index
    %239 = vector.load %arg10[%c1_111, %c0_112, %c0_113] : memref<2x1x32xf32, #tpu.memory_space<vmem>>, vector<1x1x32xf32>
    %240 = vector.shape_cast %239 : vector<1x1x32xf32> to vector<1x32xf32>
    %c1_114 = arith.constant 1 : index
    %c0_115 = arith.constant 0 : index
    %c0_116 = arith.constant 0 : index
    %241 = vector.load %arg11[%c1_114, %c0_115, %c0_116] : memref<2x1x32xf32, #tpu.memory_space<vmem>>, vector<1x1x32xf32>
    %242 = vector.shape_cast %241 : vector<1x1x32xf32> to vector<1x32xf32>
    %cst_117 = arith.constant dense<0.000000e+00> : vector<8xf32>
    %243 = vector.multi_reduction <add>, %238, %cst_117 [1] : vector<8x32xf32> to vector<8xf32>
    %244 = vector.shape_cast %243 : vector<8xf32> to vector<8x1xf32>
    %cst_118 = arith.constant 3.200000e+01 : f32
    %245 = vector.broadcast %cst_118 : f32 to vector<8x1xf32>
    %246 = arith.divf %244, %245 : vector<8x1xf32>
    %247 = vector.broadcast %246 : vector<8x1xf32> to vector<8x32xf32>
    %248 = arith.subf %238, %247 : vector<8x32xf32>
    %249 = arith.mulf %248, %248 : vector<8x32xf32>
    %cst_119 = arith.constant dense<0.000000e+00> : vector<8xf32>
    %250 = vector.multi_reduction <add>, %249, %cst_119 [1] : vector<8x32xf32> to vector<8xf32>
    %251 = vector.shape_cast %250 : vector<8xf32> to vector<8x1xf32>
    %cst_120 = arith.constant 3.200000e+01 : f32
    %252 = vector.broadcast %cst_120 : f32 to vector<8x1xf32>
    %253 = arith.divf %251, %252 : vector<8x1xf32>
    %254 = vector.broadcast %246 : vector<8x1xf32> to vector<8x32xf32>
    %255 = arith.subf %238, %254 : vector<8x32xf32>
    %cst_121 = arith.constant 9.99999996E-13 : f32
    %256 = vector.broadcast %cst_121 : f32 to vector<8x1xf32>
    %257 = arith.addf %253, %256 : vector<8x1xf32>
    %258 = math.rsqrt %257 : vector<8x1xf32>
    %259 = vector.broadcast %258 : vector<8x1xf32> to vector<8x32xf32>
    %260 = arith.mulf %255, %259 : vector<8x32xf32>
    %261 = vector.broadcast %240 : vector<1x32xf32> to vector<8x32xf32>
    %262 = arith.mulf %260, %261 : vector<8x32xf32>
    %263 = vector.broadcast %242 : vector<1x32xf32> to vector<8x32xf32>
    %264 = arith.addf %262, %263 : vector<8x32xf32>
    %c1_122 = arith.constant 1 : index
    %c0_123 = arith.constant 0 : index
    %c0_124 = arith.constant 0 : index
    %265 = vector.load %arg12[%c1_122, %c0_123, %c0_124] : memref<2x32x64xf32, #tpu.memory_space<vmem>>, vector<1x32x64xf32>
    %266 = vector.shape_cast %265 : vector<1x32x64xf32> to vector<32x64xf32>
    %cst_125 = arith.constant dense<0.000000e+00> : vector<8x64xf32>
    %267 = tpu.matmul %264, %266, %cst_125 {dimension_numbers = #tpu.dot_dimension_numbers<[1], [0], [0], [1], [0, 0, 1, 1], [], []>} : vector<8x32xf32>, vector<32x64xf32>, vector<8x64xf32> -> vector<8x64xf32>
    %c1_126 = arith.constant 1 : index
    %c0_127 = arith.constant 0 : index
    %c0_128 = arith.constant 0 : index
    %268 = vector.load %arg13[%c1_126, %c0_127, %c0_128] : memref<2x1x64xf32, #tpu.memory_space<vmem>>, vector<1x1x64xf32>
    %269 = vector.shape_cast %268 : vector<1x1x64xf32> to vector<1x64xf32>
    %270 = vector.broadcast %269 : vector<1x64xf32> to vector<8x64xf32>
    %271 = arith.addf %267, %270 : vector<8x64xf32>
    %272 = arith.mulf %271, %271 : vector<8x64xf32>
    %273 = arith.mulf %271, %272 : vector<8x64xf32>
    %cst_129 = arith.constant 4.471500e-02 : f32
    %274 = vector.broadcast %cst_129 : f32 to vector<8x64xf32>
    %275 = arith.mulf %274, %273 : vector<8x64xf32>
    %276 = arith.addf %271, %275 : vector<8x64xf32>
    %cst_130 = arith.constant 0.797884583 : f32
    %277 = vector.broadcast %cst_130 : f32 to vector<8x64xf32>
    %278 = arith.mulf %277, %276 : vector<8x64xf32>
    %279 = math.tanh %278 : vector<8x64xf32>
    %cst_131 = arith.constant 1.000000e+00 : f32
    %280 = vector.broadcast %cst_131 : f32 to vector<8x64xf32>
    %281 = arith.addf %280, %279 : vector<8x64xf32>
    %cst_132 = arith.constant 5.000000e-01 : f32
    %282 = vector.broadcast %cst_132 : f32 to vector<8x64xf32>
    %283 = arith.mulf %282, %281 : vector<8x64xf32>
    %284 = arith.mulf %271, %283 : vector<8x64xf32>
    %c1_133 = arith.constant 1 : index
    %c0_134 = arith.constant 0 : index
    %c0_135 = arith.constant 0 : index
    %285 = vector.load %arg14[%c1_133, %c0_134, %c0_135] : memref<2x64x32xf32, #tpu.memory_space<vmem>>, vector<1x64x32xf32>
    %286 = vector.shape_cast %285 : vector<1x64x32xf32> to vector<64x32xf32>
    %cst_136 = arith.constant dense<0.000000e+00> : vector<8x32xf32>
    %287 = tpu.matmul %284, %286, %cst_136 {dimension_numbers = #tpu.dot_dimension_numbers<[1], [0], [0], [1], [0, 0, 1, 1], [], []>} : vector<8x64xf32>, vector<64x32xf32>, vector<8x32xf32> -> vector<8x32xf32>
    %c1_137 = arith.constant 1 : index
    %c0_138 = arith.constant 0 : index
    %c0_139 = arith.constant 0 : index
    %288 = vector.load %arg15[%c1_137, %c0_138, %c0_139] : memref<2x1x32xf32, #tpu.memory_space<vmem>>, vector<1x1x32xf32>
    %289 = vector.shape_cast %288 : vector<1x1x32xf32> to vector<1x32xf32>
    %290 = vector.broadcast %289 : vector<1x32xf32> to vector<8x32xf32>
    %291 = arith.addf %287, %290 : vector<8x32xf32>
    %292 = arith.addf %264, %291 : vector<8x32xf32>
    %c1_140 = arith.constant 1 : index
    %c0_141 = arith.constant 0 : index
    %c0_142 = arith.constant 0 : index
    %293 = vector.load %arg16[%c1_140, %c0_141, %c0_142] : memref<2x1x32xf32, #tpu.memory_space<vmem>>, vector<1x1x32xf32>
    %294 = vector.shape_cast %293 : vector<1x1x32xf32> to vector<1x32xf32>
    %c1_143 = arith.constant 1 : index
    %c0_144 = arith.constant 0 : index
    %c0_145 = arith.constant 0 : index
    %295 = vector.load %arg17[%c1_143, %c0_144, %c0_145] : memref<2x1x32xf32, #tpu.memory_space<vmem>>, vector<1x1x32xf32>
    %296 = vector.shape_cast %295 : vector<1x1x32xf32> to vector<1x32xf32>
    %cst_146 = arith.constant dense<0.000000e+00> : vector<8xf32>
    %297 = vector.multi_reduction <add>, %292, %cst_146 [1] : vector<8x32xf32> to vector<8xf32>
    %298 = vector.shape_cast %297 : vector<8xf32> to vector<8x1xf32>
    %cst_147 = arith.constant 3.200000e+01 : f32
    %299 = vector.broadcast %cst_147 : f32 to vector<8x1xf32>
    %300 = arith.divf %298, %299 : vector<8x1xf32>
    %301 = vector.broadcast %300 : vector<8x1xf32> to vector<8x32xf32>
    %302 = arith.subf %292, %301 : vector<8x32xf32>
    %303 = arith.mulf %302, %302 : vector<8x32xf32>
    %cst_148 = arith.constant dense<0.000000e+00> : vector<8xf32>
    %304 = vector.multi_reduction <add>, %303, %cst_148 [1] : vector<8x32xf32> to vector<8xf32>
    %305 = vector.shape_cast %304 : vector<8xf32> to vector<8x1xf32>
    %cst_149 = arith.constant 3.200000e+01 : f32
    %306 = vector.broadcast %cst_149 : f32 to vector<8x1xf32>
    %307 = arith.divf %305, %306 : vector<8x1xf32>
    %308 = vector.broadcast %300 : vector<8x1xf32> to vector<8x32xf32>
    %309 = arith.subf %292, %308 : vector<8x32xf32>
    %cst_150 = arith.constant 9.99999996E-13 : f32
    %310 = vector.broadcast %cst_150 : f32 to vector<8x1xf32>
    %311 = arith.addf %307, %310 : vector<8x1xf32>
    %312 = math.rsqrt %311 : vector<8x1xf32>
    %313 = vector.broadcast %312 : vector<8x1xf32> to vector<8x32xf32>
    %314 = arith.mulf %309, %313 : vector<8x32xf32>
    %315 = vector.broadcast %294 : vector<1x32xf32> to vector<8x32xf32>
    %316 = arith.mulf %314, %315 : vector<8x32xf32>
    %317 = vector.broadcast %296 : vector<1x32xf32> to vector<8x32xf32>
    %318 = arith.addf %316, %317 : vector<8x32xf32>
    %cst_151 = arith.constant dense<0.000000e+00> : vector<1x32xf32>
    %319 = tpu.matmul %2, %318, %cst_151 {dimension_numbers = #tpu.dot_dimension_numbers<[1], [0], [0], [1], [0, 0, 1, 1], [], []>} : vector<1x8xf32>, vector<8x32xf32>, vector<1x32xf32> -> vector<1x32xf32>
    %320 = vector.broadcast %12 : f32 to vector<1x32xf32>
    %321 = arith.mulf %319, %320 : vector<1x32xf32>
    %c0_152 = arith.constant 0 : index
    %c0_153 = arith.constant 0 : index
    %322 = vector.load %arg18[%c0_152, %c0_153] : memref<32x128xf32, #tpu.memory_space<vmem>>, vector<32x128xf32>
    %cst_154 = arith.constant dense<0.000000e+00> : vector<1x128xf32>
    %323 = tpu.matmul %321, %322, %cst_154 {dimension_numbers = #tpu.dot_dimension_numbers<[1], [0], [0], [1], [0, 0, 1, 1], [], []>} : vector<1x32xf32>, vector<32x128xf32>, vector<1x128xf32> -> vector<1x128xf32>
    %c0_155 = arith.constant 0 : index
    %c0_156 = arith.constant 0 : index
    %324 = vector.load %arg19[%c0_155, %c0_156] : memref<1x128xf32, #tpu.memory_space<vmem>>, vector<1x128xf32>
    %325 = arith.addf %323, %324 : vector<1x128xf32>
    %c0_157 = arith.constant 0 : index
    %c0_158 = arith.constant 0 : index
    %c0_159 = arith.constant 0 : index
    %326 = vector.load %arg20[%c0_157, %c0_158, %c0_159] : memref<1x1x128xf32, #tpu.memory_space<vmem>>, vector<1x1x128xf32>
    %327 = vector.shape_cast %326 : vector<1x1x128xf32> to vector<1x128xf32>
    %328 = vector.shape_cast %325 : vector<1x128xf32> to vector<1x1x128xf32>
    tpu.vector_store %arg20[%c0_157, %c0_158, %c0_159], %328 {strides = array<i32>} : memref<1x1x128xf32, #tpu.memory_space<vmem>>, vector<1x1x128xf32>,
    return
  }
  func.func @transform_0(%arg0: i32) -> (i32, i32, i32) {
    %c0_i32 = arith.constant 0 : i32
    %c0_i32_0 = arith.constant 0 : i32
    %c0_i32_1 = arith.constant 0 : i32
    return %arg0, %c0_i32, %c0_i32_0 : i32, i32, i32
  }
  func.func @transform_1(%arg0: i32) -> (i32, i32, i32) {
    %c0_i32 = arith.constant 0 : i32
    %c0_i32_0 = arith.constant 0 : i32
    %c0_i32_1 = arith.constant 0 : i32
    return %arg0, %c0_i32, %c0_i32_0 : i32, i32, i32
  }
  func.func @transform_2(%arg0: i32) -> (i32, i32) {
    %c0_i32 = arith.constant 0 : i32
    %c0_i32_0 = arith.constant 0 : i32
    %c0_i32_1 = arith.constant 0 : i32
    return %c0_i32, %c0_i32_0 : i32, i32
  }
  func.func @transform_3(%arg0: i32) -> (i32, i32) {
    %c0_i32 = arith.constant 0 : i32
    %c0_i32_0 = arith.constant 0 : i32
    %c0_i32_1 = arith.constant 0 : i32
    return %c0_i32, %c0_i32_0 : i32, i32
  }
  func.func @transform_4(%arg0: i32) -> (i32, i32) {
    %c0_i32 = arith.constant 0 : i32
    %c0_i32_0 = arith.constant 0 : i32
    %c0_i32_1 = arith.constant 0 : i32
    return %c0_i32, %c0_i32_0 : i32, i32
  }
  func.func @transform_5(%arg0: i32) -> (i32, i32, i32) {
    %c0_i32 = arith.constant 0 : i32
    %c0_i32_0 = arith.constant 0 : i32
    %c0_i32_1 = arith.constant 0 : i32
    %c0_i32_2 = arith.constant 0 : i32
    return %c0_i32, %c0_i32_0, %c0_i32_1 : i32, i32, i32
  }
  func.func @transform_6(%arg0: i32) -> (i32, i32, i32) {
    %c0_i32 = arith.constant 0 : i32
    %c0_i32_0 = arith.constant 0 : i32
    %c0_i32_1 = arith.constant 0 : i32
    %c0_i32_2 = arith.constant 0 : i32
    return %c0_i32, %c0_i32_0, %c0_i32_1 : i32, i32, i32
  }
  func.func @transform_7(%arg0: i32) -> (i32, i32, i32) {
    %c0_i32 = arith.constant 0 : i32
    %c0_i32_0 = arith.constant 0 : i32
    %c0_i32_1 = arith.constant 0 : i32
    %c0_i32_2 = arith.constant 0 : i32
    return %c0_i32, %c0_i32_0, %c0_i32_1 : i32, i32, i32
  }
  func.func @transform_8(%arg0: i32) -> (i32, i32, i32) {
    %c0_i32 = arith.constant 0 : i32
    %c0_i32_0 = arith.constant 0 : i32
    %c0_i32_1 = arith.constant 0 : i32
    %c0_i32_2 = arith.constant 0 : i32
    return %c0_i32, %c0_i32_0, %c0_i32_1 : i32, i32, i32
  }
  func.func @transform_9(%arg0: i32) -> (i32, i32, i32) {
    %c0_i32 = arith.constant 0 : i32
    %c0_i32_0 = arith.constant 0 : i32
    %c0_i32_1 = arith.constant 0 : i32
    %c0_i32_2 = arith.constant 0 : i32
    return %c0_i32, %c0_i32_0, %c0_i32_1 : i32, i32, i32
  }
  func.func @transform_10(%arg0: i32) -> (i32, i32, i32) {
    %c0_i32 = arith.constant 0 : i32
    %c0_i32_0 = arith.constant 0 : i32
    %c0_i32_1 = arith.constant 0 : i32
    %c0_i32_2 = arith.constant 0 : i32
    return %c0_i32, %c0_i32_0, %c0_i32_1 : i32, i32, i32
  }
  func.func @transform_11(%arg0: i32) -> (i32, i32, i32) {
    %c0_i32 = arith.constant 0 : i32
    %c0_i32_0 = arith.constant 0 : i32
    %c0_i32_1 = arith.constant 0 : i32
    %c0_i32_2 = arith.constant 0 : i32
    return %c0_i32, %c0_i32_0, %c0_i32_1 : i32, i32, i32
  }
  func.func @transform_12(%arg0: i32) -> (i32, i32, i32) {
    %c0_i32 = arith.constant 0 : i32
    %c0_i32_0 = arith.constant 0 : i32
    %c0_i32_1 = arith.constant 0 : i32
    %c0_i32_2 = arith.constant 0 : i32
    return %c0_i32, %c0_i32_0, %c0_i32_1 : i32, i32, i32
  }
  func.func @transform_13(%arg0: i32) -> (i32, i32, i32) {
    %c0_i32 = arith.constant 0 : i32
    %c0_i32_0 = arith.constant 0 : i32
    %c0_i32_1 = arith.constant 0 : i32
    %c0_i32_2 = arith.constant 0 : i32
    return %c0_i32, %c0_i32_0, %c0_i32_1 : i32, i32, i32
  }
  func.func @transform_14(%arg0: i32) -> (i32, i32, i32) {
    %c0_i32 = arith.constant 0 : i32
    %c0_i32_0 = arith.constant 0 : i32
    %c0_i32_1 = arith.constant 0 : i32
    %c0_i32_2 = arith.constant 0 : i32
    return %c0_i32, %c0_i32_0, %c0_i32_1 : i32, i32, i32
  }
  func.func @transform_15(%arg0: i32) -> (i32, i32, i32) {
    %c0_i32 = arith.constant 0 : i32
    %c0_i32_0 = arith.constant 0 : i32
    %c0_i32_1 = arith.constant 0 : i32
    %c0_i32_2 = arith.constant 0 : i32
    return %c0_i32, %c0_i32_0, %c0_i32_1 : i32, i32, i32
  }
  func.func @transform_16(%arg0: i32) -> (i32, i32, i32) {
    %c0_i32 = arith.constant 0 : i32
    %c0_i32_0 = arith.constant 0 : i32
    %c0_i32_1 = arith.constant 0 : i32
    %c0_i32_2 = arith.constant 0 : i32
    return %c0_i32, %c0_i32_0, %c0_i32_1 : i32, i32, i32
  }
  func.func @transform_17(%arg0: i32) -> (i32, i32) {
    %c0_i32 = arith.constant 0 : i32
    %c0_i32_0 = arith.constant 0 : i32
    %c0_i32_1 = arith.constant 0 : i32
    return %c0_i32, %c0_i32_0 : i32, i32
  }
  func.func @transform_18(%arg0: i32) -> (i32, i32) {
    %c0_i32 = arith.constant 0 : i32
    %c0_i32_0 = arith.constant 0 : i32
    %c0_i32_1 = arith.constant 0 : i32
    return %c0_i32, %c0_i32_0 : i32, i32
  }
  func.func @transform_19(%arg0: i32) -> (i32, i32, i32) {
    %c0_i32 = arith.constant 0 : i32
    %c0_i32_0 = arith.constant 0 : i32
    %c0_i32_1 = arith.constant 0 : i32
    return %arg0, %c0_i32, %c0_i32_0 : i32, i32, i32
  }
}

</mosaic_0001>

<llo_original>
// kernel: custom_model_forward.1
$region0: #{custom_model_forward.1}
  #allocation0 [shape = 'u32[]', space=smem, size = 0x4, offset = 0x4, fixed_abs, tag = 'smem constant byte address 0x4 - core index']
  #allocation1 [shape = 'u32[144,128]{1,0:T(1,128)}', space=vmem, size = 0x12000, scoped, tag = 'internal scratch']
  %s0 = inlined_call_operand.vmem [shape: f32[2,8,32], index: 0, kind: input, shape index: {}]
  %s1 = inlined_call_operand.vmem [shape: s32[2,1,8], index: 1, kind: input, shape index: {}]
  %s2 = inlined_call_operand.vmem [shape: f32[8,32], index: 2, kind: input, shape index: {}]
  %s3 = inlined_call_operand.vmem [shape: f32[1,32], index: 3, kind: input, shape index: {}]
  %s4 = inlined_call_operand.vmem [shape: f32[1,32], index: 4, kind: input, shape index: {}]
  %s5 = inlined_call_operand.vmem [shape: f32[2,32,96], index: 5, kind: input, shape index: {}]
  %s6 = inlined_call_operand.vmem [shape: f32[2,1,96], index: 6, kind: input, shape index: {}]
  %s7 = inlined_call_operand.vmem [shape: f32[2,32,32], index: 7, kind: input, shape index: {}]
  %s8 = inlined_call_operand.vmem [shape: f32[2,1,32], index: 8, kind: input, shape index: {}]
  %s9 = inlined_call_operand.vmem [shape: f32[2,1,32], index: 9, kind: input, shape index: {}]
  %s10 = inlined_call_operand.vmem [shape: f32[2,1,32], index: 10, kind: input, shape index: {}]
  %s11 = inlined_call_operand.vmem [shape: f32[2,32,64], index: 11, kind: input, shape index: {}]
  %s12 = inlined_call_operand.vmem [shape: f32[2,1,64], index: 12, kind: input, shape index: {}]
  %s13 = inlined_call_operand.vmem [shape: f32[2,64,32], index: 13, kind: input, shape index: {}]
  %s14 = inlined_call_operand.vmem [shape: f32[2,1,32], index: 14, kind: input, shape index: {}]
  %s15 = inlined_call_operand.vmem [shape: f32[2,1,32], index: 15, kind: input, shape index: {}]
  %s16 = inlined_call_operand.vmem [shape: f32[2,1,32], index: 16, kind: input, shape index: {}]
  %s17 = inlined_call_operand.vmem [shape: f32[32,128], index: 17, kind: input, shape index: {}]
  %s18 = inlined_call_operand.vmem [shape: f32[1,128], index: 18, kind: input, shape index: {}]
  %s19 = inlined_call_operand.hbm [shape: f32[2,1,128], index: 19, kind: output, shape index: {}]
  %s20 = sld [smem:[#allocation0]]
  $region109: #{custom_model_forward.1} parent=0
    _
  %s22 = ssub.s32 1, %s20
  %s23 = scalar_select 0, %s22, %s20
  $region1: #{custom_model_forward.1} parent=0
    #allocation2 [shape = 'u8[1024]{0}', space=vmem, size = 0x400, scoped, tag = 'output window, operand 0']
    #allocation3 [shape = 's32[2]{0}', space=sflag, size = 0x8, scoped, tag = 'scoped memory for custom_model_forward.1']
    %24 = vsyncpa [#allocation3], 0
    %s25 = scalar_lea.sflag [#allocation3], 1
    %26 = vsyncpa %s25, 0
    loop: start=0, step=1, limit=4
    $region2: #{custom_model_forward.1} parent=1 // loop_pre_header
      _
    $region3: #{custom_model_forward.1} parent=1 // loop_header
      %s28 = sphi 0, %s32
      %p29 = scmp.ge.s32.totalorder %s28, 4
      %s38 = sphi 0, %s40
      %s41 = sphi 0, %s38
      %s42 = sphi 0, %s41
      %s58 = sphi 0, %s42
      %s64 = sphi 0, %s66
      %s67 = sphi 0, %s64
      %s68 = sphi 0, %s67
      %s84 = sphi 0, %s68
      %s88 = sphi 0, %s88
      %s90 = sphi 0, %s88
      %s91 = sphi 0, %s90
      %s105 = sphi 0, %s91
      %s109 = sphi 0, %s109
      %s111 = sphi 0, %s109
      %s112 = sphi 0, %s111
      %s126 = sphi 0, %s112
      %s130 = sphi 0, %s130
      %s132 = sphi 0, %s130
      %s133 = sphi 0, %s132
      %s147 = sphi 0, %s133
      %s151 = sphi 0, %s151
      %s153 = sphi 0, %s151
      %s154 = sphi 0, %s153
      %s168 = sphi 0, %s154
      %s172 = sphi 0, %s172
      %s174 = sphi 0, %s172
      %s175 = sphi 0, %s174
      %s189 = sphi 0, %s175
      %s193 = sphi 0, %s193
      %s195 = sphi 0, %s193
      %s196 = sphi 0, %s195
      %s210 = sphi 0, %s196
      %s214 = sphi 0, %s214
      %s216 = sphi 0, %s214
      %s217 = sphi 0, %s216
      %s231 = sphi 0, %s217
      %s235 = sphi 0, %s235
      %s237 = sphi 0, %s235
      %s238 = sphi 0, %s237
      %s252 = sphi 0, %s238
      %s256 = sphi 0, %s256
      %s258 = sphi 0, %s256
      %s259 = sphi 0, %s258
      %s273 = sphi 0, %s259
      %s277 = sphi 0, %s277
      %s279 = sphi 0, %s277
      %s280 = sphi 0, %s279
      %s294 = sphi 0, %s280
      %s298 = sphi 0, %s298
      %s300 = sphi 0, %s298
      %s301 = sphi 0, %s300
      %s315 = sphi 0, %s301
      %s319 = sphi 0, %s319
      %s321 = sphi 0, %s319
      %s322 = sphi 0, %s321
      %s336 = sphi 0, %s322
      %s340 = sphi 0, %s340
      %s342 = sphi 0, %s340
      %s343 = sphi 0, %s342
      %s357 = sphi 0, %s343
      %s361 = sphi 0, %s361
      %s363 = sphi 0, %s361
      %s364 = sphi 0, %s363
      %s378 = sphi 0, %s364
      %s382 = sphi 0, %s382
      %s384 = sphi 0, %s382
      %s385 = sphi 0, %s384
      %s399 = sphi 0, %s385
      %s403 = sphi 0, %s403
      %s405 = sphi 0, %s403
      %s406 = sphi 0, %s405
      %s420 = sphi 0, %s406
      %s424 = sphi 0, %s424
      %s426 = sphi 0, %s424
      %s427 = sphi 0, %s426
      %s441 = sphi 0, %s427
      %s447 = sphi 0, %s449
      %s450 = sphi 0, %s447
      %s451 = sphi 0, %s450
      %s467 = sphi 0, %s451
    $region4: #{custom_model_forward.1} parent=1 // loop_header_branch
      %31 = sbr.rel (%p29) target = $region8
    $region5: #{custom_model_forward.1} parent=1 // loop_body
      %s33 = ssub.s32 %s28, 1
      %s34 = ssub.s32 %s28, 2
      %s35 = sadd.s32 %s28, 1
      %s36 = ssub.s32 %s28, %s35
      %p37 = scmp.eq.s32.totalorder %s36, 0
      %s39 = sadd.s32 %s38, 1
      %s40 = scalar_select %p37, %s38, %s39
      %p43 = pneg %p37
      %p44 = scmp.eq.s32.totalorder %s28, 1
      %p45 = por %p43, %p44
      %p46 = scmp.ne.s32.totalorder %s38, %s41
      %p47 = scmp.eq.s32.totalorder %s28, 0
      %p48 = por %p46, %p47
      %p49 = scmp.ne.s32.totalorder %s38, %s41
      %p50 = scmp.eq.s32.totalorder %s33, 1
      %p51 = por %p49, %p50
      %p52 = scmp.ne.s32.totalorder %s41, %s42
      %p53 = scmp.eq.s32.totalorder %s33, 0
      %p54 = por %p52, %p53
      %p55 = scmp.ne.s32.totalorder %s41, %s42
      %p56 = scmp.eq.s32.totalorder %s34, 1
      %p57 = por %p55, %p56
      %p59 = scmp.ne.s32.totalorder %s42, %s58
      %p60 = scmp.eq.s32.totalorder %s34, 0
      %p61 = por %p59, %p60
      %s62 = ssub.s32 %s28, %s35
      %p63 = scmp.eq.s32.totalorder %s62, 0
      %s65 = sadd.s32 %s64, 1
      %s66 = scalar_select %p63, %s64, %s65
      %p69 = pneg %p63
      %p70 = scmp.eq.s32.totalorder %s28, 1
      %p71 = por %p69, %p70
      %p72 = scmp.ne.s32.totalorder %s64, %s67
      %p73 = scmp.eq.s32.totalorder %s28, 0
      %p74 = por %p72, %p73
      %p75 = scmp.ne.s32.totalorder %s64, %s67
      %p76 = scmp.eq.s32.totalorder %s33, 1
      %p77 = por %p75, %p76
      %p78 = scmp.ne.s32.totalorder %s67, %s68
      %p79 = scmp.eq.s32.totalorder %s33, 0
      %p80 = por %p78, %p79
      %p81 = scmp.ne.s32.totalorder %s67, %s68
      %p82 = scmp.eq.s32.totalorder %s34, 1
      %p83 = por %p81, %p82
      %p85 = scmp.ne.s32.totalorder %s68, %s84
      %p86 = scmp.eq.s32.totalorder %s34, 0
      %p87 = por %p85, %p86
      %s89 = sadd.s32 %s88, 1
      %p92 = scmp.eq.s32.totalorder %s28, 1
      %p93 = scmp.ne.s32.totalorder %s88, %s90
      %p94 = scmp.eq.s32.totalorder %s28, 0
      %p95 = por %p93, %p94
      %p96 = scmp.ne.s32.totalorder %s88, %s90
      %p97 = scmp.eq.s32.totalorder %s33, 1
      %p98 = por %p96, %p97
      %p99 = scmp.ne.s32.totalorder %s90, %s91
      %p100 = scmp.eq.s32.totalorder %s33, 0
      %p101 = por %p99, %p100
      %p102 = scmp.ne.s32.totalorder %s90, %s91
      %p103 = scmp.eq.s32.totalorder %s34, 1
      %p104 = por %p102, %p103
      %p106 = scmp.ne.s32.totalorder %s91, %s105
      %p107 = scmp.eq.s32.totalorder %s34, 0
      %p108 = por %p106, %p107
      %s110 = sadd.s32 %s109, 1
      %p113 = scmp.eq.s32.totalorder %s28, 1
      %p114 = scmp.ne.s32.totalorder %s109, %s111
      %p115 = scmp.eq.s32.totalorder %s28, 0
      %p116 = por %p114, %p115
      %p117 = scmp.ne.s32.totalorder %s109, %s111
      %p118 = scmp.eq.s32.totalorder %s33, 1
      %p119 = por %p117, %p118
      %p120 = scmp.ne.s32.totalorder %s111, %s112
      %p121 = scmp.eq.s32.totalorder %s33, 0
      %p122 = por %p120, %p121
      %p123 = scmp.ne.s32.totalorder %s111, %s112
      %p124 = scmp.eq.s32.totalorder %s34, 1
      %p125 = por %p123, %p124
      %p127 = scmp.ne.s32.totalorder %s112, %s126
      %p128 = scmp.eq.s32.totalorder %s34, 0
      %p129 = por %p127, %p128
      %s131 = sadd.s32 %s130, 1
      %p134 = scmp.eq.s32.totalorder %s28, 1
      %p135 = scmp.ne.s32.totalorder %s130, %s132
      %p136 = scmp.eq.s32.totalorder %s28, 0
      %p137 = por %p135, %p136
      %p138 = scmp.ne.s32.totalorder %s130, %s132
      %p139 = scmp.eq.s32.totalorder %s33, 1
      %p140 = por %p138, %p139
      %p141 = scmp.ne.s32.totalorder %s132, %s133
      %p142 = scmp.eq.s32.totalorder %s33, 0
      %p143 = por %p141, %p142
      %p144 = scmp.ne.s32.totalorder %s132, %s133
      %p145 = scmp.eq.s32.totalorder %s34, 1
      %p146 = por %p144, %p145
      %p148 = scmp.ne.s32.totalorder %s133, %s147
      %p149 = scmp.eq.s32.totalorder %s34, 0
      %p150 = por %p148, %p149
      %s152 = sadd.s32 %s151, 1
      %p155 = scmp.eq.s32.totalorder %s28, 1
      %p156 = scmp.ne.s32.totalorder %s151, %s153
      %p157 = scmp.eq.s32.totalorder %s28, 0
      %p158 = por %p156, %p157
      %p159 = scmp.ne.s32.totalorder %s151, %s153
      %p160 = scmp.eq.s32.totalorder %s33, 1
      %p161 = por %p159, %p160
      %p162 = scmp.ne.s32.totalorder %s153, %s154
      %p163 = scmp.eq.s32.totalorder %s33, 0
      %p164 = por %p162, %p163
      %p165 = scmp.ne.s32.totalorder %s153, %s154
      %p166 = scmp.eq.s32.totalorder %s34, 1
      %p167 = por %p165, %p166
      %p169 = scmp.ne.s32.totalorder %s154, %s168
      %p170 = scmp.eq.s32.totalorder %s34, 0
      %p171 = por %p169, %p170
      %s173 = sadd.s32 %s172, 1
      %p176 = scmp.eq.s32.totalorder %s28, 1
      %p177 = scmp.ne.s32.totalorder %s172, %s174
      %p178 = scmp.eq.s32.totalorder %s28, 0
      %p179 = por %p177, %p178
      %p180 = scmp.ne.s32.totalorder %s172, %s174
      %p181 = scmp.eq.s32.totalorder %s33, 1
      %p182 = por %p180, %p181
      %p183 = scmp.ne.s32.totalorder %s174, %s175
      %p184 = scmp.eq.s32.totalorder %s33, 0
      %p185 = por %p183, %p184
      %p186 = scmp.ne.s32.totalorder %s174, %s175
      %p187 = scmp.eq.s32.totalorder %s34, 1
      %p188 = por %p186, %p187
      %p190 = scmp.ne.s32.totalorder %s175, %s189
      %p191 = scmp.eq.s32.totalorder %s34, 0
      %p192 = por %p190, %p191
      %s194 = sadd.s32 %s193, 1
      %p197 = scmp.eq.s32.totalorder %s28, 1
      %p198 = scmp.ne.s32.totalorder %s193, %s195
      %p199 = scmp.eq.s32.totalorder %s28, 0
      %p200 = por %p198, %p199
      %p201 = scmp.ne.s32.totalorder %s193, %s195
      %p202 = scmp.eq.s32.totalorder %s33, 1
      %p203 = por %p201, %p202
      %p204 = scmp.ne.s32.totalorder %s195, %s196
      %p205 = scmp.eq.s32.totalorder %s33, 0
      %p206 = por %p204, %p205
      %p207 = scmp.ne.s32.totalorder %s195, %s196
      %p208 = scmp.eq.s32.totalorder %s34, 1
      %p209 = por %p207, %p208
      %p211 = scmp.ne.s32.totalorder %s196, %s210
      %p212 = scmp.eq.s32.totalorder %s34, 0
      %p213 = por %p211, %p212
      %s215 = sadd.s32 %s214, 1
      %p218 = scmp.eq.s32.totalorder %s28, 1
      %p219 = scmp.ne.s32.totalorder %s214, %s216
      %p220 = scmp.eq.s32.totalorder %s28, 0
      %p221 = por %p219, %p220
      %p222 = scmp.ne.s32.totalorder %s214, %s216
      %p223 = scmp.eq.s32.totalorder %s33, 1
      %p224 = por %p222, %p223
      %p225 = scmp.ne.s32.totalorder %s216, %s217
      %p226 = scmp.eq.s32.totalorder %s33, 0
      %p227 = por %p225, %p226
      %p228 = scmp.ne.s32.totalorder %s216, %s217
      %p229 = scmp.eq.s32.totalorder %s34, 1
      %p230 = por %p228, %p229
      %p232 = scmp.ne.s32.totalorder %s217, %s231
      %p233 = scmp.eq.s32.totalorder %s34, 0
      %p234 = por %p232, %p233
      %s236 = sadd.s32 %s235, 1
      %p239 = scmp.eq.s32.totalorder %s28, 1
      %p240 = scmp.ne.s32.totalorder %s235, %s237
      %p241 = scmp.eq.s32.totalorder %s28, 0
      %p242 = por %p240, %p241
      %p243 = scmp.ne.s32.totalorder %s235, %s237
      %p244 = scmp.eq.s32.totalorder %s33, 1
      %p245 = por %p243, %p244
      %p246 = scmp.ne.s32.totalorder %s237, %s238
      %p247 = scmp.eq.s32.totalorder %s33, 0
      %p248 = por %p246, %p247
      %p249 = scmp.ne.s32.totalorder %s237, %s238
      %p250 = scmp.eq.s32.totalorder %s34, 1
      %p251 = por %p249, %p250
      %p253 = scmp.ne.s32.totalorder %s238, %s252
      %p254 = scmp.eq.s32.totalorder %s34, 0
      %p255 = por %p253, %p254
      %s257 = sadd.s32 %s256, 1
      %p260 = scmp.eq.s32.totalorder %s28, 1
      %p261 = scmp.ne.s32.totalorder %s256, %s258
      %p262 = scmp.eq.s32.totalorder %s28, 0
      %p263 = por %p261, %p262
      %p264 = scmp.ne.s32.totalorder %s256, %s258
      %p265 = scmp.eq.s32.totalorder %s33, 1
      %p266 = por %p264, %p265
      %p267 = scmp.ne.s32.totalorder %s258, %s259
      %p268 = scmp.eq.s32.totalorder %s33, 0
      %p269 = por %p267, %p268
      %p270 = scmp.ne.s32.totalorder %s258, %s259
      %p271 = scmp.eq.s32.totalorder %s34, 1
      %p272 = por %p270, %p271
      %p274 = scmp.ne.s32.totalorder %s259, %s273
      %p275 = scmp.eq.s32.totalorder %s34, 0
      %p276 = por %p274, %p275
      %s278 = sadd.s32 %s277, 1
      %p281 = scmp.eq.s32.totalorder %s28, 1
      %p282 = scmp.ne.s32.totalorder %s277, %s279
      %p283 = scmp.eq.s32.totalorder %s28, 0
      %p284 = por %p282, %p283
      %p285 = scmp.ne.s32.totalorder %s277, %s279
      %p286 = scmp.eq.s32.totalorder %s33, 1
      %p287 = por %p285, %p286
      %p288 = scmp.ne.s32.totalorder %s279, %s280
      %p289 = scmp.eq.s32.totalorder %s33, 0
      %p290 = por %p288, %p289
      %p291 = scmp.ne.s32.totalorder %s279, %s280
      %p292 = scmp.eq.s32.totalorder %s34, 1
      %p293 = por %p291, %p292
      %p295 = scmp.ne.s32.totalorder %s280, %s294
      %p296 = scmp.eq.s32.totalorder %s34, 0
      %p297 = por %p295, %p296
      %s299 = sadd.s32 %s298, 1
      %p302 = scmp.eq.s32.totalorder %s28, 1
      %p303 = scmp.ne.s32.totalorder %s298, %s300
      %p304 = scmp.eq.s32.totalorder %s28, 0
      %p305 = por %p303, %p304
      %p306 = scmp.ne.s32.totalorder %s298, %s300
      %p307 = scmp.eq.s32.totalorder %s33, 1
      %p308 = por %p306, %p307
      %p309 = scmp.ne.s32.totalorder %s300, %s301
      %p310 = scmp.eq.s32.totalorder %s33, 0
      %p311 = por %p309, %p310
      %p312 = scmp.ne.s32.totalorder %s300, %s301
      %p313 = scmp.eq.s32.totalorder %s34, 1
      %p314 = por %p312, %p313
      %p316 = scmp.ne.s32.totalorder %s301, %s315
      %p317 = scmp.eq.s32.totalorder %s34, 0
      %p318 = por %p316, %p317
      %s320 = sadd.s32 %s319, 1
      %p323 = scmp.eq.s32.totalorder %s28, 1
      %p324 = scmp.ne.s32.totalorder %s319, %s321
      %p325 = scmp.eq.s32.totalorder %s28, 0
      %p326 = por %p324, %p325
      %p327 = scmp.ne.s32.totalorder %s319, %s321
      %p328 = scmp.eq.s32.totalorder %s33, 1
      %p329 = por %p327, %p328
      %p330 = scmp.ne.s32.totalorder %s321, %s322
      %p331 = scmp.eq.s32.totalorder %s33, 0
      %p332 = por %p330, %p331
      %p333 = scmp.ne.s32.totalorder %s321, %s322
      %p334 = scmp.eq.s32.totalorder %s34, 1
      %p335 = por %p333, %p334
      %p337 = scmp.ne.s32.totalorder %s322, %s336
      %p338 = scmp.eq.s32.totalorder %s34, 0
      %p339 = por %p337, %p338
      %s341 = sadd.s32 %s340, 1
      %p344 = scmp.eq.s32.totalorder %s28, 1
      %p345 = scmp.ne.s32.totalorder %s340, %s342
      %p346 = scmp.eq.s32.totalorder %s28, 0
      %p347 = por %p345, %p346
      %p348 = scmp.ne.s32.totalorder %s340, %s342
      %p349 = scmp.eq.s32.totalorder %s33, 1
      %p350 = por %p348, %p349
      %p351 = scmp.ne.s32.totalorder %s342, %s343
      %p352 = scmp.eq.s32.totalorder %s33, 0
      %p353 = por %p351, %p352
      %p354 = scmp.ne.s32.totalorder %s342, %s343
      %p355 = scmp.eq.s32.totalorder %s34, 1
      %p356 = por %p354, %p355
      %p358 = scmp.ne.s32.totalorder %s343, %s357
      %p359 = scmp.eq.s32.totalorder %s34, 0
      %p360 = por %p358, %p359
      %s362 = sadd.s32 %s361, 1
      %p365 = scmp.eq.s32.totalorder %s28, 1
      %p366 = scmp.ne.s32.totalorder %s361, %s363
      %p367 = scmp.eq.s32.totalorder %s28, 0
      %p368 = por %p366, %p367
      %p369 = scmp.ne.s32.totalorder %s361, %s363
      %p370 = scmp.eq.s32.totalorder %s33, 1
      %p371 = por %p369, %p370
      %p372 = scmp.ne.s32.totalorder %s363, %s364
      %p373 = scmp.eq.s32.totalorder %s33, 0
      %p374 = por %p372, %p373
      %p375 = scmp.ne.s32.totalorder %s363, %s364
      %p376 = scmp.eq.s32.totalorder %s34, 1
      %p377 = por %p375, %p376
      %p379 = scmp.ne.s32.totalorder %s364, %s378
      %p380 = scmp.eq.s32.totalorder %s34, 0
      %p381 = por %p379, %p380
      %s383 = sadd.s32 %s382, 1
      %p386 = scmp.eq.s32.totalorder %s28, 1
      %p387 = scmp.ne.s32.totalorder %s382, %s384
      %p388 = scmp.eq.s32.totalorder %s28, 0
      %p389 = por %p387, %p388
      %p390 = scmp.ne.s32.totalorder %s382, %s384
      %p391 = scmp.eq.s32.totalorder %s33, 1
      %p392 = por %p390, %p391
      %p393 = scmp.ne.s32.totalorder %s384, %s385
      %p394 = scmp.eq.s32.totalorder %s33, 0
      %p395 = por %p393, %p394
      %p396 = scmp.ne.s32.totalorder %s384, %s385
      %p397 = scmp.eq.s32.totalorder %s34, 1
      %p398 = por %p396, %p397
      %p400 = scmp.ne.s32.totalorder %s385, %s399
      %p401 = scmp.eq.s32.totalorder %s34, 0
      %p402 = por %p400, %p401
      %s404 = sadd.s32 %s403, 1
      %p407 = scmp.eq.s32.totalorder %s28, 1
      %p408 = scmp.ne.s32.totalorder %s403, %s405
      %p409 = scmp.eq.s32.totalorder %s28, 0
      %p410 = por %p408, %p409
      %p411 = scmp.ne.s32.totalorder %s403, %s405
      %p412 = scmp.eq.s32.totalorder %s33, 1
      %p413 = por %p411, %p412
      %p414 = scmp.ne.s32.totalorder %s405, %s406
      %p415 = scmp.eq.s32.totalorder %s33, 0
      %p416 = por %p414, %p415
      %p417 = scmp.ne.s32.totalorder %s405, %s406
      %p418 = scmp.eq.s32.totalorder %s34, 1
      %p419 = por %p417, %p418
      %p421 = scmp.ne.s32.totalorder %s406, %s420
      %p422 = scmp.eq.s32.totalorder %s34, 0
      %p423 = por %p421, %p422
      %s425 = sadd.s32 %s424, 1
      %p428 = scmp.eq.s32.totalorder %s28, 1
      %p429 = scmp.ne.s32.totalorder %s424, %s426
      %p430 = scmp.eq.s32.totalorder %s28, 0
      %p431 = por %p429, %p430
      %p432 = scmp.ne.s32.totalorder %s424, %s426
      %p433 = scmp.eq.s32.totalorder %s33, 1
      %p434 = por %p432, %p433
      %p435 = scmp.ne.s32.totalorder %s426, %s427
      %p436 = scmp.eq.s32.totalorder %s33, 0
      %p437 = por %p435, %p436
      %p438 = scmp.ne.s32.totalorder %s426, %s427
      %p439 = scmp.eq.s32.totalorder %s34, 1
      %p440 = por %p438, %p439
      %p442 = scmp.ne.s32.totalorder %s427, %s441
      %p443 = scmp.eq.s32.totalorder %s34, 0
      %p444 = por %p442, %p443
      %s445 = ssub.s32 %s28, %s35
      %p446 = scmp.eq.s32.totalorder %s445, 0
      %s448 = sadd.s32 %s447, 1
      %s449 = scalar_select %p446, %s447, %s448
      %p452 = pneg %p446
      %p453 = scmp.eq.s32.totalorder %s28, 1
      %p454 = por %p452, %p453
      %p455 = scmp.ne.s32.totalorder %s447, %s450
      %p456 = scmp.eq.s32.totalorder %s28, 0
      %p457 = por %p455, %p456
      %p458 = scmp.ne.s32.totalorder %s447, %s450
      %p459 = scmp.eq.s32.totalorder %s33, 1
      %p460 = por %p458, %p459
      %p461 = scmp.ne.s32.totalorder %s450, %s451
      %p462 = scmp.eq.s32.totalorder %s33, 0
      %p463 = por %p461, %p462
      %p464 = scmp.ne.s32.totalorder %s450, %s451
      %p465 = scmp.eq.s32.totalorder %s34, 1
      %p466 = por %p464, %p465
      %p468 = scmp.ne.s32.totalorder %s451, %s467
      %p469 = scmp.eq.s32.totalorder %s34, 0
      %p470 = por %p468, %p469
      %p471 = scmp.le.s32.totalorder 1, %s28
      %p472 = scmp.lt.s32.totalorder %s28, 3
      %p473 = pnand %p471, %p472
      %p474 = pneg %p473
      // Predicated region
      $region9: #{custom_model_forward.1} parent=5 // pred_check
        _
      $region10: #{custom_model_forward.1} parent=5 // pred_check_branch
        %476 = sbr.rel (%p473) target = $region12
      $region11: #{custom_model_forward.1} parent=5 // pred_region
        %s477 = ssub.s32 %s28, 1
        // Predicated region
        $region13: #{custom_model_forward.1} parent=11 // pred_check
          %p478 = pneg %p101
        $region14: #{custom_model_forward.1} parent=11 // pred_check_branch
          %480 = sbr.rel (%p478) target = $region16
        $region15: #{custom_model_forward.1} parent=11 // pred_region
          _
        $region16: #{custom_model_forward.1} parent=11 // pred_fallthru
          _
        // Predicated region
        $region17: #{custom_model_forward.1} parent=11 // pred_check
          %p481 = pneg %p122
        $region18: #{custom_model_forward.1} parent=11 // pred_check_branch
          %483 = sbr.rel (%p481) target = $region20
        $region19: #{custom_model_forward.1} parent=11 // pred_region
          _
        $region20: #{custom_model_forward.1} parent=11 // pred_fallthru
          _
        // Predicated region
        $region21: #{custom_model_forward.1} parent=11 // pred_check
          %p484 = pneg %p143
        $region22: #{custom_model_forward.1} parent=11 // pred_check_branch
          %486 = sbr.rel (%p484) target = $region24
        $region23: #{custom_model_forward.1} parent=11 // pred_region
          _
        $region24: #{custom_model_forward.1} parent=11 // pred_fallthru
          _
        // Predicated region
        $region25: #{custom_model_forward.1} parent=11 // pred_check
          %p487 = pneg %p164
        $region26: #{custom_model_forward.1} parent=11 // pred_check_branch
          %489 = sbr.rel (%p487) target = $region28
        $region27: #{custom_model_forward.1} parent=11 // pred_region
          _
        $region28: #{custom_model_forward.1} parent=11 // pred_fallthru
          _
        // Predicated region
        $region29: #{custom_model_forward.1} parent=11 // pred_check
          %p490 = pneg %p185
        $region30: #{custom_model_forward.1} parent=11 // pred_check_branch
          %492 = sbr.rel (%p490) target = $region32
        $region31: #{custom_model_forward.1} parent=11 // pred_region
          _
        $region32: #{custom_model_forward.1} parent=11 // pred_fallthru
          _
        // Predicated region
        $region33: #{custom_model_forward.1} parent=11 // pred_check
          %p493 = pneg %p206
        $region34: #{custom_model_forward.1} parent=11 // pred_check_branch
          %495 = sbr.rel (%p493) target = $region36
        $region35: #{custom_model_forward.1} parent=11 // pred_region
          _
        $region36: #{custom_model_forward.1} parent=11 // pred_fallthru
          _
        // Predicated region
        $region37: #{custom_model_forward.1} parent=11 // pred_check
          %p496 = pneg %p227
        $region38: #{custom_model_forward.1} parent=11 // pred_check_branch
          %498 = sbr.rel (%p496) target = $region40
        $region39: #{custom_model_forward.1} parent=11 // pred_region
          _
        $region40: #{custom_model_forward.1} parent=11 // pred_fallthru
          _
        // Predicated region
        $region41: #{custom_model_forward.1} parent=11 // pred_check
          %p499 = pneg %p248
        $region42: #{custom_model_forward.1} parent=11 // pred_check_branch
          %501 = sbr.rel (%p499) target = $region44
        $region43: #{custom_model_forward.1} parent=11 // pred_region
          _
        $region44: #{custom_model_forward.1} parent=11 // pred_fallthru
          _
        // Predicated region
        $region45: #{custom_model_forward.1} parent=11 // pred_check
          %p502 = pneg %p269
        $region46: #{custom_model_forward.1} parent=11 // pred_check_branch
          %504 = sbr.rel (%p502) target = $region48
        $region47: #{custom_model_forward.1} parent=11 // pred_region
          _
        $region48: #{custom_model_forward.1} parent=11 // pred_fallthru
          _
        // Predicated region
        $region49: #{custom_model_forward.1} parent=11 // pred_check
          %p505 = pneg %p290
        $region50: #{custom_model_forward.1} parent=11 // pred_check_branch
          %507 = sbr.rel (%p505) target = $region52
        $region51: #{custom_model_forward.1} parent=11 // pred_region
          _
        $region52: #{custom_model_forward.1} parent=11 // pred_fallthru
          _
        // Predicated region
        $region53: #{custom_model_forward.1} parent=11 // pred_check
          %p508 = pneg %p311
        $region54: #{custom_model_forward.1} parent=11 // pred_check_branch
          %510 = sbr.rel (%p508) target = $region56
        $region55: #{custom_model_forward.1} parent=11 // pred_region
          _
        $region56: #{custom_model_forward.1} parent=11 // pred_fallthru
          _
        // Predicated region
        $region57: #{custom_model_forward.1} parent=11 // pred_check
          %p511 = pneg %p332
        $region58: #{custom_model_forward.1} parent=11 // pred_check_branch
          %513 = sbr.rel (%p511) target = $region60
        $region59: #{custom_model_forward.1} parent=11 // pred_region
          _
        $region60: #{custom_model_forward.1} parent=11 // pred_fallthru
          _
        // Predicated region
        $region61: #{custom_model_forward.1} parent=11 // pred_check
          %p514 = pneg %p353
        $region62: #{custom_model_forward.1} parent=11 // pred_check_branch
          %516 = sbr.rel (%p514) target = $region64
        $region63: #{custom_model_forward.1} parent=11 // pred_region
          _
        $region64: #{custom_model_forward.1} parent=11 // pred_fallthru
          _
        // Predicated region
        $region65: #{custom_model_forward.1} parent=11 // pred_check
          %p517 = pneg %p374
        $region66: #{custom_model_forward.1} parent=11 // pred_check_branch
          %519 = sbr.rel (%p517) target = $region68
        $region67: #{custom_model_forward.1} parent=11 // pred_region
          _
        $region68: #{custom_model_forward.1} parent=11 // pred_fallthru
          _
        // Predicated region
        $region69: #{custom_model_forward.1} parent=11 // pred_check
          %p520 = pneg %p395
        $region70: #{custom_model_forward.1} parent=11 // pred_check_branch
          %522 = sbr.rel (%p520) target = $region72
        $region71: #{custom_model_forward.1} parent=11 // pred_region
          _
        $region72: #{custom_model_forward.1} parent=11 // pred_fallthru
          _
        // Predicated region
        $region73: #{custom_model_forward.1} parent=11 // pred_check
          %p523 = pneg %p416
        $region74: #{custom_model_forward.1} parent=11 // pred_check_branch
          %525 = sbr.rel (%p523) target = $region76
        $region75: #{custom_model_forward.1} parent=11 // pred_region
          _
        $region76: #{custom_model_forward.1} parent=11 // pred_fallthru
          _
        // Predicated region
        $region77: #{custom_model_forward.1} parent=11 // pred_check
          %p526 = pneg %p437
        $region78: #{custom_model_forward.1} parent=11 // pred_check_branch
          %528 = sbr.rel (%p526) target = $region80
        $region79: #{custom_model_forward.1} parent=11 // pred_region
          _
        $region80: #{custom_model_forward.1} parent=11 // pred_fallthru
          _
      $region12: #{custom_model_forward.1} parent=5 // pred_fallthru
        _
      %p529 = scmp.lt.s32.totalorder %s28, 2
      // Predicated region
      $region81: #{custom_model_forward.1} parent=5 // pred_check
        %p530 = pneg %p529
      $region82: #{custom_model_forward.1} parent=5 // pred_check_branch
        %532 = sbr.rel (%p530) target = $region84
      $region83: #{custom_model_forward.1} parent=5 // pred_region
        // Predicated region
        $region85: #{custom_model_forward.1} parent=83 // pred_check
          %p533 = pneg %p48
        $region86: #{custom_model_forward.1} parent=83 // pred_check_branch
          %535 = sbr.rel (%p533) target = $region88
        $region87: #{custom_model_forward.1} parent=83 // pred_region
          %p536 = scmp.lt.s32.totalorder %s28, 1
          %s537 = scalar_select %p536, %s28, 1
          %s538 = smul.addr %s537, 8
          %s539 = scalar_lea.vmem %s0, %s538
        $region88: #{custom_model_forward.1} parent=83 // pred_fallthru
          _
        // Predicated region
        $region89: #{custom_model_forward.1} parent=83 // pred_check
          %p540 = pneg %p74
        $region90: #{custom_model_forward.1} parent=83 // pred_check_branch
          %542 = sbr.rel (%p540) target = $region92
        $region91: #{custom_model_forward.1} parent=83 // pred_region
          %p543 = scmp.lt.s32.totalorder %s28, 1
          %s544 = scalar_select %p543, %s28, 1
          %s545 = scalar_lea.vmem %s1, %s544
        $region92: #{custom_model_forward.1} parent=83 // pred_fallthru
          _
      $region84: #{custom_model_forward.1} parent=5 // pred_fallthru
        _
      %p546 = scmp.le.s32.totalorder 1, %s28
      %p547 = scmp.lt.s32.totalorder %s28, 3
      %p548 = pnand %p546, %p547
      %p549 = pneg %p548
      // Predicated region
      $region93: #{custom_model_forward.1} parent=5 // pred_check
        _
      $region94: #{custom_model_forward.1} parent=5 // pred_check_branch
        %551 = sbr.rel (%p548) target = $region96
      $region95: #{custom_model_forward.1} parent=5 // pred_region
        %s552 = ssub.s32 %s28, 1
        %p553 = scmp.lt.s32.totalorder %s33, 1
        %s554 = scalar_select %p553, %s33, 1
        %s555 = smul.addr %s554, 8
        %s556 = scalar_lea.vmem %s0, %s555
        %p557 = pneg %p54
        %p558 = pneg %p51
        %p559 = scmp.lt.s32.totalorder %s33, 1
        %s560 = scalar_select %p559, %s33, 1
        %s561 = scalar_lea.vmem %s1, %s560
        %p562 = pneg %p80
        %p563 = pneg %p77
        %p564 = pneg %p101
        %p565 = pneg %p98
        %p566 = pneg %p122
        %p567 = pneg %p119
        %p568 = pneg %p143
        %p569 = pneg %p140
        %p570 = pneg %p164
        %p571 = pneg %p161
        %p572 = pneg %p185
        %p573 = pneg %p182
        %p574 = pneg %p206
        %p575 = pneg %p203
        %p576 = pneg %p227
        %p577 = pneg %p224
        %p578 = pneg %p248
        %p579 = pneg %p245
        %p580 = pneg %p269
        %p581 = pneg %p266
        %p582 = pneg %p290
        %p583 = pneg %p287
        %p584 = pneg %p311
        %p585 = pneg %p308
        %p586 = pneg %p332
        %p587 = pneg %p329
        %p588 = pneg %p353
        %p589 = pneg %p350
        %p590 = pneg %p374
        %p591 = pneg %p371
        %p592 = pneg %p395
        %p593 = pneg %p392
        %p594 = pneg %p416
        %p595 = pneg %p413
        %p596 = pneg %p437
        %p597 = pneg %p434
        %p598 = pneg %p463
        %p599 = pneg %p460
        %s600 = sand.u32 %s450, 1
        %s601 = scalar_lea.sflag [#allocation3], %s600
        %s602 = sand.u32 %s450, 1
        %s603 = scalar_lea.vmem [#allocation2], %s602
        %p604 = scmp.lt.s32.totalorder %s33, 1
        %s605 = scalar_select %p604, %s33, 1
        %s606 = smul.addr %s605, 8
        %s607 = scalar_lea.vmem %s0, %s606
        %p608 = scmp.lt.s32.totalorder %s33, 1
        %s609 = scalar_select %p608, %s33, 1
        %s610 = scalar_lea.vmem %s1, %s609
        %v611 = vld [vmem:[%s610] sm:$0x1]
        %v612 = vcvt.s32.f32 %v611
        %v613 = vsub.f32 1.0, %v612
        %v614 = vmul.f32 %v613, -1e+09
        %vm615 = vcmask 57344
        %v616 = vsel %vm615, %v612, 0.0
        %617 = vadd.xlane.f32.xlu0 %v616
        %v618 = vpop.xlane.xlu0 %617
        %v619 = vrot.slane %v618, 4
        %v620 = vadd.f32 %v618, %v619
        %v621 = vrot.slane %v620, 2
        %v622 = vadd.f32 %v620, %v621
        %v623 = vrot.slane %v622, 1
        %v624 = vadd.f32 %v622, %v623
        %s625 = vtos %v624
        %s626 = smax.f32 %s625, 1e-09
        %v627 = vstv %s626
        %v628 = vrcp.pop %v627
        %s629 = vtos %v628
        %v630 = vld [vmem:[%s607] sm:$0xff]
        %v631 = vld [vmem:[%s2] sm:$0xff]
        %v632 = vadd.f32 %v630, %v631
        %v633 = vld [vmem:[%s3] sm:$0x1]
        %v634 = vld [vmem:[%s4] sm:$0x1]
        %vm635 = vcmask 261120
        %v636 = vsel %vm635, %v632, 0.0
        %637 = vadd.xlane.f32.xlu0 %v636
        %v638 = vpop.xlane.xlu0 %637
        %v639 = vrcp.pop 32.0
        %v640 = vmul.f32 %v638, %v639
        %v641 = vsub.f32 %v632, %v640
        %v642 = vmul.f32 %v641, %v641
        %v643 = vsel %vm635, %v642, 0.0
        %644 = vadd.xlane.f32.xlu0 %v643
        %v645 = vpop.xlane.xlu0 %644
        %v646 = vmul.f32 %v645, %v639
        %v647 = vadd.f32 %v646, 1e-12
        %v648 = vrsqrt.pop %v647
        %v649 = vmul.f32 %v641, %v648
        %v651 = vlaneseq
        %v652 = vshrl.u32 %v651, 7
        %v653 = vsub.s32 0, %v652
        %v654 = vrot.slane %v633, %v653
        %v656 = vmul.f32 %v649, %v654
        %v658 = vlaneseq
        %v659 = vshrl.u32 %v658, 7
        %v660 = vsub.s32 0, %v659
        %v661 = vrot.slane %v634, %v660
        %v663 = vadd.f32 %v656, %v661
        %v664 = vld [vmem:[%s5] sm:$0xff]
        %v665 = vld [vmem:[%s5 + $0x8] sm:$0xff]
        %v666 = vld [vmem:[%s5 + $0x10] sm:$0xff]
        %v667 = vld [vmem:[%s5 + $0x18] sm:$0xff]
        %v668 = vld [vmem:[%s6] sm:$0x1]
        %v670 = vlaneseq
        %v671 = vshrl.u32 %v670, 7
        %v672 = vsub.s32 0, %v671
        %v673 = vrot.slane %v668, %v672
        %v676 = vsel %vm635, %v663, 0
        %678 = vmatprep.subr.mxu0 0.0
        %679 = vmatpush1.msra.mxu0 %v664
        %680 = vmatprep.subr.mxu0 0.0
        %681 = vmatpush1.msra.mxu0 %v665
        %682 = vmatprep.subr.mxu0 0.0
        %683 = vmatpush1.msra.mxu0 %v666
        %684 = vmatprep.subr.mxu0 0.0
        %685 = vmatpush1.msra.mxu0 %v667
        %686 = vmatprep.subr.mxu0 0.0
        %687 = vmatpush1.msra.mxu0 0.0
        %688 = vmatprep.subr.mxu0 0.0
        %689 = vmatpush1.msra.mxu0 0.0
        %690 = vmatprep.subr.mxu0 0.0
        %691 = vmatpush1.msra.mxu0 0.0
        %692 = vmatprep.subr.mxu0 0.0
        %693 = vmatpush1.msra.mxu0 0.0
        %694 = vmatprep.subr.mxu0 0.0
        %695 = vmatpush1.msra.mxu0 0.0
        %696 = vmatprep.subr.mxu0 0.0
        %697 = vmatpush1.msra.mxu0 0.0
        %698 = vmatprep.subr.mxu0 0.0
        %699 = vmatpush1.msra.mxu0 0.0
        %700 = vmatprep.subr.mxu0 0.0
        %701 = vmatpush1.msra.mxu0 0.0
        %702 = vmatprep.subr.mxu0 0.0
        %703 = vmatpush1.msra.mxu0 0.0
        %704 = vmatprep.subr.mxu0 0.0
        %705 = vmatpush1.msra.mxu0 0.0
        %706 = vmatprep.subr.mxu0 0.0
        %707 = vmatpush1.msra.mxu0 0.0
        %708 = vmatprep.subr.mxu0 0.0
        %709 = vmatpush1.msra.mxu0 0.0
        %710 = vmatprep.subr.mxu0 0.0
        %711 = vmatpush1.msra.mxu0 0.0
        %712 = vmatprep.subr.mxu0 0.0
        %713 = vmatpush1.msra.mxu0 0.0
        %714 = vmatprep.subr.mxu0 0.0
        %715 = vmatpush1.msra.mxu0 0.0
        %716 = vmatprep.subr.mxu0 0.0
        %717 = vmatpush1.msra.mxu0 0.0
        %718 = vmatprep.subr.mxu0 0.0
        %719 = vmatpush1.msra.mxu0 0.0
        %720 = vmatprep.subr.mxu0 0.0
        %721 = vmatpush1.msra.mxu0 0.0
        %722 = vmatprep.subr.mxu0 0.0
        %723 = vmatpush1.msra.mxu0 0.0
        %724 = vmatprep.subr.mxu0 0.0
        %725 = vmatpush1.msra.mxu0 0.0
        %726 = vmatprep.subr.mxu0 0.0
        %727 = vmatpush1.msra.mxu0 0.0
        %728 = vmatprep.subr.mxu0 0.0
        %729 = vmatpush1.msra.mxu0 0.0
        %730 = vmatprep.subr.mxu0 0.0
        %731 = vmatpush1.msra.mxu0 0.0
        %732 = vmatprep.subr.mxu0 0.0
        %733 = vmatpush1.msra.mxu0 0.0
        %734 = vmatprep.subr.mxu0 0.0
        %735 = vmatpush1.msra.mxu0 0.0
        %736 = vmatprep.subr.mxu0 0.0
        %737 = vmatpush1.msra.mxu0 0.0
        %738 = vmatprep.subr.mxu0 0.0
        %739 = vmatpush1.msra.mxu0 0.0
        %740 = vmatprep.subr.mxu0 0.0
        %741 = vmatpush1.msra.mxu0 0.0
        %742 = vmatprep.mubr.f32.mxu0 0.0
        %743 = vmatmul.mubr.f32.gmra.mrb[0].mxu0 %v676
        %v744 = vpop.f32.mrb[0].mxu0
        %v745 = vadd.f32 %v673, %v744
        %v746 = vpop.f32.mrb[0].mxu0
        %747 = vdwg.mxu0
        %v748 = vld [vmem:[%s7] sm:$0xff]
        %v749 = vld [vmem:[%s7 + $0x8] sm:$0xff]
        %v750 = vld [vmem:[%s7 + $0x10] sm:$0xff]
        %v751 = vld [vmem:[%s7 + $0x18] sm:$0xff]
        %v752 = vld [vmem:[%s8] sm:$0x1]
        %v754 = vlaneseq
        %v755 = vshrl.u32 %v754, 7
        %v756 = vsub.s32 0, %v755
        %v757 = vrot.slane %v752, %v756
        %v759 = vadd.f32 %v757, 0.0
        %761 = vrot.lane.b32.xlu0 %v745, 96
        %v762 = vpop.permute.xlu0 %761
        %vm763 = vcmask 130048
        %v764 = vsel %vm763, %v745, 0
        %v766 = vsel %vm763, %v762, 0
        %768 = vmatprep.subr.mxu0 0.0
        %769 = vmatpush1.xpose.msra.mxu0 %v766
        %770 = vmatprep.subr.mxu0 0.0
        %771 = vmatpush1.xpose.msra.mxu0 0.0
        %772 = vmatprep.subr.mxu0 0.0
        %773 = vmatpush1.xpose.msra.mxu0 0.0
        %774 = vmatprep.subr.mxu0 0.0
        %775 = vmatpush1.xpose.msra.mxu0 0.0
        %776 = vmatprep.subr.mxu0 0.0
        %777 = vmatpush1.xpose.msra.mxu0 0.0
        %778 = vmatprep.subr.mxu0 0.0
        %779 = vmatpush1.xpose.msra.mxu0 0.0
        %780 = vmatprep.subr.mxu0 0.0
        %781 = vmatpush1.xpose.msra.mxu0 0.0
        %782 = vmatprep.subr.mxu0 0.0
        %783 = vmatpush1.xpose.msra.mxu0 0.0
        %784 = vmatprep.subr.mxu0 0.0
        %785 = vmatpush1.xpose.msra.mxu0 0.0
        %786 = vmatprep.subr.mxu0 0.0
        %787 = vmatpush1.xpose.msra.mxu0 0.0
        %788 = vmatprep.subr.mxu0 0.0
        %789 = vmatpush1.xpose.msra.mxu0 0.0
        %790 = vmatprep.subr.mxu0 0.0
        %791 = vmatpush1.xpose.msra.mxu0 0.0
        %792 = vmatprep.subr.mxu0 0.0
        %793 = vmatpush1.xpose.msra.mxu0 0.0
        %794 = vmatprep.subr.mxu0 0.0
        %795 = vmatpush1.xpose.msra.mxu0 0.0
        %796 = vmatprep.subr.mxu0 0.0
        %797 = vmatpush1.xpose.msra.mxu0 0.0
        %798 = vmatprep.subr.mxu0 0.0
        %799 = vmatpush1.xpose.msra.mxu0 0.0
        %800 = vmatprep.subr.mxu0 0.0
        %801 = vmatpush1.xpose.msra.mxu0 0.0
        %802 = vmatprep.subr.mxu0 0.0
        %803 = vmatpush1.xpose.msra.mxu0 0.0
        %804 = vmatprep.subr.mxu0 0.0
        %805 = vmatpush1.xpose.msra.mxu0 0.0
        %806 = vmatprep.subr.mxu0 0.0
        %807 = vmatpush1.xpose.msra.mxu0 0.0
        %808 = vmatprep.subr.mxu0 0.0
        %809 = vmatpush1.xpose.msra.mxu0 0.0
        %810 = vmatprep.subr.mxu0 0.0
        %811 = vmatpush1.xpose.msra.mxu0 0.0
        %812 = vmatprep.subr.mxu0 0.0
        %813 = vmatpush1.xpose.msra.mxu0 0.0
        %814 = vmatprep.subr.mxu0 0.0
        %815 = vmatpush1.xpose.msra.mxu0 0.0
        %816 = vmatprep.subr.mxu0 0.0
        %817 = vmatpush1.xpose.msra.mxu0 0.0
        %818 = vmatprep.subr.mxu0 0.0
        %819 = vmatpush1.xpose.msra.mxu0 0.0
        %820 = vmatprep.subr.mxu0 0.0
        %821 = vmatpush1.xpose.msra.mxu0 0.0
        %822 = vmatprep.subr.mxu0 0.0
        %823 = vmatpush1.xpose.msra.mxu0 0.0
        %824 = vmatprep.subr.mxu0 0.0
        %825 = vmatpush1.xpose.msra.mxu0 0.0
        %826 = vmatprep.subr.mxu0 0.0
        %827 = vmatpush1.xpose.msra.mxu0 0.0
        %828 = vmatprep.subr.mxu0 0.0
        %829 = vmatpush1.xpose.msra.mxu0 0.0
        %830 = vmatprep.subr.mxu0 0.0
        %831 = vmatpush1.xpose.msra.mxu0 0.0
        %832 = vmatprep.mubr.f32.mxu0 0.0
        %833 = vmatmul.mubr.f32.gmra.mrb[0].mxu0 %v764
        %v834 = vpop.f32.mrb[0].mxu0
        %v835 = vadd.f32 0.0, %v834
        %v836 = vpop.f32.mrb[0].mxu0
        %837 = vdwg.mxu0
        %v838 = vmul.f32 %v835, 0.25
        %v840 = vlaneseq
        %v841 = vshrl.u32 %v840, 7
        %v842 = vsub.s32 0, %v841
        %v843 = vrot.slane %v614, %v842
        %v845 = vadd.f32 %v838, %v843
        %vm846 = vcmask 64512
        %v847 = vsel %vm846, %v845, -inf
        %848 = vmax.xlane.f32.xlu0 %v847
        %v849 = vpop.xlane.xlu0 %848
        %v850 = vsub.f32 %v845, %v849
        %v851 = vmul.f32 %v850, 1.442695
        %v852 = vpow.pop %v851
        %v853 = vsel %vm846, %v852, 0.0
        %854 = vadd.xlane.f32.xlu0 %v853
        %v855 = vpop.xlane.xlu0 %854
        %v856 = vrcp.pop %v855
        %v857 = vmul.f32 %v852, %v856
        %858 = vrot.lane.b32.xlu0 %v745, 64
        %v859 = vpop.permute.xlu0 %858
        %v862 = vsel %vm846, %v857, 0
        %864 = vmatprep.subr.mxu0 0.0
        %865 = vmatpush1.msra.mxu0 %v859
        %866 = vmatprep.subr.mxu0 0.0
        %867 = vmatpush1.msra.mxu0 0.0
        %868 = vmatprep.subr.mxu0 0.0
        %869 = vmatpush1.msra.mxu0 0.0
        %870 = vmatprep.subr.mxu0 0.0
        %871 = vmatpush1.msra.mxu0 0.0
        %872 = vmatprep.subr.mxu0 0.0
        %873 = vmatpush1.msra.mxu0 0.0
        %874 = vmatprep.subr.mxu0 0.0
        %875 = vmatpush1.msra.mxu0 0.0
        %876 = vmatprep.subr.mxu0 0.0
        %877 = vmatpush1.msra.mxu0 0.0
        %878 = vmatprep.subr.mxu0 0.0
        %879 = vmatpush1.msra.mxu0 0.0
        %880 = vmatprep.subr.mxu0 0.0
        %881 = vmatpush1.msra.mxu0 0.0
        %882 = vmatprep.subr.mxu0 0.0
        %883 = vmatpush1.msra.mxu0 0.0
        %884 = vmatprep.subr.mxu0 0.0
        %885 = vmatpush1.msra.mxu0 0.0
        %886 = vmatprep.subr.mxu0 0.0
        %887 = vmatpush1.msra.mxu0 0.0
        %888 = vmatprep.subr.mxu0 0.0
        %889 = vmatpush1.msra.mxu0 0.0
        %890 = vmatprep.subr.mxu0 0.0
        %891 = vmatpush1.msra.mxu0 0.0
        %892 = vmatprep.subr.mxu0 0.0
        %893 = vmatpush1.msra.mxu0 0.0
        %894 = vmatprep.subr.mxu0 0.0
        %895 = vmatpush1.msra.mxu0 0.0
        %896 = vmatprep.subr.mxu0 0.0
        %897 = vmatpush1.msra.mxu0 0.0
        %898 = vmatprep.subr.mxu0 0.0
        %899 = vmatpush1.msra.mxu0 0.0
        %900 = vmatprep.subr.mxu0 0.0
        %901 = vmatpush1.msra.mxu0 0.0
        %902 = vmatprep.subr.mxu0 0.0
        %903 = vmatpush1.msra.mxu0 0.0
        %904 = vmatprep.subr.mxu0 0.0
        %905 = vmatpush1.msra.mxu0 0.0
        %906 = vmatprep.subr.mxu0 0.0
        %907 = vmatpush1.msra.mxu0 0.0
        %908 = vmatprep.subr.mxu0 0.0
        %909 = vmatpush1.msra.mxu0 0.0
        %910 = vmatprep.subr.mxu0 0.0
        %911 = vmatpush1.msra.mxu0 0.0
        %912 = vmatprep.subr.mxu0 0.0
        %913 = vmatpush1.msra.mxu0 0.0
        %914 = vmatprep.subr.mxu0 0.0
        %915 = vmatpush1.msra.mxu0 0.0
        %916 = vmatprep.subr.mxu0 0.0
        %917 = vmatpush1.msra.mxu0 0.0
        %918 = vmatprep.subr.mxu0 0.0
        %919 = vmatpush1.msra.mxu0 0.0
        %920 = vmatprep.subr.mxu0 0.0
        %921 = vmatpush1.msra.mxu0 0.0
        %922 = vmatprep.subr.mxu0 0.0
        %923 = vmatpush1.msra.mxu0 0.0
        %924 = vmatprep.subr.mxu0 0.0
        %925 = vmatpush1.msra.mxu0 0.0
        %926 = vmatprep.subr.mxu0 0.0
        %927 = vmatpush1.msra.mxu0 0.0
        %928 = vmatprep.mubr.f32.mxu0 0.0
        %929 = vmatmul.mubr.f32.gmra.mrb[0].mxu0 %v862
        %v930 = vpop.f32.mrb[0].mxu0
        %v931 = vadd.f32 0.0, %v930
        %v932 = vpop.f32.mrb[0].mxu0
        %933 = vdwg.mxu0
        %v935 = vsel %vm763, %v931, 0
        %937 = vmatprep.subr.mxu0 0.0
        %938 = vmatpush1.msra.mxu0 %v748
        %939 = vmatprep.subr.mxu0 0.0
        %940 = vmatpush1.msra.mxu0 %v749
        %941 = vmatprep.subr.mxu0 0.0
        %942 = vmatpush1.msra.mxu0 0.0
        %943 = vmatprep.subr.mxu0 0.0
        %944 = vmatpush1.msra.mxu0 0.0
        %945 = vmatprep.subr.mxu0 0.0
        %946 = vmatpush1.msra.mxu0 0.0
        %947 = vmatprep.subr.mxu0 0.0
        %948 = vmatpush1.msra.mxu0 0.0
        %949 = vmatprep.subr.mxu0 0.0
        %950 = vmatpush1.msra.mxu0 0.0
        %951 = vmatprep.subr.mxu0 0.0
        %952 = vmatpush1.msra.mxu0 0.0
        %953 = vmatprep.subr.mxu0 0.0
        %954 = vmatpush1.msra.mxu0 0.0
        %955 = vmatprep.subr.mxu0 0.0
        %956 = vmatpush1.msra.mxu0 0.0
        %957 = vmatprep.subr.mxu0 0.0
        %958 = vmatpush1.msra.mxu0 0.0
        %959 = vmatprep.subr.mxu0 0.0
        %960 = vmatpush1.msra.mxu0 0.0
        %961 = vmatprep.subr.mxu0 0.0
        %962 = vmatpush1.msra.mxu0 0.0
        %963 = vmatprep.subr.mxu0 0.0
        %964 = vmatpush1.msra.mxu0 0.0
        %965 = vmatprep.subr.mxu0 0.0
        %966 = vmatpush1.msra.mxu0 0.0
        %967 = vmatprep.subr.mxu0 0.0
        %968 = vmatpush1.msra.mxu0 0.0
        %969 = vmatprep.subr.mxu0 0.0
        %970 = vmatpush1.msra.mxu0 0.0
        %971 = vmatprep.subr.mxu0 0.0
        %972 = vmatpush1.msra.mxu0 0.0
        %973 = vmatprep.subr.mxu0 0.0
        %974 = vmatpush1.msra.mxu0 0.0
        %975 = vmatprep.subr.mxu0 0.0
        %976 = vmatpush1.msra.mxu0 0.0
        %977 = vmatprep.subr.mxu0 0.0
        %978 = vmatpush1.msra.mxu0 0.0
        %979 = vmatprep.subr.mxu0 0.0
        %980 = vmatpush1.msra.mxu0 0.0
        %981 = vmatprep.subr.mxu0 0.0
        %982 = vmatpush1.msra.mxu0 0.0
        %983 = vmatprep.subr.mxu0 0.0
        %984 = vmatpush1.msra.mxu0 0.0
        %985 = vmatprep.subr.mxu0 0.0
        %986 = vmatpush1.msra.mxu0 0.0
        %987 = vmatprep.subr.mxu0 0.0
        %988 = vmatpush1.msra.mxu0 0.0
        %989 = vmatprep.subr.mxu0 0.0
        %990 = vmatpush1.msra.mxu0 0.0
        %991 = vmatprep.subr.mxu0 0.0
        %992 = vmatpush1.msra.mxu0 0.0
        %993 = vmatprep.subr.mxu0 0.0
        %994 = vmatpush1.msra.mxu0 0.0
        %995 = vmatprep.subr.mxu0 0.0
        %996 = vmatpush1.msra.mxu0 0.0
        %997 = vmatprep.subr.mxu0 0.0
        %998 = vmatpush1.msra.mxu0 0.0
        %999 = vmatprep.subr.mxu0 0.0
        %1000 = vmatpush1.msra.mxu0 0.0
        %1001 = vmatprep.mubr.f32.mxu0 0.0
        %1002 = vmatmul.mubr.f32.gmra.mrb[0].mxu0 %v935
        %v1003 = vpop.f32.mrb[0].mxu0
        %v1004 = vadd.f32 0.0, %v1003
        %v1005 = vpop.f32.mrb[0].mxu0
        %1006 = vdwg.mxu0
        %v1007 = vadd.f32 %v759, %v1004
        %1008 = vrot.lane.b32.xlu0 %v745, 112
        %v1009 = vpop.permute.xlu0 %1008
        %1010 = vrot.lane.b32.xlu0 %v745, 80
        %v1011 = vpop.permute.xlu0 %1010
        %v1012 = vsel %vm763, %v1009, 0
        %v1014 = vsel %vm763, %v1011, 0
        %1016 = vmatprep.subr.mxu0 0.0
        %1017 = vmatpush1.xpose.msra.mxu0 %v1014
        %1018 = vmatprep.subr.mxu0 0.0
        %1019 = vmatpush1.xpose.msra.mxu0 0.0
        %1020 = vmatprep.subr.mxu0 0.0
        %1021 = vmatpush1.xpose.msra.mxu0 0.0
        %1022 = vmatprep.subr.mxu0 0.0
        %1023 = vmatpush1.xpose.msra.mxu0 0.0
        %1024 = vmatprep.subr.mxu0 0.0
        %1025 = vmatpush1.xpose.msra.mxu0 0.0
        %1026 = vmatprep.subr.mxu0 0.0
        %1027 = vmatpush1.xpose.msra.mxu0 0.0
        %1028 = vmatprep.subr.mxu0 0.0
        %1029 = vmatpush1.xpose.msra.mxu0 0.0
        %1030 = vmatprep.subr.mxu0 0.0
        %1031 = vmatpush1.xpose.msra.mxu0 0.0
        %1032 = vmatprep.subr.mxu0 0.0
        %1033 = vmatpush1.xpose.msra.mxu0 0.0
        %1034 = vmatprep.subr.mxu0 0.0
        %1035 = vmatpush1.xpose.msra.mxu0 0.0
        %1036 = vmatprep.subr.mxu0 0.0
        %1037 = vmatpush1.xpose.msra.mxu0 0.0
        %1038 = vmatprep.subr.mxu0 0.0
        %1039 = vmatpush1.xpose.msra.mxu0 0.0
        %1040 = vmatprep.subr.mxu0 0.0
        %1041 = vmatpush1.xpose.msra.mxu0 0.0
        %1042 = vmatprep.subr.mxu0 0.0
        %1043 = vmatpush1.xpose.msra.mxu0 0.0
        %1044 = vmatprep.subr.mxu0 0.0
        %1045 = vmatpush1.xpose.msra.mxu0 0.0
        %1046 = vmatprep.subr.mxu0 0.0
        %1047 = vmatpush1.xpose.msra.mxu0 0.0
        %1048 = vmatprep.subr.mxu0 0.0
        %1049 = vmatpush1.xpose.msra.mxu0 0.0
        %1050 = vmatprep.subr.mxu0 0.0
        %1051 = vmatpush1.xpose.msra.mxu0 0.0
        %1052 = vmatprep.subr.mxu0 0.0
        %1053 = vmatpush1.xpose.msra.mxu0 0.0
        %1054 = vmatprep.subr.mxu0 0.0
        %1055 = vmatpush1.xpose.msra.mxu0 0.0
        %1056 = vmatprep.subr.mxu0 0.0
        %1057 = vmatpush1.xpose.msra.mxu0 0.0
        %1058 = vmatprep.subr.mxu0 0.0
        %1059 = vmatpush1.xpose.msra.mxu0 0.0
        %1060 = vmatprep.subr.mxu0 0.0
        %1061 = vmatpush1.xpose.msra.mxu0 0.0
        %1062 = vmatprep.subr.mxu0 0.0
        %1063 = vmatpush1.xpose.msra.mxu0 0.0
        %1064 = vmatprep.subr.mxu0 0.0
        %1065 = vmatpush1.xpose.msra.mxu0 0.0
        %1066 = vmatprep.subr.mxu0 0.0
        %1067 = vmatpush1.xpose.msra.mxu0 0.0
        %1068 = vmatprep.subr.mxu0 0.0
        %1069 = vmatpush1.xpose.msra.mxu0 0.0
        %1070 = vmatprep.subr.mxu0 0.0
        %1071 = vmatpush1.xpose.msra.mxu0 0.0
        %1072 = vmatprep.subr.mxu0 0.0
        %1073 = vmatpush1.xpose.msra.mxu0 0.0
        %1074 = vmatprep.subr.mxu0 0.0
        %1075 = vmatpush1.xpose.msra.mxu0 0.0
        %1076 = vmatprep.subr.mxu0 0.0
        %1077 = vmatpush1.xpose.msra.mxu0 0.0
        %1078 = vmatprep.subr.mxu0 0.0
        %1079 = vmatpush1.xpose.msra.mxu0 0.0
        %1080 = vmatprep.mubr.f32.mxu0 0.0
        %1081 = vmatmul.mubr.f32.gmra.mrb[0].mxu0 %v1012
        %v1082 = vpop.f32.mrb[0].mxu0
        %v1083 = vadd.f32 0.0, %v1082
        %v1084 = vpop.f32.mrb[0].mxu0
        %1085 = vdwg.mxu0
        %v1086 = vmul.f32 %v1083, 0.25
        %v1087 = vadd.f32 %v1086, %v843
        %v1088 = vsel %vm846, %v1087, -inf
        %1089 = vmax.xlane.f32.xlu0 %v1088
        %v1090 = vpop.xlane.xlu0 %1089
        %v1091 = vsub.f32 %v1087, %v1090
        %v1092 = vmul.f32 %v1091, 1.442695
        %v1093 = vpow.pop %v1092
        %v1094 = vsel %vm846, %v1093, 0.0
        %1095 = vadd.xlane.f32.xlu0 %v1094
        %v1096 = vpop.xlane.xlu0 %1095
        %v1097 = vrcp.pop %v1096
        %v1098 = vmul.f32 %v1093, %v1097
        %1099 = vrot.lane.b32.xlu0 %v745, 48
        %v1100 = vpop.permute.xlu0 %1099
        %v1103 = vsel %vm846, %v1098, 0
        %1105 = vmatprep.subr.mxu0 0.0
        %1106 = vmatpush1.msra.mxu0 %v1100
        %1107 = vmatprep.subr.mxu0 0.0
        %1108 = vmatpush1.msra.mxu0 0.0
        %1109 = vmatprep.subr.mxu0 0.0
        %1110 = vmatpush1.msra.mxu0 0.0
        %1111 = vmatprep.subr.mxu0 0.0
        %1112 = vmatpush1.msra.mxu0 0.0
        %1113 = vmatprep.subr.mxu0 0.0
        %1114 = vmatpush1.msra.mxu0 0.0
        %1115 = vmatprep.subr.mxu0 0.0
        %1116 = vmatpush1.msra.mxu0 0.0
        %1117 = vmatprep.subr.mxu0 0.0
        %1118 = vmatpush1.msra.mxu0 0.0
        %1119 = vmatprep.subr.mxu0 0.0
        %1120 = vmatpush1.msra.mxu0 0.0
        %1121 = vmatprep.subr.mxu0 0.0
        %1122 = vmatpush1.msra.mxu0 0.0
        %1123 = vmatprep.subr.mxu0 0.0
        %1124 = vmatpush1.msra.mxu0 0.0
        %1125 = vmatprep.subr.mxu0 0.0
        %1126 = vmatpush1.msra.mxu0 0.0
        %1127 = vmatprep.subr.mxu0 0.0
        %1128 = vmatpush1.msra.mxu0 0.0
        %1129 = vmatprep.subr.mxu0 0.0
        %1130 = vmatpush1.msra.mxu0 0.0
        %1131 = vmatprep.subr.mxu0 0.0
        %1132 = vmatpush1.msra.mxu0 0.0
        %1133 = vmatprep.subr.mxu0 0.0
        %1134 = vmatpush1.msra.mxu0 0.0
        %1135 = vmatprep.subr.mxu0 0.0
        %1136 = vmatpush1.msra.mxu0 0.0
        %1137 = vmatprep.subr.mxu0 0.0
        %1138 = vmatpush1.msra.mxu0 0.0
        %1139 = vmatprep.subr.mxu0 0.0
        %1140 = vmatpush1.msra.mxu0 0.0
        %1141 = vmatprep.subr.mxu0 0.0
        %1142 = vmatpush1.msra.mxu0 0.0
        %1143 = vmatprep.subr.mxu0 0.0
        %1144 = vmatpush1.msra.mxu0 0.0
        %1145 = vmatprep.subr.mxu0 0.0
        %1146 = vmatpush1.msra.mxu0 0.0
        %1147 = vmatprep.subr.mxu0 0.0
        %1148 = vmatpush1.msra.mxu0 0.0
        %1149 = vmatprep.subr.mxu0 0.0
        %1150 = vmatpush1.msra.mxu0 0.0
        %1151 = vmatprep.subr.mxu0 0.0
        %1152 = vmatpush1.msra.mxu0 0.0
        %1153 = vmatprep.subr.mxu0 0.0
        %1154 = vmatpush1.msra.mxu0 0.0
        %1155 = vmatprep.subr.mxu0 0.0
        %1156 = vmatpush1.msra.mxu0 0.0
        %1157 = vmatprep.subr.mxu0 0.0
        %1158 = vmatpush1.msra.mxu0 0.0
        %1159 = vmatprep.subr.mxu0 0.0
        %1160 = vmatpush1.msra.mxu0 0.0
        %1161 = vmatprep.subr.mxu0 0.0
        %1162 = vmatpush1.msra.mxu0 0.0
        %1163 = vmatprep.subr.mxu0 0.0
        %1164 = vmatpush1.msra.mxu0 0.0
        %1165 = vmatprep.subr.mxu0 0.0
        %1166 = vmatpush1.msra.mxu0 0.0
        %1167 = vmatprep.subr.mxu0 0.0
        %1168 = vmatpush1.msra.mxu0 0.0
        %1169 = vmatprep.mubr.f32.mxu0 0.0
        %1170 = vmatmul.mubr.f32.gmra.mrb[0].mxu0 %v1103
        %v1171 = vpop.f32.mrb[0].mxu0
        %v1172 = vadd.f32 0.0, %v1171
        %v1173 = vpop.f32.mrb[0].mxu0
        %1174 = vdwg.mxu0
        %v1176 = vsel %vm763, %v1172, 0
        %1178 = vmatprep.subr.mxu0 0.0
        %1179 = vmatpush1.msra.mxu0 %v750
        %1180 = vmatprep.subr.mxu0 0.0
        %1181 = vmatpush1.msra.mxu0 %v751
        %1182 = vmatprep.subr.mxu0 0.0
        %1183 = vmatpush1.msra.mxu0 0.0
        %1184 = vmatprep.subr.mxu0 0.0
        %1185 = vmatpush1.msra.mxu0 0.0
        %1186 = vmatprep.subr.mxu0 0.0
        %1187 = vmatpush1.msra.mxu0 0.0
        %1188 = vmatprep.subr.mxu0 0.0
        %1189 = vmatpush1.msra.mxu0 0.0
        %1190 = vmatprep.subr.mxu0 0.0
        %1191 = vmatpush1.msra.mxu0 0.0
        %1192 = vmatprep.subr.mxu0 0.0
        %1193 = vmatpush1.msra.mxu0 0.0
        %1194 = vmatprep.subr.mxu0 0.0
        %1195 = vmatpush1.msra.mxu0 0.0
        %1196 = vmatprep.subr.mxu0 0.0
        %1197 = vmatpush1.msra.mxu0 0.0
        %1198 = vmatprep.subr.mxu0 0.0
        %1199 = vmatpush1.msra.mxu0 0.0
        %1200 = vmatprep.subr.mxu0 0.0
        %1201 = vmatpush1.msra.mxu0 0.0
        %1202 = vmatprep.subr.mxu0 0.0
        %1203 = vmatpush1.msra.mxu0 0.0
        %1204 = vmatprep.subr.mxu0 0.0
        %1205 = vmatpush1.msra.mxu0 0.0
        %1206 = vmatprep.subr.mxu0 0.0
        %1207 = vmatpush1.msra.mxu0 0.0
        %1208 = vmatprep.subr.mxu0 0.0
        %1209 = vmatpush1.msra.mxu0 0.0
        %1210 = vmatprep.subr.mxu0 0.0
        %1211 = vmatpush1.msra.mxu0 0.0
        %1212 = vmatprep.subr.mxu0 0.0
        %1213 = vmatpush1.msra.mxu0 0.0
        %1214 = vmatprep.subr.mxu0 0.0
        %1215 = vmatpush1.msra.mxu0 0.0
        %1216 = vmatprep.subr.mxu0 0.0
        %1217 = vmatpush1.msra.mxu0 0.0
        %1218 = vmatprep.subr.mxu0 0.0
        %1219 = vmatpush1.msra.mxu0 0.0
        %1220 = vmatprep.subr.mxu0 0.0
        %1221 = vmatpush1.msra.mxu0 0.0
        %1222 = vmatprep.subr.mxu0 0.0
        %1223 = vmatpush1.msra.mxu0 0.0
        %1224 = vmatprep.subr.mxu0 0.0
        %1225 = vmatpush1.msra.mxu0 0.0
        %1226 = vmatprep.subr.mxu0 0.0
        %1227 = vmatpush1.msra.mxu0 0.0
        %1228 = vmatprep.subr.mxu0 0.0
        %1229 = vmatpush1.msra.mxu0 0.0
        %1230 = vmatprep.subr.mxu0 0.0
        %1231 = vmatpush1.msra.mxu0 0.0
        %1232 = vmatprep.subr.mxu0 0.0
        %1233 = vmatpush1.msra.mxu0 0.0
        %1234 = vmatprep.subr.mxu0 0.0
        %1235 = vmatpush1.msra.mxu0 0.0
        %1236 = vmatprep.subr.mxu0 0.0
        %1237 = vmatpush1.msra.mxu0 0.0
        %1238 = vmatprep.subr.mxu0 0.0
        %1239 = vmatpush1.msra.mxu0 0.0
        %1240 = vmatprep.subr.mxu0 0.0
        %1241 = vmatpush1.msra.mxu0 0.0
        %1242 = vmatprep.mubr.f32.mxu0 0.0
        %1243 = vmatmul.mubr.f32.gmra.mrb[0].mxu0 %v1176
        %v1244 = vpop.f32.mrb[0].mxu0
        %v1245 = vadd.f32 0.0, %v1244
        %v1246 = vpop.f32.mrb[0].mxu0
        %1247 = vdwg.mxu0
        %v1248 = vadd.f32 %v1007, %v1245
        %v1249 = vadd.f32 %v663, %v1248
        %v1250 = vld [vmem:[%s9] sm:$0x1]
        %v1251 = vld [vmem:[%s10] sm:$0x1]
        %v1252 = vsel %vm635, %v1249, 0.0
        %1253 = vadd.xlane.f32.xlu0 %v1252
        %v1254 = vpop.xlane.xlu0 %1253
        %v1255 = vmul.f32 %v1254, %v639
        %v1256 = vsub.f32 %v1249, %v1255
        %v1257 = vmul.f32 %v1256, %v1256
        %v1258 = vsel %vm635, %v1257, 0.0
        %1259 = vadd.xlane.f32.xlu0 %v1258
        %v1260 = vpop.xlane.xlu0 %1259
        %v1261 = vmul.f32 %v1260, %v639
        %v1262 = vadd.f32 %v1261, 1e-12
        %v1263 = vrsqrt.pop %v1262
        %v1264 = vmul.f32 %v1256, %v1263
        %v1266 = vlaneseq
        %v1267 = vshrl.u32 %v1266, 7
        %v1268 = vsub.s32 0, %v1267
        %v1269 = vrot.slane %v1250, %v1268
        %v1271 = vmul.f32 %v1264, %v1269
        %v1273 = vlaneseq
        %v1274 = vshrl.u32 %v1273, 7
        %v1275 = vsub.s32 0, %v1274
        %v1276 = vrot.slane %v1251, %v1275
        %v1278 = vadd.f32 %v1271, %v1276
        %v1279 = vld [vmem:[%s11] sm:$0xff]
        %v1280 = vld [vmem:[%s11 + $0x8] sm:$0xff]
        %v1281 = vld [vmem:[%s11 + $0x10] sm:$0xff]
        %v1282 = vld [vmem:[%s11 + $0x18] sm:$0xff]
        %v1283 = vld [vmem:[%s12] sm:$0x1]
        %v1285 = vlaneseq
        %v1286 = vshrl.u32 %v1285, 7
        %v1287 = vsub.s32 0, %v1286
        %v1288 = vrot.slane %v1283, %v1287
        %v1291 = vsel %vm635, %v1278, 0
        %1293 = vmatprep.subr.mxu0 0.0
        %1294 = vmatpush1.msra.mxu0 %v1279
        %1295 = vmatprep.subr.mxu0 0.0
        %1296 = vmatpush1.msra.mxu0 %v1280
        %1297 = vmatprep.subr.mxu0 0.0
        %1298 = vmatpush1.msra.mxu0 %v1281
        %1299 = vmatprep.subr.mxu0 0.0
        %1300 = vmatpush1.msra.mxu0 %v1282
        %1301 = vmatprep.subr.mxu0 0.0
        %1302 = vmatpush1.msra.mxu0 0.0
        %1303 = vmatprep.subr.mxu0 0.0
        %1304 = vmatpush1.msra.mxu0 0.0
        %1305 = vmatprep.subr.mxu0 0.0
        %1306 = vmatpush1.msra.mxu0 0.0
        %1307 = vmatprep.subr.mxu0 0.0
        %1308 = vmatpush1.msra.mxu0 0.0
        %1309 = vmatprep.subr.mxu0 0.0
        %1310 = vmatpush1.msra.mxu0 0.0
        %1311 = vmatprep.subr.mxu0 0.0
        %1312 = vmatpush1.msra.mxu0 0.0
        %1313 = vmatprep.subr.mxu0 0.0
        %1314 = vmatpush1.msra.mxu0 0.0
        %1315 = vmatprep.subr.mxu0 0.0
        %1316 = vmatpush1.msra.mxu0 0.0
        %1317 = vmatprep.subr.mxu0 0.0
        %1318 = vmatpush1.msra.mxu0 0.0
        %1319 = vmatprep.subr.mxu0 0.0
        %1320 = vmatpush1.msra.mxu0 0.0
        %1321 = vmatprep.subr.mxu0 0.0
        %1322 = vmatpush1.msra.mxu0 0.0
        %1323 = vmatprep.subr.mxu0 0.0
        %1324 = vmatpush1.msra.mxu0 0.0
        %1325 = vmatprep.subr.mxu0 0.0
        %1326 = vmatpush1.msra.mxu0 0.0
        %1327 = vmatprep.subr.mxu0 0.0
        %1328 = vmatpush1.msra.mxu0 0.0
        %1329 = vmatprep.subr.mxu0 0.0
        %1330 = vmatpush1.msra.mxu0 0.0
        %1331 = vmatprep.subr.mxu0 0.0
        %1332 = vmatpush1.msra.mxu0 0.0
        %1333 = vmatprep.subr.mxu0 0.0
        %1334 = vmatpush1.msra.mxu0 0.0
        %1335 = vmatprep.subr.mxu0 0.0
        %1336 = vmatpush1.msra.mxu0 0.0
        %1337 = vmatprep.subr.mxu0 0.0
        %1338 = vmatpush1.msra.mxu0 0.0
        %1339 = vmatprep.subr.mxu0 0.0
        %1340 = vmatpush1.msra.mxu0 0.0
        %1341 = vmatprep.subr.mxu0 0.0
        %1342 = vmatpush1.msra.mxu0 0.0
        %1343 = vmatprep.subr.mxu0 0.0
        %1344 = vmatpush1.msra.mxu0 0.0
        %1345 = vmatprep.subr.mxu0 0.0
        %1346 = vmatpush1.msra.mxu0 0.0
        %1347 = vmatprep.subr.mxu0 0.0
        %1348 = vmatpush1.msra.mxu0 0.0
        %1349 = vmatprep.subr.mxu0 0.0
        %1350 = vmatpush1.msra.mxu0 0.0
        %1351 = vmatprep.subr.mxu0 0.0
        %1352 = vmatpush1.msra.mxu0 0.0
        %1353 = vmatprep.subr.mxu0 0.0
        %1354 = vmatpush1.msra.mxu0 0.0
        %1355 = vmatprep.subr.mxu0 0.0
        %1356 = vmatpush1.msra.mxu0 0.0
        %1357 = vmatprep.mubr.f32.mxu0 0.0
        %1358 = vmatmul.mubr.f32.gmra.mrb[0].mxu0 %v1291
        %v1359 = vpop.f32.mrb[0].mxu0
        %v1360 = vadd.f32 %v1288, %v1359
        %v1361 = vpop.f32.mrb[0].mxu0
        %1362 = vdwg.mxu0
        %v1363 = vmul.f32 %v1360, %v1360
        %v1364 = vmul.f32 %v1360, %v1363
        %v1365 = vmul.f32 %v1364, 0.044715
        %v1366 = vadd.f32 %v1360, %v1365
        %v1367 = vmul.f32 %v1366, 0.7978846
        %v1368 = vtanh.pop %v1367
        %v1369 = vadd.f32 %v1368, 1.0
        %v1370 = vmul.f32 %v1369, 0.5
        %v1371 = vmul.f32 %v1360, %v1370
        %v1372 = vld [vmem:[%s13] sm:$0xff]
        %v1373 = vld [vmem:[%s13 + $0x8] sm:$0xff]
        %v1374 = vld [vmem:[%s13 + $0x10] sm:$0xff]
        %v1375 = vld [vmem:[%s13 + $0x18] sm:$0xff]
        %v1376 = vld [vmem:[%s13 + $0x20] sm:$0xff]
        %v1377 = vld [vmem:[%s13 + $0x28] sm:$0xff]
        %v1378 = vld [vmem:[%s13 + $0x30] sm:$0xff]
        %v1379 = vld [vmem:[%s13 + $0x38] sm:$0xff]
        %v1380 = vld [vmem:[%s14] sm:$0x1]
        %v1382 = vlaneseq
        %v1383 = vshrl.u32 %v1382, 7
        %v1384 = vsub.s32 0, %v1383
        %v1385 = vrot.slane %v1380, %v1384
        %vm1387 = vcmask 523264
        %v1389 = vsel %vm1387, %v1371, 0
        %1391 = vmatprep.subr.mxu0 0.0
        %1392 = vmatpush1.msra.mxu0 %v1372
        %1393 = vmatprep.subr.mxu0 0.0
        %1394 = vmatpush1.msra.mxu0 %v1373
        %1395 = vmatprep.subr.mxu0 0.0
        %1396 = vmatpush1.msra.mxu0 %v1374
        %1397 = vmatprep.subr.mxu0 0.0
        %1398 = vmatpush1.msra.mxu0 %v1375
        %1399 = vmatprep.subr.mxu0 0.0
        %1400 = vmatpush1.msra.mxu0 %v1376
        %1401 = vmatprep.subr.mxu0 0.0
        %1402 = vmatpush1.msra.mxu0 %v1377
        %1403 = vmatprep.subr.mxu0 0.0
        %1404 = vmatpush1.msra.mxu0 %v1378
        %1405 = vmatprep.subr.mxu0 0.0
        %1406 = vmatpush1.msra.mxu0 %v1379
        %1407 = vmatprep.subr.mxu0 0.0
        %1408 = vmatpush1.msra.mxu0 0.0
        %1409 = vmatprep.subr.mxu0 0.0
        %1410 = vmatpush1.msra.mxu0 0.0
        %1411 = vmatprep.subr.mxu0 0.0
        %1412 = vmatpush1.msra.mxu0 0.0
        %1413 = vmatprep.subr.mxu0 0.0
        %1414 = vmatpush1.msra.mxu0 0.0
        %1415 = vmatprep.subr.mxu0 0.0
        %1416 = vmatpush1.msra.mxu0 0.0
        %1417 = vmatprep.subr.mxu0 0.0
        %1418 = vmatpush1.msra.mxu0 0.0
        %1419 = vmatprep.subr.mxu0 0.0
        %1420 = vmatpush1.msra.mxu0 0.0
        %1421 = vmatprep.subr.mxu0 0.0
        %1422 = vmatpush1.msra.mxu0 0.0
        %1423 = vmatprep.subr.mxu0 0.0
        %1424 = vmatpush1.msra.mxu0 0.0
        %1425 = vmatprep.subr.mxu0 0.0
        %1426 = vmatpush1.msra.mxu0 0.0
        %1427 = vmatprep.subr.mxu0 0.0
        %1428 = vmatpush1.msra.mxu0 0.0
        %1429 = vmatprep.subr.mxu0 0.0
        %1430 = vmatpush1.msra.mxu0 0.0
        %1431 = vmatprep.subr.mxu0 0.0
        %1432 = vmatpush1.msra.mxu0 0.0
        %1433 = vmatprep.subr.mxu0 0.0
        %1434 = vmatpush1.msra.mxu0 0.0
        %1435 = vmatprep.subr.mxu0 0.0
        %1436 = vmatpush1.msra.mxu0 0.0
        %1437 = vmatprep.subr.mxu0 0.0
        %1438 = vmatpush1.msra.mxu0 0.0
        %1439 = vmatprep.subr.mxu0 0.0
        %1440 = vmatpush1.msra.mxu0 0.0
        %1441 = vmatprep.subr.mxu0 0.0
        %1442 = vmatpush1.msra.mxu0 0.0
        %1443 = vmatprep.subr.mxu0 0.0
        %1444 = vmatpush1.msra.mxu0 0.0
        %1445 = vmatprep.subr.mxu0 0.0
        %1446 = vmatpush1.msra.mxu0 0.0
        %1447 = vmatprep.subr.mxu0 0.0
        %1448 = vmatpush1.msra.mxu0 0.0
        %1449 = vmatprep.subr.mxu0 0.0
        %1450 = vmatpush1.msra.mxu0 0.0
        %1451 = vmatprep.subr.mxu0 0.0
        %1452 = vmatpush1.msra.mxu0 0.0
        %1453 = vmatprep.subr.mxu0 0.0
        %1454 = vmatpush1.msra.mxu0 0.0
        %1455 = vmatprep.mubr.f32.mxu0 0.0
        %1456 = vmatmul.mubr.f32.gmra.mrb[0].mxu0 %v1389
        %v1457 = vpop.f32.mrb[0].mxu0
        %v1458 = vadd.f32 %v1385, %v1457
        %v1459 = vpop.f32.mrb[0].mxu0
        %1460 = vdwg.mxu0
        %v1461 = vadd.f32 %v1278, %v1458
        %v1462 = vld [vmem:[%s15] sm:$0x1]
        %v1463 = vld [vmem:[%s16] sm:$0x1]
        %v1464 = vsel %vm635, %v1461, 0.0
        %1465 = vadd.xlane.f32.xlu0 %v1464
        %v1466 = vpop.xlane.xlu0 %1465
        %v1467 = vmul.f32 %v1466, %v639
        %v1468 = vsub.f32 %v1461, %v1467
        %v1469 = vmul.f32 %v1468, %v1468
        %v1470 = vsel %vm635, %v1469, 0.0
        %1471 = vadd.xlane.f32.xlu0 %v1470
        %v1472 = vpop.xlane.xlu0 %1471
        %v1473 = vmul.f32 %v1472, %v639
        %v1474 = vadd.f32 %v1473, 1e-12
        %v1475 = vrsqrt.pop %v1474
        %v1476 = vmul.f32 %v1468, %v1475
        %v1478 = vlaneseq
        %v1479 = vshrl.u32 %v1478, 7
        %v1480 = vsub.s32 0, %v1479
        %v1481 = vrot.slane %v1462, %v1480
        %v1483 = vmul.f32 %v1476, %v1481
        %v1485 = vlaneseq
        %v1486 = vshrl.u32 %v1485, 7
        %v1487 = vsub.s32 0, %v1486
        %v1488 = vrot.slane %v1463, %v1487
        %v1490 = vadd.f32 %v1483, %v1488
        %s1491 = scalar_lea.vmem %s5, 32
        %v1492 = vld [vmem:[%s1491] sm:$0xff]
        %v1493 = vld [vmem:[%s1491 + $0x8] sm:$0xff]
        %v1494 = vld [vmem:[%s1491 + $0x10] sm:$0xff]
        %v1495 = vld [vmem:[%s1491 + $0x18] sm:$0xff]
        %s1496 = scalar_lea.vmem %s6, 1
        %v1497 = vld [vmem:[%s1496] sm:$0x1]
        %v1499 = vlaneseq
        %v1500 = vshrl.u32 %v1499, 7
        %v1501 = vsub.s32 0, %v1500
        %v1502 = vrot.slane %v1497, %v1501
        %v1505 = vsel %vm635, %v1490, 0
        %1507 = vmatprep.subr.mxu0 0.0
        %1508 = vmatpush1.msra.mxu0 %v1492
        %1509 = vmatprep.subr.mxu0 0.0
        %1510 = vmatpush1.msra.mxu0 %v1493
        %1511 = vmatprep.subr.mxu0 0.0
        %1512 = vmatpush1.msra.mxu0 %v1494
        %1513 = vmatprep.subr.mxu0 0.0
        %1514 = vmatpush1.msra.mxu0 %v1495
        %1515 = vmatprep.subr.mxu0 0.0
        %1516 = vmatpush1.msra.mxu0 0.0
        %1517 = vmatprep.subr.mxu0 0.0
        %1518 = vmatpush1.msra.mxu0 0.0
        %1519 = vmatprep.subr.mxu0 0.0
        %1520 = vmatpush1.msra.mxu0 0.0
        %1521 = vmatprep.subr.mxu0 0.0
        %1522 = vmatpush1.msra.mxu0 0.0
        %1523 = vmatprep.subr.mxu0 0.0
        %1524 = vmatpush1.msra.mxu0 0.0
        %1525 = vmatprep.subr.mxu0 0.0
        %1526 = vmatpush1.msra.mxu0 0.0
        %1527 = vmatprep.subr.mxu0 0.0
        %1528 = vmatpush1.msra.mxu0 0.0
        %1529 = vmatprep.subr.mxu0 0.0
        %1530 = vmatpush1.msra.mxu0 0.0
        %1531 = vmatprep.subr.mxu0 0.0
        %1532 = vmatpush1.msra.mxu0 0.0
        %1533 = vmatprep.subr.mxu0 0.0
        %1534 = vmatpush1.msra.mxu0 0.0
        %1535 = vmatprep.subr.mxu0 0.0
        %1536 = vmatpush1.msra.mxu0 0.0
        %1537 = vmatprep.subr.mxu0 0.0
        %1538 = vmatpush1.msra.mxu0 0.0
        %1539 = vmatprep.subr.mxu0 0.0
        %1540 = vmatpush1.msra.mxu0 0.0
        %1541 = vmatprep.subr.mxu0 0.0
        %1542 = vmatpush1.msra.mxu0 0.0
        %1543 = vmatprep.subr.mxu0 0.0
        %1544 = vmatpush1.msra.mxu0 0.0
        %1545 = vmatprep.subr.mxu0 0.0
        %1546 = vmatpush1.msra.mxu0 0.0
        %1547 = vmatprep.subr.mxu0 0.0
        %1548 = vmatpush1.msra.mxu0 0.0
        %1549 = vmatprep.subr.mxu0 0.0
        %1550 = vmatpush1.msra.mxu0 0.0
        %1551 = vmatprep.subr.mxu0 0.0
        %1552 = vmatpush1.msra.mxu0 0.0
        %1553 = vmatprep.subr.mxu0 0.0
        %1554 = vmatpush1.msra.mxu0 0.0
        %1555 = vmatprep.subr.mxu0 0.0
        %1556 = vmatpush1.msra.mxu0 0.0
        %1557 = vmatprep.subr.mxu0 0.0
        %1558 = vmatpush1.msra.mxu0 0.0
        %1559 = vmatprep.subr.mxu0 0.0
        %1560 = vmatpush1.msra.mxu0 0.0
        %1561 = vmatprep.subr.mxu0 0.0
        %1562 = vmatpush1.msra.mxu0 0.0
        %1563 = vmatprep.subr.mxu0 0.0
        %1564 = vmatpush1.msra.mxu0 0.0
        %1565 = vmatprep.subr.mxu0 0.0
        %1566 = vmatpush1.msra.mxu0 0.0
        %1567 = vmatprep.subr.mxu0 0.0
        %1568 = vmatpush1.msra.mxu0 0.0
        %1569 = vmatprep.subr.mxu0 0.0
        %1570 = vmatpush1.msra.mxu0 0.0
        %1571 = vmatprep.mubr.f32.mxu0 0.0
        %1572 = vmatmul.mubr.f32.gmra.mrb[0].mxu0 %v1505
        %v1573 = vpop.f32.mrb[0].mxu0
        %v1574 = vadd.f32 %v1502, %v1573
        %v1575 = vpop.f32.mrb[0].mxu0
        %1576 = vdwg.mxu0
        %s1577 = scalar_lea.vmem %s7, 32
        %v1578 = vld [vmem:[%s1577] sm:$0xff]
        %v1579 = vld [vmem:[%s1577 + $0x8] sm:$0xff]
        %v1580 = vld [vmem:[%s1577 + $0x10] sm:$0xff]
        %v1581 = vld [vmem:[%s1577 + $0x18] sm:$0xff]
        %s1582 = scalar_lea.vmem %s8, 1
        %v1583 = vld [vmem:[%s1582] sm:$0x1]
        %v1585 = vlaneseq
        %v1586 = vshrl.u32 %v1585, 7
        %v1587 = vsub.s32 0, %v1586
        %v1588 = vrot.slane %v1583, %v1587
        %v1590 = vadd.f32 %v1588, 0.0
        %1592 = vrot.lane.b32.xlu0 %v1574, 96
        %v1593 = vpop.permute.xlu0 %1592
        %v1594 = vsel %vm763, %v1574, 0
        %v1596 = vsel %vm763, %v1593, 0
        %1598 = vmatprep.subr.mxu0 0.0
        %1599 = vmatpush1.xpose.msra.mxu0 %v1596
        %1600 = vmatprep.subr.mxu0 0.0
        %1601 = vmatpush1.xpose.msra.mxu0 0.0
        %1602 = vmatprep.subr.mxu0 0.0
        %1603 = vmatpush1.xpose.msra.mxu0 0.0
        %1604 = vmatprep.subr.mxu0 0.0
        %1605 = vmatpush1.xpose.msra.mxu0 0.0
        %1606 = vmatprep.subr.mxu0 0.0
        %1607 = vmatpush1.xpose.msra.mxu0 0.0
        %1608 = vmatprep.subr.mxu0 0.0
        %1609 = vmatpush1.xpose.msra.mxu0 0.0
        %1610 = vmatprep.subr.mxu0 0.0
        %1611 = vmatpush1.xpose.msra.mxu0 0.0
        %1612 = vmatprep.subr.mxu0 0.0
        %1613 = vmatpush1.xpose.msra.mxu0 0.0
        %1614 = vmatprep.subr.mxu0 0.0
        %1615 = vmatpush1.xpose.msra.mxu0 0.0
        %1616 = vmatprep.subr.mxu0 0.0
        %1617 = vmatpush1.xpose.msra.mxu0 0.0
        %1618 = vmatprep.subr.mxu0 0.0
        %1619 = vmatpush1.xpose.msra.mxu0 0.0
        %1620 = vmatprep.subr.mxu0 0.0
        %1621 = vmatpush1.xpose.msra.mxu0 0.0
        %1622 = vmatprep.subr.mxu0 0.0
        %1623 = vmatpush1.xpose.msra.mxu0 0.0
        %1624 = vmatprep.subr.mxu0 0.0
        %1625 = vmatpush1.xpose.msra.mxu0 0.0
        %1626 = vmatprep.subr.mxu0 0.0
        %1627 = vmatpush1.xpose.msra.mxu0 0.0
        %1628 = vmatprep.subr.mxu0 0.0
        %1629 = vmatpush1.xpose.msra.mxu0 0.0
        %1630 = vmatprep.subr.mxu0 0.0
        %1631 = vmatpush1.xpose.msra.mxu0 0.0
        %1632 = vmatprep.subr.mxu0 0.0
        %1633 = vmatpush1.xpose.msra.mxu0 0.0
        %1634 = vmatprep.subr.mxu0 0.0
        %1635 = vmatpush1.xpose.msra.mxu0 0.0
        %1636 = vmatprep.subr.mxu0 0.0
        %1637 = vmatpush1.xpose.msra.mxu0 0.0
        %1638 = vmatprep.subr.mxu0 0.0
        %1639 = vmatpush1.xpose.msra.mxu0 0.0
        %1640 = vmatprep.subr.mxu0 0.0
        %1641 = vmatpush1.xpose.msra.mxu0 0.0
        %1642 = vmatprep.subr.mxu0 0.0
        %1643 = vmatpush1.xpose.msra.mxu0 0.0
        %1644 = vmatprep.subr.mxu0 0.0
        %1645 = vmatpush1.xpose.msra.mxu0 0.0
        %1646 = vmatprep.subr.mxu0 0.0
        %1647 = vmatpush1.xpose.msra.mxu0 0.0
        %1648 = vmatprep.subr.mxu0 0.0
        %1649 = vmatpush1.xpose.msra.mxu0 0.0
        %1650 = vmatprep.subr.mxu0 0.0
        %1651 = vmatpush1.xpose.msra.mxu0 0.0
        %1652 = vmatprep.subr.mxu0 0.0
        %1653 = vmatpush1.xpose.msra.mxu0 0.0
        %1654 = vmatprep.subr.mxu0 0.0
        %1655 = vmatpush1.xpose.msra.mxu0 0.0
        %1656 = vmatprep.subr.mxu0 0.0
        %1657 = vmatpush1.xpose.msra.mxu0 0.0
        %1658 = vmatprep.subr.mxu0 0.0
        %1659 = vmatpush1.xpose.msra.mxu0 0.0
        %1660 = vmatprep.subr.mxu0 0.0
        %1661 = vmatpush1.xpose.msra.mxu0 0.0
        %1662 = vmatprep.mubr.f32.mxu0 0.0
        %1663 = vmatmul.mubr.f32.gmra.mrb[0].mxu0 %v1594
        %v1664 = vpop.f32.mrb[0].mxu0
        %v1665 = vadd.f32 0.0, %v1664
        %v1666 = vpop.f32.mrb[0].mxu0
        %1667 = vdwg.mxu0
        %v1668 = vmul.f32 %v1665, 0.25
        %v1669 = vadd.f32 %v1668, %v843
        %v1670 = vsel %vm846, %v1669, -inf
        %1671 = vmax.xlane.f32.xlu0 %v1670
        %v1672 = vpop.xlane.xlu0 %1671
        %v1673 = vsub.f32 %v1669, %v1672
        %v1674 = vmul.f32 %v1673, 1.442695
        %v1675 = vpow.pop %v1674
        %v1676 = vsel %vm846, %v1675, 0.0
        %1677 = vadd.xlane.f32.xlu0 %v1676
        %v1678 = vpop.xlane.xlu0 %1677
        %v1679 = vrcp.pop %v1678
        %v1680 = vmul.f32 %v1675, %v1679
        %1681 = vrot.lane.b32.xlu0 %v1574, 64
        %v1682 = vpop.permute.xlu0 %1681
        %v1685 = vsel %vm846, %v1680, 0
        %1687 = vmatprep.subr.mxu0 0.0
        %1688 = vmatpush1.msra.mxu0 %v1682
        %1689 = vmatprep.subr.mxu0 0.0
        %1690 = vmatpush1.msra.mxu0 0.0
        %1691 = vmatprep.subr.mxu0 0.0
        %1692 = vmatpush1.msra.mxu0 0.0
        %1693 = vmatprep.subr.mxu0 0.0
        %1694 = vmatpush1.msra.mxu0 0.0
        %1695 = vmatprep.subr.mxu0 0.0
        %1696 = vmatpush1.msra.mxu0 0.0
        %1697 = vmatprep.subr.mxu0 0.0
        %1698 = vmatpush1.msra.mxu0 0.0
        %1699 = vmatprep.subr.mxu0 0.0
        %1700 = vmatpush1.msra.mxu0 0.0
        %1701 = vmatprep.subr.mxu0 0.0
        %1702 = vmatpush1.msra.mxu0 0.0
        %1703 = vmatprep.subr.mxu0 0.0
        %1704 = vmatpush1.msra.mxu0 0.0
        %1705 = vmatprep.subr.mxu0 0.0
        %1706 = vmatpush1.msra.mxu0 0.0
        %1707 = vmatprep.subr.mxu0 0.0
        %1708 = vmatpush1.msra.mxu0 0.0
        %1709 = vmatprep.subr.mxu0 0.0
        %1710 = vmatpush1.msra.mxu0 0.0
        %1711 = vmatprep.subr.mxu0 0.0
        %1712 = vmatpush1.msra.mxu0 0.0
        %1713 = vmatprep.subr.mxu0 0.0
        %1714 = vmatpush1.msra.mxu0 0.0
        %1715 = vmatprep.subr.mxu0 0.0
        %1716 = vmatpush1.msra.mxu0 0.0
        %1717 = vmatprep.subr.mxu0 0.0
        %1718 = vmatpush1.msra.mxu0 0.0
        %1719 = vmatprep.subr.mxu0 0.0
        %1720 = vmatpush1.msra.mxu0 0.0
        %1721 = vmatprep.subr.mxu0 0.0
        %1722 = vmatpush1.msra.mxu0 0.0
        %1723 = vmatprep.subr.mxu0 0.0
        %1724 = vmatpush1.msra.mxu0 0.0
        %1725 = vmatprep.subr.mxu0 0.0
        %1726 = vmatpush1.msra.mxu0 0.0
        %1727 = vmatprep.subr.mxu0 0.0
        %1728 = vmatpush1.msra.mxu0 0.0
        %1729 = vmatprep.subr.mxu0 0.0
        %1730 = vmatpush1.msra.mxu0 0.0
        %1731 = vmatprep.subr.mxu0 0.0
        %1732 = vmatpush1.msra.mxu0 0.0
        %1733 = vmatprep.subr.mxu0 0.0
        %1734 = vmatpush1.msra.mxu0 0.0
        %1735 = vmatprep.subr.mxu0 0.0
        %1736 = vmatpush1.msra.mxu0 0.0
        %1737 = vmatprep.subr.mxu0 0.0
        %1738 = vmatpush1.msra.mxu0 0.0
        %1739 = vmatprep.subr.mxu0 0.0
        %1740 = vmatpush1.msra.mxu0 0.0
        %1741 = vmatprep.subr.mxu0 0.0
        %1742 = vmatpush1.msra.mxu0 0.0
        %1743 = vmatprep.subr.mxu0 0.0
        %1744 = vmatpush1.msra.mxu0 0.0
        %1745 = vmatprep.subr.mxu0 0.0
        %1746 = vmatpush1.msra.mxu0 0.0
        %1747 = vmatprep.subr.mxu0 0.0
        %1748 = vmatpush1.msra.mxu0 0.0
        %1749 = vmatprep.subr.mxu0 0.0
        %1750 = vmatpush1.msra.mxu0 0.0
        %1751 = vmatprep.mubr.f32.mxu0 0.0
        %1752 = vmatmul.mubr.f32.gmra.mrb[0].mxu0 %v1685
        %v1753 = vpop.f32.mrb[0].mxu0
        %v1754 = vadd.f32 0.0, %v1753
        %v1755 = vpop.f32.mrb[0].mxu0
        %1756 = vdwg.mxu0
        %v1758 = vsel %vm763, %v1754, 0
        %1760 = vmatprep.subr.mxu0 0.0
        %1761 = vmatpush1.msra.mxu0 %v1578
        %1762 = vmatprep.subr.mxu0 0.0
        %1763 = vmatpush1.msra.mxu0 %v1579
        %1764 = vmatprep.subr.mxu0 0.0
        %1765 = vmatpush1.msra.mxu0 0.0
        %1766 = vmatprep.subr.mxu0 0.0
        %1767 = vmatpush1.msra.mxu0 0.0
        %1768 = vmatprep.subr.mxu0 0.0
        %1769 = vmatpush1.msra.mxu0 0.0
        %1770 = vmatprep.subr.mxu0 0.0
        %1771 = vmatpush1.msra.mxu0 0.0
        %1772 = vmatprep.subr.mxu0 0.0
        %1773 = vmatpush1.msra.mxu0 0.0
        %1774 = vmatprep.subr.mxu0 0.0
        %1775 = vmatpush1.msra.mxu0 0.0
        %1776 = vmatprep.subr.mxu0 0.0
        %1777 = vmatpush1.msra.mxu0 0.0
        %1778 = vmatprep.subr.mxu0 0.0
        %1779 = vmatpush1.msra.mxu0 0.0
        %1780 = vmatprep.subr.mxu0 0.0
        %1781 = vmatpush1.msra.mxu0 0.0
        %1782 = vmatprep.subr.mxu0 0.0
        %1783 = vmatpush1.msra.mxu0 0.0
        %1784 = vmatprep.subr.mxu0 0.0
        %1785 = vmatpush1.msra.mxu0 0.0
        %1786 = vmatprep.subr.mxu0 0.0
        %1787 = vmatpush1.msra.mxu0 0.0
        %1788 = vmatprep.subr.mxu0 0.0
        %1789 = vmatpush1.msra.mxu0 0.0
        %1790 = vmatprep.subr.mxu0 0.0
        %1791 = vmatpush1.msra.mxu0 0.0
        %1792 = vmatprep.subr.mxu0 0.0
        %1793 = vmatpush1.msra.mxu0 0.0
        %1794 = vmatprep.subr.mxu0 0.0
        %1795 = vmatpush1.msra.mxu0 0.0
        %1796 = vmatprep.subr.mxu0 0.0
        %1797 = vmatpush1.msra.mxu0 0.0
        %1798 = vmatprep.subr.mxu0 0.0
        %1799 = vmatpush1.msra.mxu0 0.0
        %1800 = vmatprep.subr.mxu0 0.0
        %1801 = vmatpush1.msra.mxu0 0.0
        %1802 = vmatprep.subr.mxu0 0.0
        %1803 = vmatpush1.msra.mxu0 0.0
        %1804 = vmatprep.subr.mxu0 0.0
        %1805 = vmatpush1.msra.mxu0 0.0
        %1806 = vmatprep.subr.mxu0 0.0
        %1807 = vmatpush1.msra.mxu0 0.0
        %1808 = vmatprep.subr.mxu0 0.0
        %1809 = vmatpush1.msra.mxu0 0.0
        %1810 = vmatprep.subr.mxu0 0.0
        %1811 = vmatpush1.msra.mxu0 0.0
        %1812 = vmatprep.subr.mxu0 0.0
        %1813 = vmatpush1.msra.mxu0 0.0
        %1814 = vmatprep.subr.mxu0 0.0
        %1815 = vmatpush1.msra.mxu0 0.0
        %1816 = vmatprep.subr.mxu0 0.0
        %1817 = vmatpush1.msra.mxu0 0.0
        %1818 = vmatprep.subr.mxu0 0.0
        %1819 = vmatpush1.msra.mxu0 0.0
        %1820 = vmatprep.subr.mxu0 0.0
        %1821 = vmatpush1.msra.mxu0 0.0
        %1822 = vmatprep.subr.mxu0 0.0
        %1823 = vmatpush1.msra.mxu0 0.0
        %1824 = vmatprep.mubr.f32.mxu0 0.0
        %1825 = vmatmul.mubr.f32.gmra.mrb[0].mxu0 %v1758
        %v1826 = vpop.f32.mrb[0].mxu0
        %v1827 = vadd.f32 0.0, %v1826
        %v1828 = vpop.f32.mrb[0].mxu0
        %1829 = vdwg.mxu0
        %v1830 = vadd.f32 %v1590, %v1827
        %1831 = vrot.lane.b32.xlu0 %v1574, 112
        %v1832 = vpop.permute.xlu0 %1831
        %1833 = vrot.lane.b32.xlu0 %v1574, 80
        %v1834 = vpop.permute.xlu0 %1833
        %v1835 = vsel %vm763, %v1832, 0
        %v1837 = vsel %vm763, %v1834, 0
        %1839 = vmatprep.subr.mxu0 0.0
        %1840 = vmatpush1.xpose.msra.mxu0 %v1837
        %1841 = vmatprep.subr.mxu0 0.0
        %1842 = vmatpush1.xpose.msra.mxu0 0.0
        %1843 = vmatprep.subr.mxu0 0.0
        %1844 = vmatpush1.xpose.msra.mxu0 0.0
        %1845 = vmatprep.subr.mxu0 0.0
        %1846 = vmatpush1.xpose.msra.mxu0 0.0
        %1847 = vmatprep.subr.mxu0 0.0
        %1848 = vmatpush1.xpose.msra.mxu0 0.0
        %1849 = vmatprep.subr.mxu0 0.0
        %1850 = vmatpush1.xpose.msra.mxu0 0.0
        %1851 = vmatprep.subr.mxu0 0.0
        %1852 = vmatpush1.xpose.msra.mxu0 0.0
        %1853 = vmatprep.subr.mxu0 0.0
        %1854 = vmatpush1.xpose.msra.mxu0 0.0
        %1855 = vmatprep.subr.mxu0 0.0
        %1856 = vmatpush1.xpose.msra.mxu0 0.0
        %1857 = vmatprep.subr.mxu0 0.0
        %1858 = vmatpush1.xpose.msra.mxu0 0.0
        %1859 = vmatprep.subr.mxu0 0.0
        %1860 = vmatpush1.xpose.msra.mxu0 0.0
        %1861 = vmatprep.subr.mxu0 0.0
        %1862 = vmatpush1.xpose.msra.mxu0 0.0
        %1863 = vmatprep.subr.mxu0 0.0
        %1864 = vmatpush1.xpose.msra.mxu0 0.0
        %1865 = vmatprep.subr.mxu0 0.0
        %1866 = vmatpush1.xpose.msra.mxu0 0.0
        %1867 = vmatprep.subr.mxu0 0.0
        %1868 = vmatpush1.xpose.msra.mxu0 0.0
        %1869 = vmatprep.subr.mxu0 0.0
        %1870 = vmatpush1.xpose.msra.mxu0 0.0
        %1871 = vmatprep.subr.mxu0 0.0
        %1872 = vmatpush1.xpose.msra.mxu0 0.0
        %1873 = vmatprep.subr.mxu0 0.0
        %1874 = vmatpush1.xpose.msra.mxu0 0.0
        %1875 = vmatprep.subr.mxu0 0.0
        %1876 = vmatpush1.xpose.msra.mxu0 0.0
        %1877 = vmatprep.subr.mxu0 0.0
        %1878 = vmatpush1.xpose.msra.mxu0 0.0
        %1879 = vmatprep.subr.mxu0 0.0
        %1880 = vmatpush1.xpose.msra.mxu0 0.0
        %1881 = vmatprep.subr.mxu0 0.0
        %1882 = vmatpush1.xpose.msra.mxu0 0.0
        %1883 = vmatprep.subr.mxu0 0.0
        %1884 = vmatpush1.xpose.msra.mxu0 0.0
        %1885 = vmatprep.subr.mxu0 0.0
        %1886 = vmatpush1.xpose.msra.mxu0 0.0
        %1887 = vmatprep.subr.mxu0 0.0
        %1888 = vmatpush1.xpose.msra.mxu0 0.0
        %1889 = vmatprep.subr.mxu0 0.0
        %1890 = vmatpush1.xpose.msra.mxu0 0.0
        %1891 = vmatprep.subr.mxu0 0.0
        %1892 = vmatpush1.xpose.msra.mxu0 0.0
        %1893 = vmatprep.subr.mxu0 0.0
        %1894 = vmatpush1.xpose.msra.mxu0 0.0
        %1895 = vmatprep.subr.mxu0 0.0
        %1896 = vmatpush1.xpose.msra.mxu0 0.0
        %1897 = vmatprep.subr.mxu0 0.0
        %1898 = vmatpush1.xpose.msra.mxu0 0.0
        %1899 = vmatprep.subr.mxu0 0.0
        %1900 = vmatpush1.xpose.msra.mxu0 0.0
        %1901 = vmatprep.subr.mxu0 0.0
        %1902 = vmatpush1.xpose.msra.mxu0 0.0
        %1903 = vmatprep.mubr.f32.mxu0 0.0
        %1904 = vmatmul.mubr.f32.gmra.mrb[0].mxu0 %v1835
        %v1905 = vpop.f32.mrb[0].mxu0
        %v1906 = vadd.f32 0.0, %v1905
        %v1907 = vpop.f32.mrb[0].mxu0
        %1908 = vdwg.mxu0
        %v1909 = vmul.f32 %v1906, 0.25
        %v1910 = vadd.f32 %v1909, %v843
        %v1911 = vsel %vm846, %v1910, -inf
        %1912 = vmax.xlane.f32.xlu0 %v1911
        %v1913 = vpop.xlane.xlu0 %1912
        %v1914 = vsub.f32 %v1910, %v1913
        %v1915 = vmul.f32 %v1914, 1.442695
        %v1916 = vpow.pop %v1915
        %v1917 = vsel %vm846, %v1916, 0.0
        %1918 = vadd.xlane.f32.xlu0 %v1917
        %v1919 = vpop.xlane.xlu0 %1918
        %v1920 = vrcp.pop %v1919
        %v1921 = vmul.f32 %v1916, %v1920
        %1922 = vrot.lane.b32.xlu0 %v1574, 48
        %v1923 = vpop.permute.xlu0 %1922
        %v1926 = vsel %vm846, %v1921, 0
        %1928 = vmatprep.subr.mxu0 0.0
        %1929 = vmatpush1.msra.mxu0 %v1923
        %1930 = vmatprep.subr.mxu0 0.0
        %1931 = vmatpush1.msra.mxu0 0.0
        %1932 = vmatprep.subr.mxu0 0.0
        %1933 = vmatpush1.msra.mxu0 0.0
        %1934 = vmatprep.subr.mxu0 0.0
        %1935 = vmatpush1.msra.mxu0 0.0
        %1936 = vmatprep.subr.mxu0 0.0
        %1937 = vmatpush1.msra.mxu0 0.0
        %1938 = vmatprep.subr.mxu0 0.0
        %1939 = vmatpush1.msra.mxu0 0.0
        %1940 = vmatprep.subr.mxu0 0.0
        %1941 = vmatpush1.msra.mxu0 0.0
        %1942 = vmatprep.subr.mxu0 0.0
        %1943 = vmatpush1.msra.mxu0 0.0
        %1944 = vmatprep.subr.mxu0 0.0
        %1945 = vmatpush1.msra.mxu0 0.0
        %1946 = vmatprep.subr.mxu0 0.0
        %1947 = vmatpush1.msra.mxu0 0.0
        %1948 = vmatprep.subr.mxu0 0.0
        %1949 = vmatpush1.msra.mxu0 0.0
        %1950 = vmatprep.subr.mxu0 0.0
        %1951 = vmatpush1.msra.mxu0 0.0
        %1952 = vmatprep.subr.mxu0 0.0
        %1953 = vmatpush1.msra.mxu0 0.0
        %1954 = vmatprep.subr.mxu0 0.0
        %1955 = vmatpush1.msra.mxu0 0.0
        %1956 = vmatprep.subr.mxu0 0.0
        %1957 = vmatpush1.msra.mxu0 0.0
        %1958 = vmatprep.subr.mxu0 0.0
        %1959 = vmatpush1.msra.mxu0 0.0
        %1960 = vmatprep.subr.mxu0 0.0
        %1961 = vmatpush1.msra.mxu0 0.0
        %1962 = vmatprep.subr.mxu0 0.0
        %1963 = vmatpush1.msra.mxu0 0.0
        %1964 = vmatprep.subr.mxu0 0.0
        %1965 = vmatpush1.msra.mxu0 0.0
        %1966 = vmatprep.subr.mxu0 0.0
        %1967 = vmatpush1.msra.mxu0 0.0
        %1968 = vmatprep.subr.mxu0 0.0
        %1969 = vmatpush1.msra.mxu0 0.0
        %1970 = vmatprep.subr.mxu0 0.0
        %1971 = vmatpush1.msra.mxu0 0.0
        %1972 = vmatprep.subr.mxu0 0.0
        %1973 = vmatpush1.msra.mxu0 0.0
        %1974 = vmatprep.subr.mxu0 0.0
        %1975 = vmatpush1.msra.mxu0 0.0
        %1976 = vmatprep.subr.mxu0 0.0
        %1977 = vmatpush1.msra.mxu0 0.0
        %1978 = vmatprep.subr.mxu0 0.0
        %1979 = vmatpush1.msra.mxu0 0.0
        %1980 = vmatprep.subr.mxu0 0.0
        %1981 = vmatpush1.msra.mxu0 0.0
        %1982 = vmatprep.subr.mxu0 0.0
        %1983 = vmatpush1.msra.mxu0 0.0
        %1984 = vmatprep.subr.mxu0 0.0
        %1985 = vmatpush1.msra.mxu0 0.0
        %1986 = vmatprep.subr.mxu0 0.0
        %1987 = vmatpush1.msra.mxu0 0.0
        %1988 = vmatprep.subr.mxu0 0.0
        %1989 = vmatpush1.msra.mxu0 0.0
        %1990 = vmatprep.subr.mxu0 0.0
        %1991 = vmatpush1.msra.mxu0 0.0
        %1992 = vmatprep.mubr.f32.mxu0 0.0
        %1993 = vmatmul.mubr.f32.gmra.mrb[0].mxu0 %v1926
        %v1994 = vpop.f32.mrb[0].mxu0
        %v1995 = vadd.f32 0.0, %v1994
        %v1996 = vpop.f32.mrb[0].mxu0
        %1997 = vdwg.mxu0
        %v1999 = vsel %vm763, %v1995, 0
        %2001 = vmatprep.subr.mxu0 0.0
        %2002 = vmatpush1.msra.mxu0 %v1580
        %2003 = vmatprep.subr.mxu0 0.0
        %2004 = vmatpush1.msra.mxu0 %v1581
        %2005 = vmatprep.subr.mxu0 0.0
        %2006 = vmatpush1.msra.mxu0 0.0
        %2007 = vmatprep.subr.mxu0 0.0
        %2008 = vmatpush1.msra.mxu0 0.0
        %2009 = vmatprep.subr.mxu0 0.0
        %2010 = vmatpush1.msra.mxu0 0.0
        %2011 = vmatprep.subr.mxu0 0.0
        %2012 = vmatpush1.msra.mxu0 0.0
        %2013 = vmatprep.subr.mxu0 0.0
        %2014 = vmatpush1.msra.mxu0 0.0
        %2015 = vmatprep.subr.mxu0 0.0
        %2016 = vmatpush1.msra.mxu0 0.0
        %2017 = vmatprep.subr.mxu0 0.0
        %2018 = vmatpush1.msra.mxu0 0.0
        %2019 = vmatprep.subr.mxu0 0.0
        %2020 = vmatpush1.msra.mxu0 0.0
        %2021 = vmatprep.subr.mxu0 0.0
        %2022 = vmatpush1.msra.mxu0 0.0
        %2023 = vmatprep.subr.mxu0 0.0
        %2024 = vmatpush1.msra.mxu0 0.0
        %2025 = vmatprep.subr.mxu0 0.0
        %2026 = vmatpush1.msra.mxu0 0.0
        %2027 = vmatprep.subr.mxu0 0.0
        %2028 = vmatpush1.msra.mxu0 0.0
        %2029 = vmatprep.subr.mxu0 0.0
        %2030 = vmatpush1.msra.mxu0 0.0
        %2031 = vmatprep.subr.mxu0 0.0
        %2032 = vmatpush1.msra.mxu0 0.0
        %2033 = vmatprep.subr.mxu0 0.0
        %2034 = vmatpush1.msra.mxu0 0.0
        %2035 = vmatprep.subr.mxu0 0.0
        %2036 = vmatpush1.msra.mxu0 0.0
        %2037 = vmatprep.subr.mxu0 0.0
        %2038 = vmatpush1.msra.mxu0 0.0
        %2039 = vmatprep.subr.mxu0 0.0
        %2040 = vmatpush1.msra.mxu0 0.0
        %2041 = vmatprep.subr.mxu0 0.0
        %2042 = vmatpush1.msra.mxu0 0.0
        %2043 = vmatprep.subr.mxu0 0.0
        %2044 = vmatpush1.msra.mxu0 0.0
        %2045 = vmatprep.subr.mxu0 0.0
        %2046 = vmatpush1.msra.mxu0 0.0
        %2047 = vmatprep.subr.mxu0 0.0
        %2048 = vmatpush1.msra.mxu0 0.0
        %2049 = vmatprep.subr.mxu0 0.0
        %2050 = vmatpush1.msra.mxu0 0.0
        %2051 = vmatprep.subr.mxu0 0.0
        %2052 = vmatpush1.msra.mxu0 0.0
        %2053 = vmatprep.subr.mxu0 0.0
        %2054 = vmatpush1.msra.mxu0 0.0
        %2055 = vmatprep.subr.mxu0 0.0
        %2056 = vmatpush1.msra.mxu0 0.0
        %2057 = vmatprep.subr.mxu0 0.0
        %2058 = vmatpush1.msra.mxu0 0.0
        %2059 = vmatprep.subr.mxu0 0.0
        %2060 = vmatpush1.msra.mxu0 0.0
        %2061 = vmatprep.subr.mxu0 0.0
        %2062 = vmatpush1.msra.mxu0 0.0
        %2063 = vmatprep.subr.mxu0 0.0
        %2064 = vmatpush1.msra.mxu0 0.0
        %2065 = vmatprep.mubr.f32.mxu0 0.0
        %2066 = vmatmul.mubr.f32.gmra.mrb[0].mxu0 %v1999
        %v2067 = vpop.f32.mrb[0].mxu0
        %v2068 = vadd.f32 0.0, %v2067
        %v2069 = vpop.f32.mrb[0].mxu0
        %2070 = vdwg.mxu0
        %v2071 = vadd.f32 %v1830, %v2068
        %v2072 = vadd.f32 %v1490, %v2071
        %s2073 = scalar_lea.vmem %s9, 1
        %v2074 = vld [vmem:[%s2073] sm:$0x1]
        %s2075 = scalar_lea.vmem %s10, 1
        %v2076 = vld [vmem:[%s2075] sm:$0x1]
        %v2077 = vsel %vm635, %v2072, 0.0
        %2078 = vadd.xlane.f32.xlu0 %v2077
        %v2079 = vpop.xlane.xlu0 %2078
        %v2080 = vmul.f32 %v2079, %v639
        %v2081 = vsub.f32 %v2072, %v2080
        %v2082 = vmul.f32 %v2081, %v2081
        %v2083 = vsel %vm635, %v2082, 0.0
        %2084 = vadd.xlane.f32.xlu0 %v2083
        %v2085 = vpop.xlane.xlu0 %2084
        %v2086 = vmul.f32 %v2085, %v639
        %v2087 = vadd.f32 %v2086, 1e-12
        %v2088 = vrsqrt.pop %v2087
        %v2089 = vmul.f32 %v2081, %v2088
        %v2091 = vlaneseq
        %v2092 = vshrl.u32 %v2091, 7
        %v2093 = vsub.s32 0, %v2092
        %v2094 = vrot.slane %v2074, %v2093
        %v2096 = vmul.f32 %v2089, %v2094
        %v2098 = vlaneseq
        %v2099 = vshrl.u32 %v2098, 7
        %v2100 = vsub.s32 0, %v2099
        %v2101 = vrot.slane %v2076, %v2100
        %v2103 = vadd.f32 %v2096, %v2101
        %s2104 = scalar_lea.vmem %s11, 32
        %v2105 = vld [vmem:[%s2104] sm:$0xff]
        %v2106 = vld [vmem:[%s2104 + $0x8] sm:$0xff]
        %v2107 = vld [vmem:[%s2104 + $0x10] sm:$0xff]
        %v2108 = vld [vmem:[%s2104 + $0x18] sm:$0xff]
        %s2109 = scalar_lea.vmem %s12, 1
        %v2110 = vld [vmem:[%s2109] sm:$0x1]
        %v2112 = vlaneseq
        %v2113 = vshrl.u32 %v2112, 7
        %v2114 = vsub.s32 0, %v2113
        %v2115 = vrot.slane %v2110, %v2114
        %v2118 = vsel %vm635, %v2103, 0
        %2120 = vmatprep.subr.mxu0 0.0
        %2121 = vmatpush1.msra.mxu0 %v2105
        %2122 = vmatprep.subr.mxu0 0.0
        %2123 = vmatpush1.msra.mxu0 %v2106
        %2124 = vmatprep.subr.mxu0 0.0
        %2125 = vmatpush1.msra.mxu0 %v2107
        %2126 = vmatprep.subr.mxu0 0.0
        %2127 = vmatpush1.msra.mxu0 %v2108
        %2128 = vmatprep.subr.mxu0 0.0
        %2129 = vmatpush1.msra.mxu0 0.0
        %2130 = vmatprep.subr.mxu0 0.0
        %2131 = vmatpush1.msra.mxu0 0.0
        %2132 = vmatprep.subr.mxu0 0.0
        %2133 = vmatpush1.msra.mxu0 0.0
        %2134 = vmatprep.subr.mxu0 0.0
        %2135 = vmatpush1.msra.mxu0 0.0
        %2136 = vmatprep.subr.mxu0 0.0
        %2137 = vmatpush1.msra.mxu0 0.0
        %2138 = vmatprep.subr.mxu0 0.0
        %2139 = vmatpush1.msra.mxu0 0.0
        %2140 = vmatprep.subr.mxu0 0.0
        %2141 = vmatpush1.msra.mxu0 0.0
        %2142 = vmatprep.subr.mxu0 0.0
        %2143 = vmatpush1.msra.mxu0 0.0
        %2144 = vmatprep.subr.mxu0 0.0
        %2145 = vmatpush1.msra.mxu0 0.0
        %2146 = vmatprep.subr.mxu0 0.0
        %2147 = vmatpush1.msra.mxu0 0.0
        %2148 = vmatprep.subr.mxu0 0.0
        %2149 = vmatpush1.msra.mxu0 0.0
        %2150 = vmatprep.subr.mxu0 0.0
        %2151 = vmatpush1.msra.mxu0 0.0
        %2152 = vmatprep.subr.mxu0 0.0
        %2153 = vmatpush1.msra.mxu0 0.0
        %2154 = vmatprep.subr.mxu0 0.0
        %2155 = vmatpush1.msra.mxu0 0.0
        %2156 = vmatprep.subr.mxu0 0.0
        %2157 = vmatpush1.msra.mxu0 0.0
        %2158 = vmatprep.subr.mxu0 0.0
        %2159 = vmatpush1.msra.mxu0 0.0
        %2160 = vmatprep.subr.mxu0 0.0
        %2161 = vmatpush1.msra.mxu0 0.0
        %2162 = vmatprep.subr.mxu0 0.0
        %2163 = vmatpush1.msra.mxu0 0.0
        %2164 = vmatprep.subr.mxu0 0.0
        %2165 = vmatpush1.msra.mxu0 0.0
        %2166 = vmatprep.subr.mxu0 0.0
        %2167 = vmatpush1.msra.mxu0 0.0
        %2168 = vmatprep.subr.mxu0 0.0
        %2169 = vmatpush1.msra.mxu0 0.0
        %2170 = vmatprep.subr.mxu0 0.0
        %2171 = vmatpush1.msra.mxu0 0.0
        %2172 = vmatprep.subr.mxu0 0.0
        %2173 = vmatpush1.msra.mxu0 0.0
        %2174 = vmatprep.subr.mxu0 0.0
        %2175 = vmatpush1.msra.mxu0 0.0
        %2176 = vmatprep.subr.mxu0 0.0
        %2177 = vmatpush1.msra.mxu0 0.0
        %2178 = vmatprep.subr.mxu0 0.0
        %2179 = vmatpush1.msra.mxu0 0.0
        %2180 = vmatprep.subr.mxu0 0.0
        %2181 = vmatpush1.msra.mxu0 0.0
        %2182 = vmatprep.subr.mxu0 0.0
        %2183 = vmatpush1.msra.mxu0 0.0
        %2184 = vmatprep.mubr.f32.mxu0 0.0
        %2185 = vmatmul.mubr.f32.gmra.mrb[0].mxu0 %v2118
        %v2186 = vpop.f32.mrb[0].mxu0
        %v2187 = vadd.f32 %v2115, %v2186
        %v2188 = vpop.f32.mrb[0].mxu0
        %2189 = vdwg.mxu0
        %v2190 = vmul.f32 %v2187, %v2187
        %v2191 = vmul.f32 %v2187, %v2190
        %v2192 = vmul.f32 %v2191, 0.044715
        %v2193 = vadd.f32 %v2187, %v2192
        %v2194 = vmul.f32 %v2193, 0.7978846
        %v2195 = vtanh.pop %v2194
        %v2196 = vadd.f32 %v2195, 1.0
        %v2197 = vmul.f32 %v2196, 0.5
        %v2198 = vmul.f32 %v2187, %v2197
        %s2199 = scalar_lea.vmem %s13, 64
        %v2200 = vld [vmem:[%s2199] sm:$0xff]
        %v2201 = vld [vmem:[%s2199 + $0x8] sm:$0xff]
        %v2202 = vld [vmem:[%s2199 + $0x10] sm:$0xff]
        %v2203 = vld [vmem:[%s2199 + $0x18] sm:$0xff]
        %v2204 = vld [vmem:[%s2199 + $0x20] sm:$0xff]
        %v2205 = vld [vmem:[%s2199 + $0x28] sm:$0xff]
        %v2206 = vld [vmem:[%s2199 + $0x30] sm:$0xff]
        %v2207 = vld [vmem:[%s2199 + $0x38] sm:$0xff]
        %s2208 = scalar_lea.vmem %s14, 1
        %v2209 = vld [vmem:[%s2208] sm:$0x1]
        %v2211 = vlaneseq
        %v2212 = vshrl.u32 %v2211, 7
        %v2213 = vsub.s32 0, %v2212
        %v2214 = vrot.slane %v2209, %v2213
        %v2217 = vsel %vm1387, %v2198, 0
        %2219 = vmatprep.subr.mxu0 0.0
        %2220 = vmatpush1.msra.mxu0 %v2200
        %2221 = vmatprep.subr.mxu0 0.0
        %2222 = vmatpush1.msra.mxu0 %v2201
        %2223 = vmatprep.subr.mxu0 0.0
        %2224 = vmatpush1.msra.mxu0 %v2202
        %2225 = vmatprep.subr.mxu0 0.0
        %2226 = vmatpush1.msra.mxu0 %v2203
        %2227 = vmatprep.subr.mxu0 0.0
        %2228 = vmatpush1.msra.mxu0 %v2204
        %2229 = vmatprep.subr.mxu0 0.0
        %2230 = vmatpush1.msra.mxu0 %v2205
        %2231 = vmatprep.subr.mxu0 0.0
        %2232 = vmatpush1.msra.mxu0 %v2206
        %2233 = vmatprep.subr.mxu0 0.0
        %2234 = vmatpush1.msra.mxu0 %v2207
        %2235 = vmatprep.subr.mxu0 0.0
        %2236 = vmatpush1.msra.mxu0 0.0
        %2237 = vmatprep.subr.mxu0 0.0
        %2238 = vmatpush1.msra.mxu0 0.0
        %2239 = vmatprep.subr.mxu0 0.0
        %2240 = vmatpush1.msra.mxu0 0.0
        %2241 = vmatprep.subr.mxu0 0.0
        %2242 = vmatpush1.msra.mxu0 0.0
        %2243 = vmatprep.subr.mxu0 0.0
        %2244 = vmatpush1.msra.mxu0 0.0
        %2245 = vmatprep.subr.mxu0 0.0
        %2246 = vmatpush1.msra.mxu0 0.0
        %2247 = vmatprep.subr.mxu0 0.0
        %2248 = vmatpush1.msra.mxu0 0.0
        %2249 = vmatprep.subr.mxu0 0.0
        %2250 = vmatpush1.msra.mxu0 0.0
        %2251 = vmatprep.subr.mxu0 0.0
        %2252 = vmatpush1.msra.mxu0 0.0
        %2253 = vmatprep.subr.mxu0 0.0
        %2254 = vmatpush1.msra.mxu0 0.0
        %2255 = vmatprep.subr.mxu0 0.0
        %2256 = vmatpush1.msra.mxu0 0.0
        %2257 = vmatprep.subr.mxu0 0.0
        %2258 = vmatpush1.msra.mxu0 0.0
        %2259 = vmatprep.subr.mxu0 0.0
        %2260 = vmatpush1.msra.mxu0 0.0
        %2261 = vmatprep.subr.mxu0 0.0
        %2262 = vmatpush1.msra.mxu0 0.0
        %2263 = vmatprep.subr.mxu0 0.0
        %2264 = vmatpush1.msra.mxu0 0.0
        %2265 = vmatprep.subr.mxu0 0.0
        %2266 = vmatpush1.msra.mxu0 0.0
        %2267 = vmatprep.subr.mxu0 0.0
        %2268 = vmatpush1.msra.mxu0 0.0
        %2269 = vmatprep.subr.mxu0 0.0
        %2270 = vmatpush1.msra.mxu0 0.0
        %2271 = vmatprep.subr.mxu0 0.0
        %2272 = vmatpush1.msra.mxu0 0.0
        %2273 = vmatprep.subr.mxu0 0.0
        %2274 = vmatpush1.msra.mxu0 0.0
        %2275 = vmatprep.subr.mxu0 0.0
        %2276 = vmatpush1.msra.mxu0 0.0
        %2277 = vmatprep.subr.mxu0 0.0
        %2278 = vmatpush1.msra.mxu0 0.0
        %2279 = vmatprep.subr.mxu0 0.0
        %2280 = vmatpush1.msra.mxu0 0.0
        %2281 = vmatprep.subr.mxu0 0.0
        %2282 = vmatpush1.msra.mxu0 0.0
        %2283 = vmatprep.mubr.f32.mxu0 0.0
        %2284 = vmatmul.mubr.f32.gmra.mrb[0].mxu0 %v2217
        %v2285 = vpop.f32.mrb[0].mxu0
        %v2286 = vadd.f32 %v2214, %v2285
        %v2287 = vpop.f32.mrb[0].mxu0
        %2288 = vdwg.mxu0
        %v2289 = vadd.f32 %v2103, %v2286
        %s2290 = scalar_lea.vmem %s15, 1
        %v2291 = vld [vmem:[%s2290] sm:$0x1]
        %s2292 = scalar_lea.vmem %s16, 1
        %v2293 = vld [vmem:[%s2292] sm:$0x1]
        %v2294 = vsel %vm635, %v2289, 0.0
        %2295 = vadd.xlane.f32.xlu0 %v2294
        %v2296 = vpop.xlane.xlu0 %2295
        %v2297 = vmul.f32 %v2296, %v639
        %v2298 = vsub.f32 %v2289, %v2297
        %v2299 = vmul.f32 %v2298, %v2298
        %v2300 = vsel %vm635, %v2299, 0.0
        %2301 = vadd.xlane.f32.xlu0 %v2300
        %v2302 = vpop.xlane.xlu0 %2301
        %v2303 = vmul.f32 %v2302, %v639
        %v2304 = vadd.f32 %v2303, 1e-12
        %v2305 = vrsqrt.pop %v2304
        %v2306 = vmul.f32 %v2298, %v2305
        %v2308 = vlaneseq
        %v2309 = vshrl.u32 %v2308, 7
        %v2310 = vsub.s32 0, %v2309
        %v2311 = vrot.slane %v2291, %v2310
        %v2313 = vmul.f32 %v2306, %v2311
        %v2315 = vlaneseq
        %v2316 = vshrl.u32 %v2315, 7
        %v2317 = vsub.s32 0, %v2316
        %v2318 = vrot.slane %v2293, %v2317
        %v2320 = vadd.f32 %v2313, %v2318
        %v2322 = vsel %vm846, %v612, 0
        %2324 = vmatprep.subr.mxu0 0.0
        %2325 = vmatpush1.msra.mxu0 %v2320
        %2326 = vmatprep.subr.mxu0 0.0
        %2327 = vmatpush1.msra.mxu0 0.0
        %2328 = vmatprep.subr.mxu0 0.0
        %2329 = vmatpush1.msra.mxu0 0.0
        %2330 = vmatprep.subr.mxu0 0.0
        %2331 = vmatpush1.msra.mxu0 0.0
        %2332 = vmatprep.subr.mxu0 0.0
        %2333 = vmatpush1.msra.mxu0 0.0
        %2334 = vmatprep.subr.mxu0 0.0
        %2335 = vmatpush1.msra.mxu0 0.0
        %2336 = vmatprep.subr.mxu0 0.0
        %2337 = vmatpush1.msra.mxu0 0.0
        %2338 = vmatprep.subr.mxu0 0.0
        %2339 = vmatpush1.msra.mxu0 0.0
        %2340 = vmatprep.subr.mxu0 0.0
        %2341 = vmatpush1.msra.mxu0 0.0
        %2342 = vmatprep.subr.mxu0 0.0
        %2343 = vmatpush1.msra.mxu0 0.0
        %2344 = vmatprep.subr.mxu0 0.0
        %2345 = vmatpush1.msra.mxu0 0.0
        %2346 = vmatprep.subr.mxu0 0.0
        %2347 = vmatpush1.msra.mxu0 0.0
        %2348 = vmatprep.subr.mxu0 0.0
        %2349 = vmatpush1.msra.mxu0 0.0
        %2350 = vmatprep.subr.mxu0 0.0
        %2351 = vmatpush1.msra.mxu0 0.0
        %2352 = vmatprep.subr.mxu0 0.0
        %2353 = vmatpush1.msra.mxu0 0.0
        %2354 = vmatprep.subr.mxu0 0.0
        %2355 = vmatpush1.msra.mxu0 0.0
        %2356 = vmatprep.subr.mxu0 0.0
        %2357 = vmatpush1.msra.mxu0 0.0
        %2358 = vmatprep.subr.mxu0 0.0
        %2359 = vmatpush1.msra.mxu0 0.0
        %2360 = vmatprep.subr.mxu0 0.0
        %2361 = vmatpush1.msra.mxu0 0.0
        %2362 = vmatprep.subr.mxu0 0.0
        %2363 = vmatpush1.msra.mxu0 0.0
        %2364 = vmatprep.subr.mxu0 0.0
        %2365 = vmatpush1.msra.mxu0 0.0
        %2366 = vmatprep.subr.mxu0 0.0
        %2367 = vmatpush1.msra.mxu0 0.0
        %2368 = vmatprep.subr.mxu0 0.0
        %2369 = vmatpush1.msra.mxu0 0.0
        %2370 = vmatprep.subr.mxu0 0.0
        %2371 = vmatpush1.msra.mxu0 0.0
        %2372 = vmatprep.subr.mxu0 0.0
        %2373 = vmatpush1.msra.mxu0 0.0
        %2374 = vmatprep.subr.mxu0 0.0
        %2375 = vmatpush1.msra.mxu0 0.0
        %2376 = vmatprep.subr.mxu0 0.0
        %2377 = vmatpush1.msra.mxu0 0.0
        %2378 = vmatprep.subr.mxu0 0.0
        %2379 = vmatpush1.msra.mxu0 0.0
        %2380 = vmatprep.subr.mxu0 0.0
        %2381 = vmatpush1.msra.mxu0 0.0
        %2382 = vmatprep.subr.mxu0 0.0
        %2383 = vmatpush1.msra.mxu0 0.0
        %2384 = vmatprep.subr.mxu0 0.0
        %2385 = vmatpush1.msra.mxu0 0.0
        %2386 = vmatprep.subr.mxu0 0.0
        %2387 = vmatpush1.msra.mxu0 0.0
        %2388 = vmatprep.mubr.f32.mxu0 0.0
        %2389 = vmatmul.mubr.f32.gmra.mrb[0].mxu0 %v2322
        %v2390 = vpop.f32.mrb[0].mxu0
        %v2391 = vadd.f32 0.0, %v2390
        %v2392 = vpop.f32.mrb[0].mxu0
        %2393 = vdwg.mxu0
        %v2394 = vstv %s629
        %v2395 = vmul.f32 %v2391, %v2394
        %v2396 = vld [vmem:[%s17] sm:$0xff]
        %v2397 = vld [vmem:[%s17 + $0x8] sm:$0xff]
        %v2398 = vld [vmem:[%s17 + $0x10] sm:$0xff]
        %v2399 = vld [vmem:[%s17 + $0x18] sm:$0xff]
        %v2400 = vld [vmem:[%s18] sm:$0x1]
        %v2402 = vsel %vm635, %v2395, 0
        %2404 = vmatprep.subr.mxu0 0.0
        %2405 = vmatpush1.msra.mxu0 %v2396
        %2406 = vmatprep.subr.mxu0 0.0
        %2407 = vmatpush1.msra.mxu0 %v2397
        %2408 = vmatprep.subr.mxu0 0.0
        %2409 = vmatpush1.msra.mxu0 %v2398
        %2410 = vmatprep.subr.mxu0 0.0
        %2411 = vmatpush1.msra.mxu0 %v2399
        %2412 = vmatprep.subr.mxu0 0.0
        %2413 = vmatpush1.msra.mxu0 0.0
        %2414 = vmatprep.subr.mxu0 0.0
        %2415 = vmatpush1.msra.mxu0 0.0
        %2416 = vmatprep.subr.mxu0 0.0
        %2417 = vmatpush1.msra.mxu0 0.0
        %2418 = vmatprep.subr.mxu0 0.0
        %2419 = vmatpush1.msra.mxu0 0.0
        %2420 = vmatprep.subr.mxu0 0.0
        %2421 = vmatpush1.msra.mxu0 0.0
        %2422 = vmatprep.subr.mxu0 0.0
        %2423 = vmatpush1.msra.mxu0 0.0
        %2424 = vmatprep.subr.mxu0 0.0
        %2425 = vmatpush1.msra.mxu0 0.0
        %2426 = vmatprep.subr.mxu0 0.0
        %2427 = vmatpush1.msra.mxu0 0.0
        %2428 = vmatprep.subr.mxu0 0.0
        %2429 = vmatpush1.msra.mxu0 0.0
        %2430 = vmatprep.subr.mxu0 0.0
        %2431 = vmatpush1.msra.mxu0 0.0
        %2432 = vmatprep.subr.mxu0 0.0
        %2433 = vmatpush1.msra.mxu0 0.0
        %2434 = vmatprep.subr.mxu0 0.0
        %2435 = vmatpush1.msra.mxu0 0.0
        %2436 = vmatprep.subr.mxu0 0.0
        %2437 = vmatpush1.msra.mxu0 0.0
        %2438 = vmatprep.subr.mxu0 0.0
        %2439 = vmatpush1.msra.mxu0 0.0
        %2440 = vmatprep.subr.mxu0 0.0
        %2441 = vmatpush1.msra.mxu0 0.0
        %2442 = vmatprep.subr.mxu0 0.0
        %2443 = vmatpush1.msra.mxu0 0.0
        %2444 = vmatprep.subr.mxu0 0.0
        %2445 = vmatpush1.msra.mxu0 0.0
        %2446 = vmatprep.subr.mxu0 0.0
        %2447 = vmatpush1.msra.mxu0 0.0
        %2448 = vmatprep.subr.mxu0 0.0
        %2449 = vmatpush1.msra.mxu0 0.0
        %2450 = vmatprep.subr.mxu0 0.0
        %2451 = vmatpush1.msra.mxu0 0.0
        %2452 = vmatprep.subr.mxu0 0.0
        %2453 = vmatpush1.msra.mxu0 0.0
        %2454 = vmatprep.subr.mxu0 0.0
        %2455 = vmatpush1.msra.mxu0 0.0
        %2456 = vmatprep.subr.mxu0 0.0
        %2457 = vmatpush1.msra.mxu0 0.0
        %2458 = vmatprep.subr.mxu0 0.0
        %2459 = vmatpush1.msra.mxu0 0.0
        %2460 = vmatprep.subr.mxu0 0.0
        %2461 = vmatpush1.msra.mxu0 0.0
        %2462 = vmatprep.subr.mxu0 0.0
        %2463 = vmatpush1.msra.mxu0 0.0
        %2464 = vmatprep.subr.mxu0 0.0
        %2465 = vmatpush1.msra.mxu0 0.0
        %2466 = vmatprep.subr.mxu0 0.0
        %2467 = vmatpush1.msra.mxu0 0.0
        %2468 = vmatprep.mubr.f32.mxu0 0.0
        %2469 = vmatmul.mubr.f32.gmra.mrb[0].mxu0 %v2402
        %v2470 = vpop.f32.mrb[0].mxu0
        %v2471 = vadd.f32 %v2400, %v2470
        %v2472 = vpop.f32.mrb[0].mxu0
        %2473 = vdwg.mxu0
        %2474 = vst [vmem:[%s603] sm:$0x1] %v2471
        %s2475 = sand.u32 %s450, 1
        %s2476 = scalar_lea.sflag [#allocation3], %s2475
        %s2477 = sand.u32 %s450, 1
        %s2478 = scalar_lea.vmem [#allocation2], %s2477
        // Predicated region
        $region97: #{custom_model_forward.1} parent=95 // pred_check
          %p2479 = pneg %p460
        $region98: #{custom_model_forward.1} parent=95 // pred_check_branch
          %2481 = sbr.rel (%p2479) target = $region100
        $region99: #{custom_model_forward.1} parent=95 // pred_region
          %s2483 = ssub.s32 16, 16
          %2484 = vsyncadd %s2476, %s2483
          %s2485 = smul.addr %s33, 16
          %s2486 = scalar_lea.hbm %s19, %s2485
          %s2488 = sshll.u32 %s2478, 4
          %s2489 = int_to_ptr.vmem [resolvable:$true] %s2488
          %2491 = dma.vmem_to_hbm [thread:$0]  %s2489, 16, %s2486, %s2476
        $region100: #{custom_model_forward.1} parent=95 // pred_fallthru
          _
      $region96: #{custom_model_forward.1} parent=5 // pred_fallthru
        _
      %p2492 = scmp.le.s32.totalorder 2, %s28
      // Predicated region
      $region101: #{custom_model_forward.1} parent=5 // pred_check
        %p2493 = pneg %p2492
      $region102: #{custom_model_forward.1} parent=5 // pred_check_branch
        %2495 = sbr.rel (%p2493) target = $region104
      $region103: #{custom_model_forward.1} parent=5 // pred_region
        %s2496 = ssub.s32 %s28, 2
        // Predicated region
        $region105: #{custom_model_forward.1} parent=103 // pred_check
          %p2497 = pneg %p466
        $region106: #{custom_model_forward.1} parent=103 // pred_check_branch
          %2499 = sbr.rel (%p2497) target = $region108
        $region107: #{custom_model_forward.1} parent=103 // pred_region
          %s2500 = sand.u32 %s451, 1
          %s2501 = scalar_lea.sflag [#allocation3], %s2500
          %s2502 = sand.u32 %s451, 1
          %s2503 = scalar_lea.vmem [#allocation2], %s2502
          %2504 = dma.done %s2501, 16
        $region108: #{custom_model_forward.1} parent=103 // pred_fallthru
          _
      $region104: #{custom_model_forward.1} parent=5 // pred_fallthru
        _
    $region6: #{custom_model_forward.1} parent=1 // loop_footer
      %s32 = sadd.s32 1, %s28
    $region7: #{custom_model_forward.1} parent=1 // loop_footer_branch
      %27 = sbr.rel target = $region3
    $region8: #{custom_model_forward.1} parent=1 // loop_exit
      _
    %2505 = vsyncpa [#allocation3], 1
    %s2506 = scalar_lea.sflag [#allocation3], 1
    %2507 = vsyncpa %s2506, 1

</llo_original>
